<compile_context>
chip_gen: v7x
topology: tpu7x:2x2x1
jax: 0.10.0
libtpu: 0.0.40
codegen_flags: <defaults>
</compile_context>

<pallas_src>
import functools

import jax
import jax.numpy as jnp
from jax import lax
from jax.experimental import pallas as pl
from jax.experimental.pallas import tpu as pltpu

KSIZE = 7
PAD = (KSIZE - 1) // 2


def _vmem_capacity_bytes():
    """Physical VMEM of the local chip; conservative default if unknown."""
    try:
        return int(pltpu.get_tpu_info().vmem_capacity_bytes)
    except Exception:
        return 64 * 1024 * 1024          # v7x-sized: safe lower bound


def _pick_c_tile(C, HW, itemsize, budget_bytes):
    """Largest channel tile that divides C, fits the VMEM budget, and respects
    the sublane rule (multiple of 8, or the full C)."""
    if C * HW * itemsize <= budget_bytes or C <= 8:
        return C
    divisors = [d for d in range(8, C, 8) if C % d == 0]
    fitting = [d for d in divisors if d * HW * itemsize <= budget_bytes]
    if fitting:
        return max(fitting)
    if divisors:                          # nothing fits: best-effort smallest
        return min(divisors)
    return C


def _x_tile_spec(block_shape, index_map, buffers):
    """BlockSpec with deeper pipelining when this JAX exposes pl.Buffered."""
    try:
        return pl.BlockSpec(block_shape, index_map,
                            pipeline_mode=pl.Buffered(buffers))
    except Exception:
        return pl.BlockSpec(block_shape, index_map)


def _attention_map(mx, av, coord_ref, w_ref, H, W):
    """sigmoid(conv7x7([mx; av])) on flattened (1, HW) pooled maps.

    mx / av:   (1, HW) f32 values (channel max / mean).
    coord_ref: (2, HW) i32 VMEM ref; sublane 0 = p // W, sublane 1 = p % W.
    w_ref:     (98,) f32 SMEM ref, PyTorch (1, 2, 7, 7) layout flattened
               (index = c*49 + dy*7 + dx, c=0 -> max, c=1 -> avg).
    """
    HW = H * W
    # Stack both pooled channels on sublanes: every roll / select below then
    # covers both channels at once (halves the XLU / VPU op count).
    pooled = jnp.concatenate([mx, av], axis=0)                 # (2, HW) f32

    row = coord_ref[0:1, :]                                    # (1, HW) i32
    col = coord_ref[1:2, :]
    row_ok = [(row + (dy - PAD) >= 0) & (row + (dy - PAD) < H)
              for dy in range(KSIZE)]
    col_ok = [(col + (dx - PAD) >= 0) & (col + (dx - PAD) < W)
              for dx in range(KSIZE)]

    # (2, 1) selector: sublane 0 -> max-channel weight, sublane 1 -> avg.
    is_mx = lax.broadcasted_iota(jnp.int32, (2, 1), 0) == 0

    lane_roll_ok = (HW % 128 == 0)
    acc = jnp.zeros((2, HW), jnp.float32)
    # TODO(synk): for HW >~ 16K strip-tile this tap loop over lane chunks to
    # bound vreg/VMEM pressure (the live set scales with HW/128 vregs).
    for dy in range(KSIZE):
        for dx in range(KSIZE):
            k = dy * KSIZE + dx
            s = (dy - PAD) * W + (dx - PAD)        # flattened tap offset
            if s % HW == 0:
                shifted = pooled
            elif lane_roll_ok:
                # One XLU lane-rotate per tap (vs slice+concat of jnp.roll).
                shifted = pltpu.roll(pooled, (-s) % HW, axis=1)
            else:
                shifted = jnp.roll(pooled, -s, axis=1)
            tap = jnp.where(row_ok[dy] & col_ok[dx], shifted, 0.0)
            wk = jnp.where(is_mx, w_ref[k], w_ref[KSIZE * KSIZE + k])
            acc = acc + wk * tap
    logits = jnp.sum(acc, axis=0, keepdims=True)               # (1, HW)
    return jax.nn.sigmoid(logits)


def _fused_kernel(w_ref, coord_ref, x_ref, o_ref, *, C, H, W):
    """Fused per-batch pass: reduce(C) -> conv -> sigmoid -> rescale."""
    x = x_ref[...]                                             # (C, HW)
    xf = x.astype(jnp.float32)
    mx = jnp.max(xf, axis=0, keepdims=True)                    # (1, HW)
    av = jnp.sum(xf, axis=0, keepdims=True) * jnp.float32(1.0 / C)
    att = _attention_map(mx, av, coord_ref, w_ref, H, W)       # (1, HW) f32
    if jnp.dtype(x_ref.dtype).itemsize <= 2:
        o_ref[...] = x * att.astype(x_ref.dtype)   # 16-bit: multiply natively
    else:
        o_ref[...] = (xf * att).astype(o_ref.dtype)


def _pool_conv_kernel(w_ref, coord_ref, x_ref, att_ref, mx_ref, sm_ref,
                      *, C, H, W, G):
    """Fallback pass 1: channel max/sum tiled over C -> 7x7 conv -> sigmoid."""
    HW = H * W
    c_idx = pl.program_id(1)
    n_c = pl.num_programs(1)

    x = x_ref[...].astype(jnp.float32)                         # (TC, HW)
    if G > 1:
        xg = x.reshape(x.shape[0] // G, G, HW)
        pmax = jnp.max(xg, axis=0)                             # (G, HW), VPU-only
        psum = jnp.sum(xg, axis=0)
    else:
        pmax = jnp.max(x, axis=0, keepdims=True)               # (1, HW)
        psum = jnp.sum(x, axis=0, keepdims=True)

    @pl.when(c_idx == 0)
    def _():                                                   # init partials
        mx_ref[...] = pmax
        sm_ref[...] = psum

    @pl.when(c_idx > 0)
    def _():                                                   # accumulate
        mx_ref[...] = jnp.maximum(mx_ref[...], pmax)
        sm_ref[...] = sm_ref[...] + psum

    @pl.when(c_idx == n_c - 1)
    def _():                                                   # finalize
        mx = jnp.max(mx_ref[...], axis=0, keepdims=True)       # collapse G
        av = jnp.sum(sm_ref[...], axis=0, keepdims=True) * jnp.float32(1.0 / C)
        att_ref[...] = _attention_map(mx, av, coord_ref, w_ref, H, W)


def _rescale_kernel(att_ref, x_ref, o_ref):
    """Fallback pass 2: out = attention-map * x (lane-dense, parallel)."""
    x = x_ref[...]
    if jnp.dtype(x_ref.dtype).itemsize <= 2:
        o_ref[...] = x * att_ref[...].astype(x_ref.dtype)
    else:
        o_ref[...] = (x.astype(jnp.float32) * att_ref[...]).astype(o_ref.dtype)


def spatial_attention(x, conv_weight, *, force_two_pass=False,
                      tile_budget_bytes=None):
    """SpatialAttention forward.

    x:           (B, C, H, W) float array.
    conv_weight: (1, 2, 7, 7) conv kernel (out=1, in=[max, avg], no bias).
    """
    B, C, H, W = x.shape
    HW = H * W
    itemsize = jnp.dtype(x.dtype).itemsize

    vmem_cap = _vmem_capacity_bytes()
    # Scoped-VMEM request: well under physical on every generation but above
    # the 16/32 MiB defaults so larger tiles do not silently fall back.
    vmem_limit = max(32 * 1024 * 1024,
                     min(vmem_cap * 3 // 4, 96 * 1024 * 1024))

    x2 = x.reshape(B, C, HW)                              # lane-dense view
    w_flat = conv_weight.reshape(-1).astype(jnp.float32)  # (98,) -> SMEM
    p = jnp.arange(HW, dtype=jnp.int32)
    coords = jnp.stack([p // W, p % W], axis=0)           # (2, HW) i32

    # ------------- fused single pass (x read from HBM exactly once) --------
    # Live VMEM: in + out blocks, double-buffered, + f32 working set for the
    # reduction / conv epilogue.
    slice_bytes = C * HW * itemsize
    fused_live = 4 * slice_bytes + C * HW * 4 + 96 * HW * 4
    if not force_two_pass and fused_live <= vmem_limit:
        out2 = pl.pallas_call(
            functools.partial(_fused_kernel, C=C, H=H, W=W),
            out_shape=jax.ShapeDtypeStruct((B, C, HW), x.dtype),
            grid_spec=pltpu.PrefetchScalarGridSpec(
                num_scalar_prefetch=0,
                grid=(B,),
                in_specs=[
                    pl.BlockSpec(memory_space=pltpu.SMEM),              # weights
                    pl.BlockSpec((2, HW), lambda b: (0, 0)),            # coords
                    pl.BlockSpec((None, C, HW), lambda b: (b, 0, 0)),   # x slice
                ],
                out_specs=pl.BlockSpec((None, C, HW), lambda b: (b, 0, 0)),
            ),
            input_output_aliases={2: 0},     # output overwrites x's buffer
            compiler_params=pltpu.CompilerParams(
                dimension_semantics=("parallel",),
                vmem_limit_bytes=vmem_limit,
            ),
            cost_estimate=pl.CostEstimate(
                flops=3 * B * C * HW + 4 * KSIZE * KSIZE * B * HW,
                transcendentals=B * HW,
                bytes_accessed=2 * B * C * HW * itemsize + B * HW * 4,
            ),
        )(w_flat, coords, x2)
        return out2.reshape(B, C, H, W)

    # ------------- fallback: two passes, tiled over C ----------------------
    if tile_budget_bytes is None:
        tile_budget_bytes = min(6 * 1024 * 1024,
                                max(2 * 1024 * 1024, vmem_limit // 8))
    TC = _pick_c_tile(C, HW, itemsize, tile_budget_bytes)
    n_c = C // TC
    G = 8 if TC % 8 == 0 else 1      # per-step partial kept as (G, HW)

    att = pl.pallas_call(
        functools.partial(_pool_conv_kernel, C=C, H=H, W=W, G=G),
        out_shape=jax.ShapeDtypeStruct((B, 1, HW), jnp.float32),
        grid_spec=pltpu.PrefetchScalarGridSpec(
            num_scalar_prefetch=0,
            grid=(B, n_c),
            in_specs=[
                pl.BlockSpec(memory_space=pltpu.SMEM),                  # weights
                pl.BlockSpec((2, HW), lambda b, c: (0, 0)),             # coords
                pl.BlockSpec((None, TC, HW), lambda b, c: (b, c, 0)),   # x tile
            ],
            out_specs=pl.BlockSpec((None, 1, HW), lambda b, c: (b, 0, 0)),
            scratch_shapes=[
                pltpu.VMEM((G, HW), jnp.float32),   # running max partials
                pltpu.VMEM((G, HW), jnp.float32),   # running sum partials
            ],
        ),
        compiler_params=pltpu.CompilerParams(
            dimension_semantics=("parallel", "arbitrary"),
            vmem_limit_bytes=vmem_limit,
        ),
        cost_estimate=pl.CostEstimate(
            flops=2 * B * C * HW + 4 * KSIZE * KSIZE * B * HW,
            transcendentals=B * HW,
            bytes_accessed=B * C * HW * itemsize + B * HW * 4,
        ),
    )(w_flat, coords, x2)

    out2 = pl.pallas_call(
        _rescale_kernel,
        out_shape=jax.ShapeDtypeStruct((B, C, HW), x.dtype),
        grid_spec=pltpu.PrefetchScalarGridSpec(
            num_scalar_prefetch=0,
            grid=(B, n_c),
            in_specs=[
                pl.BlockSpec((None, 1, HW), lambda b, c: (b, 0, 0)),      # att
                _x_tile_spec((None, TC, HW), lambda b, c: (b, c, 0), 3),  # x
            ],
            out_specs=pl.BlockSpec((None, TC, HW), lambda b, c: (b, c, 0)),
        ),
        input_output_aliases={1: 0},     # output overwrites x's buffer
        compiler_params=pltpu.CompilerParams(
            dimension_semantics=("parallel", "parallel"),
            vmem_limit_bytes=vmem_limit,
        ),
        cost_estimate=pl.CostEstimate(
            flops=B * C * HW,
            transcendentals=0,
            bytes_accessed=2 * B * C * HW * itemsize + B * HW * 4,
        ),
    )(att, x2)
    return out2.reshape(B, C, H, W)


def spatial_attention_reference(x, conv_weight):
    mx = jnp.max(x, axis=1, keepdims=True)
    av = jnp.mean(x, axis=1, keepdims=True)
    cat = jnp.concatenate([mx, av], axis=1)
    conv = lax.conv_general_dilated(
        cat, conv_weight,
        window_strides=(1, 1),
        padding=((PAD, PAD), (PAD, PAD)),
        dimension_numbers=("NCHW", "OIHW", "NCHW"),
    )
    return jax.nn.sigmoid(conv) * x


if __name__ == "__main__":
    key = jax.random.PRNGKey(0)
    kx, kw, kx2 = jax.random.split(key, 3)

    B, C, H, W = 2, 4, 16, 16
    x = jax.random.normal(kx, (B, C, H, W), dtype=jnp.float32)
    # Deterministic synthetic conv weight (kaiming-ish scale), no bias.
    conv_weight = 0.1 * jax.random.normal(kw, (1, 2, KSIZE, KSIZE),
                                          dtype=jnp.float32)

    ref = jax.block_until_ready(spatial_attention_reference(x, conv_weight))

    # Primary fused single-pass path.
    out = jax.block_until_ready(spatial_attention(x, conv_weight))
    assert out.shape == (B, C, H, W)
    err = float(jnp.max(jnp.abs(out - ref)))
    assert jnp.allclose(out, ref, atol=1e-5, rtol=1e-5), f"fused max err {err}"

    # Two-pass fallback, single channel tile (G == 1 accumulation path).
    out_tp = jax.block_until_ready(
        spatial_attention(x, conv_weight, force_two_pass=True))
    err = float(jnp.max(jnp.abs(out_tp - ref)))
    assert jnp.allclose(out_tp, ref, atol=1e-5, rtol=1e-5), f"two-pass err {err}"

    # Two-pass fallback with two 8-channel tiles (grouped (8, HW) partials).
    C2 = 16
    xb = jax.random.normal(kx2, (B, C2, H, W), dtype=jnp.float32)
    ref_b = jax.block_until_ready(spatial_attention_reference(xb, conv_weight))
    out_b = jax.block_until_ready(
        spatial_attention(xb, conv_weight, force_two_pass=True,
                          tile_budget_bytes=8 * H * W * 4))
    err = float(jnp.max(jnp.abs(out_b - ref_b)))
    assert jnp.allclose(out_b, ref_b, atol=1e-5, rtol=1e-5), f"tiled err {err}"

    print("KERNEL_OK")
</pallas_src>

<mosaic_0001>
module attributes {stable_mosaic.version = 11 : i64} {
  func.func @_fused_kernel(%arg0: i32, %arg1: memref<98xf32, #tpu.memory_space<smem>>, %arg2: memref<2x256xi32, #tpu.memory_space<vmem>>, %arg3: memref<1x4x256xf32, #tpu.memory_space<vmem>>, %arg4: memref<1x4x256xf32, #tpu.memory_space<vmem>>) attributes {dimension_semantics = [#tpu.dimension_semantics<parallel>], iteration_bounds = array<i64: 2>, scalar_prefetch = 0 : i64, scratch_operands = 0 : i64, tpu.core_type = #tpu.core_type<tc>, window_params = [{transform_indices = @transform_0, window_bounds = array<i64: 98>}, {pipeline_mode = #tpu.pipeline_mode<synchronous>, transform_indices = @transform_1, window_bounds = array<i64: 2, 256>}, {transform_indices = @transform_2, window_bounds = array<i64: 1, 4, 256>}, {transform_indices = @transform_3, window_bounds = array<i64: 1, 4, 256>}]} {
    %c0 = arith.constant 0 : index
    %c0_0 = arith.constant 0 : index
    %c0_1 = arith.constant 0 : index
    %0 = vector.load %arg3[%c0, %c0_0, %c0_1] : memref<1x4x256xf32, #tpu.memory_space<vmem>>, vector<1x4x256xf32>
    %1 = vector.shape_cast %0 : vector<1x4x256xf32> to vector<4x256xf32>
    %cst = arith.constant dense<0xFF800000> : vector<256xf32>
    %2 = vector.multi_reduction <maximumf>, %1, %cst [0] : vector<4x256xf32> to vector<256xf32>
    %3 = vector.shape_cast %2 : vector<256xf32> to vector<1x256xf32>
    %cst_2 = arith.constant dense<0.000000e+00> : vector<256xf32>
    %4 = vector.multi_reduction <add>, %1, %cst_2 [0] : vector<4x256xf32> to vector<256xf32>
    %5 = vector.shape_cast %4 : vector<256xf32> to vector<1x256xf32>
    %cst_3 = arith.constant 2.500000e-01 : f32
    %6 = vector.broadcast %cst_3 : f32 to vector<1x256xf32>
    %7 = arith.mulf %5, %6 : vector<1x256xf32>
    %8 = tpu.concatenate %3, %7 in 0 : vector<1x256xf32>, vector<1x256xf32> -> vector<2x256xf32>
    %c0_4 = arith.constant 0 : index
    %c0_5 = arith.constant 0 : index
    %9 = vector.load %arg2[%c0_4, %c0_5] : memref<2x256xi32, #tpu.memory_space<vmem>>, vector<1x256xi32>
    %c1 = arith.constant 1 : index
    %c0_6 = arith.constant 0 : index
    %10 = vector.load %arg2[%c1, %c0_6] : memref<2x256xi32, #tpu.memory_space<vmem>>, vector<1x256xi32>
    %c-3_i32 = arith.constant -3 : i32
    %11 = vector.broadcast %c-3_i32 : i32 to vector<1x256xi32>
    %12 = arith.addi %9, %11 : vector<1x256xi32>
    %c0_i32 = arith.constant 0 : i32
    %13 = vector.broadcast %c0_i32 : i32 to vector<1x256xi32>
    %14 = arith.cmpi sge, %12, %13 : vector<1x256xi32>
    %c-3_i32_7 = arith.constant -3 : i32
    %15 = vector.broadcast %c-3_i32_7 : i32 to vector<1x256xi32>
    %16 = arith.addi %9, %15 : vector<1x256xi32>
    %c16_i32 = arith.constant 16 : i32
    %17 = vector.broadcast %c16_i32 : i32 to vector<1x256xi32>
    %18 = arith.cmpi slt, %16, %17 : vector<1x256xi32>
    %19 = arith.andi %14, %18 : vector<1x256xi1>
    %c-2_i32 = arith.constant -2 : i32
    %20 = vector.broadcast %c-2_i32 : i32 to vector<1x256xi32>
    %21 = arith.addi %9, %20 : vector<1x256xi32>
    %c0_i32_8 = arith.constant 0 : i32
    %22 = vector.broadcast %c0_i32_8 : i32 to vector<1x256xi32>
    %23 = arith.cmpi sge, %21, %22 : vector<1x256xi32>
    %c-2_i32_9 = arith.constant -2 : i32
    %24 = vector.broadcast %c-2_i32_9 : i32 to vector<1x256xi32>
    %25 = arith.addi %9, %24 : vector<1x256xi32>
    %c16_i32_10 = arith.constant 16 : i32
    %26 = vector.broadcast %c16_i32_10 : i32 to vector<1x256xi32>
    %27 = arith.cmpi slt, %25, %26 : vector<1x256xi32>
    %28 = arith.andi %23, %27 : vector<1x256xi1>
    %c-1_i32 = arith.constant -1 : i32
    %29 = vector.broadcast %c-1_i32 : i32 to vector<1x256xi32>
    %30 = arith.addi %9, %29 : vector<1x256xi32>
    %c0_i32_11 = arith.constant 0 : i32
    %31 = vector.broadcast %c0_i32_11 : i32 to vector<1x256xi32>
    %32 = arith.cmpi sge, %30, %31 : vector<1x256xi32>
    %c-1_i32_12 = arith.constant -1 : i32
    %33 = vector.broadcast %c-1_i32_12 : i32 to vector<1x256xi32>
    %34 = arith.addi %9, %33 : vector<1x256xi32>
    %c16_i32_13 = arith.constant 16 : i32
    %35 = vector.broadcast %c16_i32_13 : i32 to vector<1x256xi32>
    %36 = arith.cmpi slt, %34, %35 : vector<1x256xi32>
    %37 = arith.andi %32, %36 : vector<1x256xi1>
    %c0_i32_14 = arith.constant 0 : i32
    %38 = vector.broadcast %c0_i32_14 : i32 to vector<1x256xi32>
    %39 = arith.addi %9, %38 : vector<1x256xi32>
    %c0_i32_15 = arith.constant 0 : i32
    %40 = vector.broadcast %c0_i32_15 : i32 to vector<1x256xi32>
    %41 = arith.cmpi sge, %39, %40 : vector<1x256xi32>
    %c0_i32_16 = arith.constant 0 : i32
    %42 = vector.broadcast %c0_i32_16 : i32 to vector<1x256xi32>
    %43 = arith.addi %9, %42 : vector<1x256xi32>
    %c16_i32_17 = arith.constant 16 : i32
    %44 = vector.broadcast %c16_i32_17 : i32 to vector<1x256xi32>
    %45 = arith.cmpi slt, %43, %44 : vector<1x256xi32>
    %46 = arith.andi %41, %45 : vector<1x256xi1>
    %c1_i32 = arith.constant 1 : i32
    %47 = vector.broadcast %c1_i32 : i32 to vector<1x256xi32>
    %48 = arith.addi %9, %47 : vector<1x256xi32>
    %c0_i32_18 = arith.constant 0 : i32
    %49 = vector.broadcast %c0_i32_18 : i32 to vector<1x256xi32>
    %50 = arith.cmpi sge, %48, %49 : vector<1x256xi32>
    %c1_i32_19 = arith.constant 1 : i32
    %51 = vector.broadcast %c1_i32_19 : i32 to vector<1x256xi32>
    %52 = arith.addi %9, %51 : vector<1x256xi32>
    %c16_i32_20 = arith.constant 16 : i32
    %53 = vector.broadcast %c16_i32_20 : i32 to vector<1x256xi32>
    %54 = arith.cmpi slt, %52, %53 : vector<1x256xi32>
    %55 = arith.andi %50, %54 : vector<1x256xi1>
    %c2_i32 = arith.constant 2 : i32
    %56 = vector.broadcast %c2_i32 : i32 to vector<1x256xi32>
    %57 = arith.addi %9, %56 : vector<1x256xi32>
    %c0_i32_21 = arith.constant 0 : i32
    %58 = vector.broadcast %c0_i32_21 : i32 to vector<1x256xi32>
    %59 = arith.cmpi sge, %57, %58 : vector<1x256xi32>
    %c2_i32_22 = arith.constant 2 : i32
    %60 = vector.broadcast %c2_i32_22 : i32 to vector<1x256xi32>
    %61 = arith.addi %9, %60 : vector<1x256xi32>
    %c16_i32_23 = arith.constant 16 : i32
    %62 = vector.broadcast %c16_i32_23 : i32 to vector<1x256xi32>
    %63 = arith.cmpi slt, %61, %62 : vector<1x256xi32>
    %64 = arith.andi %59, %63 : vector<1x256xi1>
    %c3_i32 = arith.constant 3 : i32
    %65 = vector.broadcast %c3_i32 : i32 to vector<1x256xi32>
    %66 = arith.addi %9, %65 : vector<1x256xi32>
    %c0_i32_24 = arith.constant 0 : i32
    %67 = vector.broadcast %c0_i32_24 : i32 to vector<1x256xi32>
    %68 = arith.cmpi sge, %66, %67 : vector<1x256xi32>
    %c3_i32_25 = arith.constant 3 : i32
    %69 = vector.broadcast %c3_i32_25 : i32 to vector<1x256xi32>
    %70 = arith.addi %9, %69 : vector<1x256xi32>
    %c16_i32_26 = arith.constant 16 : i32
    %71 = vector.broadcast %c16_i32_26 : i32 to vector<1x256xi32>
    %72 = arith.cmpi slt, %70, %71 : vector<1x256xi32>
    %73 = arith.andi %68, %72 : vector<1x256xi1>
    %c-3_i32_27 = arith.constant -3 : i32
    %74 = vector.broadcast %c-3_i32_27 : i32 to vector<1x256xi32>
    %75 = arith.addi %10, %74 : vector<1x256xi32>
    %c0_i32_28 = arith.constant 0 : i32
    %76 = vector.broadcast %c0_i32_28 : i32 to vector<1x256xi32>
    %77 = arith.cmpi sge, %75, %76 : vector<1x256xi32>
    %c-3_i32_29 = arith.constant -3 : i32
    %78 = vector.broadcast %c-3_i32_29 : i32 to vector<1x256xi32>
    %79 = arith.addi %10, %78 : vector<1x256xi32>
    %c16_i32_30 = arith.constant 16 : i32
    %80 = vector.broadcast %c16_i32_30 : i32 to vector<1x256xi32>
    %81 = arith.cmpi slt, %79, %80 : vector<1x256xi32>
    %82 = arith.andi %77, %81 : vector<1x256xi1>
    %c-2_i32_31 = arith.constant -2 : i32
    %83 = vector.broadcast %c-2_i32_31 : i32 to vector<1x256xi32>
    %84 = arith.addi %10, %83 : vector<1x256xi32>
    %c0_i32_32 = arith.constant 0 : i32
    %85 = vector.broadcast %c0_i32_32 : i32 to vector<1x256xi32>
    %86 = arith.cmpi sge, %84, %85 : vector<1x256xi32>
    %c-2_i32_33 = arith.constant -2 : i32
    %87 = vector.broadcast %c-2_i32_33 : i32 to vector<1x256xi32>
    %88 = arith.addi %10, %87 : vector<1x256xi32>
    %c16_i32_34 = arith.constant 16 : i32
    %89 = vector.broadcast %c16_i32_34 : i32 to vector<1x256xi32>
    %90 = arith.cmpi slt, %88, %89 : vector<1x256xi32>
    %91 = arith.andi %86, %90 : vector<1x256xi1>
    %c-1_i32_35 = arith.constant -1 : i32
    %92 = vector.broadcast %c-1_i32_35 : i32 to vector<1x256xi32>
    %93 = arith.addi %10, %92 : vector<1x256xi32>
    %c0_i32_36 = arith.constant 0 : i32
    %94 = vector.broadcast %c0_i32_36 : i32 to vector<1x256xi32>
    %95 = arith.cmpi sge, %93, %94 : vector<1x256xi32>
    %c-1_i32_37 = arith.constant -1 : i32
    %96 = vector.broadcast %c-1_i32_37 : i32 to vector<1x256xi32>
    %97 = arith.addi %10, %96 : vector<1x256xi32>
    %c16_i32_38 = arith.constant 16 : i32
    %98 = vector.broadcast %c16_i32_38 : i32 to vector<1x256xi32>
    %99 = arith.cmpi slt, %97, %98 : vector<1x256xi32>
    %100 = arith.andi %95, %99 : vector<1x256xi1>
    %c0_i32_39 = arith.constant 0 : i32
    %101 = vector.broadcast %c0_i32_39 : i32 to vector<1x256xi32>
    %102 = arith.addi %10, %101 : vector<1x256xi32>
    %c0_i32_40 = arith.constant 0 : i32
    %103 = vector.broadcast %c0_i32_40 : i32 to vector<1x256xi32>
    %104 = arith.cmpi sge, %102, %103 : vector<1x256xi32>
    %c0_i32_41 = arith.constant 0 : i32
    %105 = vector.broadcast %c0_i32_41 : i32 to vector<1x256xi32>
    %106 = arith.addi %10, %105 : vector<1x256xi32>
    %c16_i32_42 = arith.constant 16 : i32
    %107 = vector.broadcast %c16_i32_42 : i32 to vector<1x256xi32>
    %108 = arith.cmpi slt, %106, %107 : vector<1x256xi32>
    %109 = arith.andi %104, %108 : vector<1x256xi1>
    %c1_i32_43 = arith.constant 1 : i32
    %110 = vector.broadcast %c1_i32_43 : i32 to vector<1x256xi32>
    %111 = arith.addi %10, %110 : vector<1x256xi32>
    %c0_i32_44 = arith.constant 0 : i32
    %112 = vector.broadcast %c0_i32_44 : i32 to vector<1x256xi32>
    %113 = arith.cmpi sge, %111, %112 : vector<1x256xi32>
    %c1_i32_45 = arith.constant 1 : i32
    %114 = vector.broadcast %c1_i32_45 : i32 to vector<1x256xi32>
    %115 = arith.addi %10, %114 : vector<1x256xi32>
    %c16_i32_46 = arith.constant 16 : i32
    %116 = vector.broadcast %c16_i32_46 : i32 to vector<1x256xi32>
    %117 = arith.cmpi slt, %115, %116 : vector<1x256xi32>
    %118 = arith.andi %113, %117 : vector<1x256xi1>
    %c2_i32_47 = arith.constant 2 : i32
    %119 = vector.broadcast %c2_i32_47 : i32 to vector<1x256xi32>
    %120 = arith.addi %10, %119 : vector<1x256xi32>
    %c0_i32_48 = arith.constant 0 : i32
    %121 = vector.broadcast %c0_i32_48 : i32 to vector<1x256xi32>
    %122 = arith.cmpi sge, %120, %121 : vector<1x256xi32>
    %c2_i32_49 = arith.constant 2 : i32
    %123 = vector.broadcast %c2_i32_49 : i32 to vector<1x256xi32>
    %124 = arith.addi %10, %123 : vector<1x256xi32>
    %c16_i32_50 = arith.constant 16 : i32
    %125 = vector.broadcast %c16_i32_50 : i32 to vector<1x256xi32>
    %126 = arith.cmpi slt, %124, %125 : vector<1x256xi32>
    %127 = arith.andi %122, %126 : vector<1x256xi1>
    %c3_i32_51 = arith.constant 3 : i32
    %128 = vector.broadcast %c3_i32_51 : i32 to vector<1x256xi32>
    %129 = arith.addi %10, %128 : vector<1x256xi32>
    %c0_i32_52 = arith.constant 0 : i32
    %130 = vector.broadcast %c0_i32_52 : i32 to vector<1x256xi32>
    %131 = arith.cmpi sge, %129, %130 : vector<1x256xi32>
    %c3_i32_53 = arith.constant 3 : i32
    %132 = vector.broadcast %c3_i32_53 : i32 to vector<1x256xi32>
    %133 = arith.addi %10, %132 : vector<1x256xi32>
    %c16_i32_54 = arith.constant 16 : i32
    %134 = vector.broadcast %c16_i32_54 : i32 to vector<1x256xi32>
    %135 = arith.cmpi slt, %133, %134 : vector<1x256xi32>
    %136 = arith.andi %131, %135 : vector<1x256xi1>
    %137 = tpu.iota {dimensions = array<i32: 0>} : vector<2x1xi32>
    %c0_i32_55 = arith.constant 0 : i32
    %138 = vector.broadcast %c0_i32_55 : i32 to vector<2x1xi32>
    %139 = arith.cmpi eq, %137, %138 : vector<2x1xi32>
    %cst_56 = arith.constant 0.000000e+00 : f32
    %140 = vector.broadcast %cst_56 : f32 to vector<2x256xf32>
    %c51_i32 = arith.constant 51 : i32
    %141 = tpu.dynamic_rotate %8 by %c51_i32 dim 1 : vector<2x256xf32>, i32 -> vector<2x256xf32>
    %142 = arith.andi %19, %82 : vector<1x256xi1>
    %cst_57 = arith.constant 0.000000e+00 : f32
    %143 = vector.shape_cast %142 : vector<1x256xi1> to vector<1x256xi1>
    %144 = vector.broadcast %143 : vector<1x256xi1> to vector<2x256xi1>
    %145 = vector.broadcast %cst_57 : f32 to vector<2x256xf32>
    %146 = arith.select %144, %141, %145 : vector<2x256xi1>, vector<2x256xf32>
    %c0_58 = arith.constant 0 : index
    %147 = memref.load %arg1[%c0_58] : memref<98xf32, #tpu.memory_space<smem>>
    %c49 = arith.constant 49 : index
    %148 = memref.load %arg1[%c49] : memref<98xf32, #tpu.memory_space<smem>>
    %149 = vector.broadcast %147 : f32 to vector<2x1xf32>
    %150 = vector.broadcast %148 : f32 to vector<2x1xf32>
    %151 = arith.select %139, %149, %150 : vector<2x1xi1>, vector<2x1xf32>
    %152 = vector.broadcast %151 : vector<2x1xf32> to vector<2x256xf32>
    %153 = arith.mulf %152, %146 : vector<2x256xf32>
    %154 = arith.addf %140, %153 : vector<2x256xf32>
    %c50_i32 = arith.constant 50 : i32
    %155 = tpu.dynamic_rotate %8 by %c50_i32 dim 1 : vector<2x256xf32>, i32 -> vector<2x256xf32>
    %156 = arith.andi %19, %91 : vector<1x256xi1>
    %cst_59 = arith.constant 0.000000e+00 : f32
    %157 = vector.shape_cast %156 : vector<1x256xi1> to vector<1x256xi1>
    %158 = vector.broadcast %157 : vector<1x256xi1> to vector<2x256xi1>
    %159 = vector.broadcast %cst_59 : f32 to vector<2x256xf32>
    %160 = arith.select %158, %155, %159 : vector<2x256xi1>, vector<2x256xf32>
    %c1_60 = arith.constant 1 : index
    %161 = memref.load %arg1[%c1_60] : memref<98xf32, #tpu.memory_space<smem>>
    %c50 = arith.constant 50 : index
    %162 = memref.load %arg1[%c50] : memref<98xf32, #tpu.memory_space<smem>>
    %163 = vector.broadcast %161 : f32 to vector<2x1xf32>
    %164 = vector.broadcast %162 : f32 to vector<2x1xf32>
    %165 = arith.select %139, %163, %164 : vector<2x1xi1>, vector<2x1xf32>
    %166 = vector.broadcast %165 : vector<2x1xf32> to vector<2x256xf32>
    %167 = arith.mulf %166, %160 : vector<2x256xf32>
    %168 = arith.addf %154, %167 : vector<2x256xf32>
    %c49_i32 = arith.constant 49 : i32
    %169 = tpu.dynamic_rotate %8 by %c49_i32 dim 1 : vector<2x256xf32>, i32 -> vector<2x256xf32>
    %170 = arith.andi %19, %100 : vector<1x256xi1>
    %cst_61 = arith.constant 0.000000e+00 : f32
    %171 = vector.shape_cast %170 : vector<1x256xi1> to vector<1x256xi1>
    %172 = vector.broadcast %171 : vector<1x256xi1> to vector<2x256xi1>
    %173 = vector.broadcast %cst_61 : f32 to vector<2x256xf32>
    %174 = arith.select %172, %169, %173 : vector<2x256xi1>, vector<2x256xf32>
    %c2 = arith.constant 2 : index
    %175 = memref.load %arg1[%c2] : memref<98xf32, #tpu.memory_space<smem>>
    %c51 = arith.constant 51 : index
    %176 = memref.load %arg1[%c51] : memref<98xf32, #tpu.memory_space<smem>>
    %177 = vector.broadcast %175 : f32 to vector<2x1xf32>
    %178 = vector.broadcast %176 : f32 to vector<2x1xf32>
    %179 = arith.select %139, %177, %178 : vector<2x1xi1>, vector<2x1xf32>
    %180 = vector.broadcast %179 : vector<2x1xf32> to vector<2x256xf32>
    %181 = arith.mulf %180, %174 : vector<2x256xf32>
    %182 = arith.addf %168, %181 : vector<2x256xf32>
    %c48_i32 = arith.constant 48 : i32
    %183 = tpu.dynamic_rotate %8 by %c48_i32 dim 1 : vector<2x256xf32>, i32 -> vector<2x256xf32>
    %184 = arith.andi %19, %109 : vector<1x256xi1>
    %cst_62 = arith.constant 0.000000e+00 : f32
    %185 = vector.shape_cast %184 : vector<1x256xi1> to vector<1x256xi1>
    %186 = vector.broadcast %185 : vector<1x256xi1> to vector<2x256xi1>
    %187 = vector.broadcast %cst_62 : f32 to vector<2x256xf32>
    %188 = arith.select %186, %183, %187 : vector<2x256xi1>, vector<2x256xf32>
    %c3 = arith.constant 3 : index
    %189 = memref.load %arg1[%c3] : memref<98xf32, #tpu.memory_space<smem>>
    %c52 = arith.constant 52 : index
    %190 = memref.load %arg1[%c52] : memref<98xf32, #tpu.memory_space<smem>>
    %191 = vector.broadcast %189 : f32 to vector<2x1xf32>
    %192 = vector.broadcast %190 : f32 to vector<2x1xf32>
    %193 = arith.select %139, %191, %192 : vector<2x1xi1>, vector<2x1xf32>
    %194 = vector.broadcast %193 : vector<2x1xf32> to vector<2x256xf32>
    %195 = arith.mulf %194, %188 : vector<2x256xf32>
    %196 = arith.addf %182, %195 : vector<2x256xf32>
    %c47_i32 = arith.constant 47 : i32
    %197 = tpu.dynamic_rotate %8 by %c47_i32 dim 1 : vector<2x256xf32>, i32 -> vector<2x256xf32>
    %198 = arith.andi %19, %118 : vector<1x256xi1>
    %cst_63 = arith.constant 0.000000e+00 : f32
    %199 = vector.shape_cast %198 : vector<1x256xi1> to vector<1x256xi1>
    %200 = vector.broadcast %199 : vector<1x256xi1> to vector<2x256xi1>
    %201 = vector.broadcast %cst_63 : f32 to vector<2x256xf32>
    %202 = arith.select %200, %197, %201 : vector<2x256xi1>, vector<2x256xf32>
    %c4 = arith.constant 4 : index
    %203 = memref.load %arg1[%c4] : memref<98xf32, #tpu.memory_space<smem>>
    %c53 = arith.constant 53 : index
    %204 = memref.load %arg1[%c53] : memref<98xf32, #tpu.memory_space<smem>>
    %205 = vector.broadcast %203 : f32 to vector<2x1xf32>
    %206 = vector.broadcast %204 : f32 to vector<2x1xf32>
    %207 = arith.select %139, %205, %206 : vector<2x1xi1>, vector<2x1xf32>
    %208 = vector.broadcast %207 : vector<2x1xf32> to vector<2x256xf32>
    %209 = arith.mulf %208, %202 : vector<2x256xf32>
    %210 = arith.addf %196, %209 : vector<2x256xf32>
    %c46_i32 = arith.constant 46 : i32
    %211 = tpu.dynamic_rotate %8 by %c46_i32 dim 1 : vector<2x256xf32>, i32 -> vector<2x256xf32>
    %212 = arith.andi %19, %127 : vector<1x256xi1>
    %cst_64 = arith.constant 0.000000e+00 : f32
    %213 = vector.shape_cast %212 : vector<1x256xi1> to vector<1x256xi1>
    %214 = vector.broadcast %213 : vector<1x256xi1> to vector<2x256xi1>
    %215 = vector.broadcast %cst_64 : f32 to vector<2x256xf32>
    %216 = arith.select %214, %211, %215 : vector<2x256xi1>, vector<2x256xf32>
    %c5 = arith.constant 5 : index
    %217 = memref.load %arg1[%c5] : memref<98xf32, #tpu.memory_space<smem>>
    %c54 = arith.constant 54 : index
    %218 = memref.load %arg1[%c54] : memref<98xf32, #tpu.memory_space<smem>>
    %219 = vector.broadcast %217 : f32 to vector<2x1xf32>
    %220 = vector.broadcast %218 : f32 to vector<2x1xf32>
    %221 = arith.select %139, %219, %220 : vector<2x1xi1>, vector<2x1xf32>
    %222 = vector.broadcast %221 : vector<2x1xf32> to vector<2x256xf32>
    %223 = arith.mulf %222, %216 : vector<2x256xf32>
    %224 = arith.addf %210, %223 : vector<2x256xf32>
    %c45_i32 = arith.constant 45 : i32
    %225 = tpu.dynamic_rotate %8 by %c45_i32 dim 1 : vector<2x256xf32>, i32 -> vector<2x256xf32>
    %226 = arith.andi %19, %136 : vector<1x256xi1>
    %cst_65 = arith.constant 0.000000e+00 : f32
    %227 = vector.shape_cast %226 : vector<1x256xi1> to vector<1x256xi1>
    %228 = vector.broadcast %227 : vector<1x256xi1> to vector<2x256xi1>
    %229 = vector.broadcast %cst_65 : f32 to vector<2x256xf32>
    %230 = arith.select %228, %225, %229 : vector<2x256xi1>, vector<2x256xf32>
    %c6 = arith.constant 6 : index
    %231 = memref.load %arg1[%c6] : memref<98xf32, #tpu.memory_space<smem>>
    %c55 = arith.constant 55 : index
    %232 = memref.load %arg1[%c55] : memref<98xf32, #tpu.memory_space<smem>>
    %233 = vector.broadcast %231 : f32 to vector<2x1xf32>
    %234 = vector.broadcast %232 : f32 to vector<2x1xf32>
    %235 = arith.select %139, %233, %234 : vector<2x1xi1>, vector<2x1xf32>
    %236 = vector.broadcast %235 : vector<2x1xf32> to vector<2x256xf32>
    %237 = arith.mulf %236, %230 : vector<2x256xf32>
    %238 = arith.addf %224, %237 : vector<2x256xf32>
    %c35_i32 = arith.constant 35 : i32
    %239 = tpu.dynamic_rotate %8 by %c35_i32 dim 1 : vector<2x256xf32>, i32 -> vector<2x256xf32>
    %240 = arith.andi %28, %82 : vector<1x256xi1>
    %cst_66 = arith.constant 0.000000e+00 : f32
    %241 = vector.shape_cast %240 : vector<1x256xi1> to vector<1x256xi1>
    %242 = vector.broadcast %241 : vector<1x256xi1> to vector<2x256xi1>
    %243 = vector.broadcast %cst_66 : f32 to vector<2x256xf32>
    %244 = arith.select %242, %239, %243 : vector<2x256xi1>, vector<2x256xf32>
    %c7 = arith.constant 7 : index
    %245 = memref.load %arg1[%c7] : memref<98xf32, #tpu.memory_space<smem>>
    %c56 = arith.constant 56 : index
    %246 = memref.load %arg1[%c56] : memref<98xf32, #tpu.memory_space<smem>>
    %247 = vector.broadcast %245 : f32 to vector<2x1xf32>
    %248 = vector.broadcast %246 : f32 to vector<2x1xf32>
    %249 = arith.select %139, %247, %248 : vector<2x1xi1>, vector<2x1xf32>
    %250 = vector.broadcast %249 : vector<2x1xf32> to vector<2x256xf32>
    %251 = arith.mulf %250, %244 : vector<2x256xf32>
    %252 = arith.addf %238, %251 : vector<2x256xf32>
    %c34_i32 = arith.constant 34 : i32
    %253 = tpu.dynamic_rotate %8 by %c34_i32 dim 1 : vector<2x256xf32>, i32 -> vector<2x256xf32>
    %254 = arith.andi %28, %91 : vector<1x256xi1>
    %cst_67 = arith.constant 0.000000e+00 : f32
    %255 = vector.shape_cast %254 : vector<1x256xi1> to vector<1x256xi1>
    %256 = vector.broadcast %255 : vector<1x256xi1> to vector<2x256xi1>
    %257 = vector.broadcast %cst_67 : f32 to vector<2x256xf32>
    %258 = arith.select %256, %253, %257 : vector<2x256xi1>, vector<2x256xf32>
    %c8 = arith.constant 8 : index
    %259 = memref.load %arg1[%c8] : memref<98xf32, #tpu.memory_space<smem>>
    %c57 = arith.constant 57 : index
    %260 = memref.load %arg1[%c57] : memref<98xf32, #tpu.memory_space<smem>>
    %261 = vector.broadcast %259 : f32 to vector<2x1xf32>
    %262 = vector.broadcast %260 : f32 to vector<2x1xf32>
    %263 = arith.select %139, %261, %262 : vector<2x1xi1>, vector<2x1xf32>
    %264 = vector.broadcast %263 : vector<2x1xf32> to vector<2x256xf32>
    %265 = arith.mulf %264, %258 : vector<2x256xf32>
    %266 = arith.addf %252, %265 : vector<2x256xf32>
    %c33_i32 = arith.constant 33 : i32
    %267 = tpu.dynamic_rotate %8 by %c33_i32 dim 1 : vector<2x256xf32>, i32 -> vector<2x256xf32>
    %268 = arith.andi %28, %100 : vector<1x256xi1>
    %cst_68 = arith.constant 0.000000e+00 : f32
    %269 = vector.shape_cast %268 : vector<1x256xi1> to vector<1x256xi1>
    %270 = vector.broadcast %269 : vector<1x256xi1> to vector<2x256xi1>
    %271 = vector.broadcast %cst_68 : f32 to vector<2x256xf32>
    %272 = arith.select %270, %267, %271 : vector<2x256xi1>, vector<2x256xf32>
    %c9 = arith.constant 9 : index
    %273 = memref.load %arg1[%c9] : memref<98xf32, #tpu.memory_space<smem>>
    %c58 = arith.constant 58 : index
    %274 = memref.load %arg1[%c58] : memref<98xf32, #tpu.memory_space<smem>>
    %275 = vector.broadcast %273 : f32 to vector<2x1xf32>
    %276 = vector.broadcast %274 : f32 to vector<2x1xf32>
    %277 = arith.select %139, %275, %276 : vector<2x1xi1>, vector<2x1xf32>
    %278 = vector.broadcast %277 : vector<2x1xf32> to vector<2x256xf32>
    %279 = arith.mulf %278, %272 : vector<2x256xf32>
    %280 = arith.addf %266, %279 : vector<2x256xf32>
    %c32_i32 = arith.constant 32 : i32
    %281 = tpu.dynamic_rotate %8 by %c32_i32 dim 1 : vector<2x256xf32>, i32 -> vector<2x256xf32>
    %282 = arith.andi %28, %109 : vector<1x256xi1>
    %cst_69 = arith.constant 0.000000e+00 : f32
    %283 = vector.shape_cast %282 : vector<1x256xi1> to vector<1x256xi1>
    %284 = vector.broadcast %283 : vector<1x256xi1> to vector<2x256xi1>
    %285 = vector.broadcast %cst_69 : f32 to vector<2x256xf32>
    %286 = arith.select %284, %281, %285 : vector<2x256xi1>, vector<2x256xf32>
    %c10 = arith.constant 10 : index
    %287 = memref.load %arg1[%c10] : memref<98xf32, #tpu.memory_space<smem>>
    %c59 = arith.constant 59 : index
    %288 = memref.load %arg1[%c59] : memref<98xf32, #tpu.memory_space<smem>>
    %289 = vector.broadcast %287 : f32 to vector<2x1xf32>
    %290 = vector.broadcast %288 : f32 to vector<2x1xf32>
    %291 = arith.select %139, %289, %290 : vector<2x1xi1>, vector<2x1xf32>
    %292 = vector.broadcast %291 : vector<2x1xf32> to vector<2x256xf32>
    %293 = arith.mulf %292, %286 : vector<2x256xf32>
    %294 = arith.addf %280, %293 : vector<2x256xf32>
    %c31_i32 = arith.constant 31 : i32
    %295 = tpu.dynamic_rotate %8 by %c31_i32 dim 1 : vector<2x256xf32>, i32 -> vector<2x256xf32>
    %296 = arith.andi %28, %118 : vector<1x256xi1>
    %cst_70 = arith.constant 0.000000e+00 : f32
    %297 = vector.shape_cast %296 : vector<1x256xi1> to vector<1x256xi1>
    %298 = vector.broadcast %297 : vector<1x256xi1> to vector<2x256xi1>
    %299 = vector.broadcast %cst_70 : f32 to vector<2x256xf32>
    %300 = arith.select %298, %295, %299 : vector<2x256xi1>, vector<2x256xf32>
    %c11 = arith.constant 11 : index
    %301 = memref.load %arg1[%c11] : memref<98xf32, #tpu.memory_space<smem>>
    %c60 = arith.constant 60 : index
    %302 = memref.load %arg1[%c60] : memref<98xf32, #tpu.memory_space<smem>>
    %303 = vector.broadcast %301 : f32 to vector<2x1xf32>
    %304 = vector.broadcast %302 : f32 to vector<2x1xf32>
    %305 = arith.select %139, %303, %304 : vector<2x1xi1>, vector<2x1xf32>
    %306 = vector.broadcast %305 : vector<2x1xf32> to vector<2x256xf32>
    %307 = arith.mulf %306, %300 : vector<2x256xf32>
    %308 = arith.addf %294, %307 : vector<2x256xf32>
    %c30_i32 = arith.constant 30 : i32
    %309 = tpu.dynamic_rotate %8 by %c30_i32 dim 1 : vector<2x256xf32>, i32 -> vector<2x256xf32>
    %310 = arith.andi %28, %127 : vector<1x256xi1>
    %cst_71 = arith.constant 0.000000e+00 : f32
    %311 = vector.shape_cast %310 : vector<1x256xi1> to vector<1x256xi1>
    %312 = vector.broadcast %311 : vector<1x256xi1> to vector<2x256xi1>
    %313 = vector.broadcast %cst_71 : f32 to vector<2x256xf32>
    %314 = arith.select %312, %309, %313 : vector<2x256xi1>, vector<2x256xf32>
    %c12 = arith.constant 12 : index
    %315 = memref.load %arg1[%c12] : memref<98xf32, #tpu.memory_space<smem>>
    %c61 = arith.constant 61 : index
    %316 = memref.load %arg1[%c61] : memref<98xf32, #tpu.memory_space<smem>>
    %317 = vector.broadcast %315 : f32 to vector<2x1xf32>
    %318 = vector.broadcast %316 : f32 to vector<2x1xf32>
    %319 = arith.select %139, %317, %318 : vector<2x1xi1>, vector<2x1xf32>
    %320 = vector.broadcast %319 : vector<2x1xf32> to vector<2x256xf32>
    %321 = arith.mulf %320, %314 : vector<2x256xf32>
    %322 = arith.addf %308, %321 : vector<2x256xf32>
    %c29_i32 = arith.constant 29 : i32
    %323 = tpu.dynamic_rotate %8 by %c29_i32 dim 1 : vector<2x256xf32>, i32 -> vector<2x256xf32>
    %324 = arith.andi %28, %136 : vector<1x256xi1>
    %cst_72 = arith.constant 0.000000e+00 : f32
    %325 = vector.shape_cast %324 : vector<1x256xi1> to vector<1x256xi1>
    %326 = vector.broadcast %325 : vector<1x256xi1> to vector<2x256xi1>
    %327 = vector.broadcast %cst_72 : f32 to vector<2x256xf32>
    %328 = arith.select %326, %323, %327 : vector<2x256xi1>, vector<2x256xf32>
    %c13 = arith.constant 13 : index
    %329 = memref.load %arg1[%c13] : memref<98xf32, #tpu.memory_space<smem>>
    %c62 = arith.constant 62 : index
    %330 = memref.load %arg1[%c62] : memref<98xf32, #tpu.memory_space<smem>>
    %331 = vector.broadcast %329 : f32 to vector<2x1xf32>
    %332 = vector.broadcast %330 : f32 to vector<2x1xf32>
    %333 = arith.select %139, %331, %332 : vector<2x1xi1>, vector<2x1xf32>
    %334 = vector.broadcast %333 : vector<2x1xf32> to vector<2x256xf32>
    %335 = arith.mulf %334, %328 : vector<2x256xf32>
    %336 = arith.addf %322, %335 : vector<2x256xf32>
    %c19_i32 = arith.constant 19 : i32
    %337 = tpu.dynamic_rotate %8 by %c19_i32 dim 1 : vector<2x256xf32>, i32 -> vector<2x256xf32>
    %338 = arith.andi %37, %82 : vector<1x256xi1>
    %cst_73 = arith.constant 0.000000e+00 : f32
    %339 = vector.shape_cast %338 : vector<1x256xi1> to vector<1x256xi1>
    %340 = vector.broadcast %339 : vector<1x256xi1> to vector<2x256xi1>
    %341 = vector.broadcast %cst_73 : f32 to vector<2x256xf32>
    %342 = arith.select %340, %337, %341 : vector<2x256xi1>, vector<2x256xf32>
    %c14 = arith.constant 14 : index
    %343 = memref.load %arg1[%c14] : memref<98xf32, #tpu.memory_space<smem>>
    %c63 = arith.constant 63 : index
    %344 = memref.load %arg1[%c63] : memref<98xf32, #tpu.memory_space<smem>>
    %345 = vector.broadcast %343 : f32 to vector<2x1xf32>
    %346 = vector.broadcast %344 : f32 to vector<2x1xf32>
    %347 = arith.select %139, %345, %346 : vector<2x1xi1>, vector<2x1xf32>
    %348 = vector.broadcast %347 : vector<2x1xf32> to vector<2x256xf32>
    %349 = arith.mulf %348, %342 : vector<2x256xf32>
    %350 = arith.addf %336, %349 : vector<2x256xf32>
    %c18_i32 = arith.constant 18 : i32
    %351 = tpu.dynamic_rotate %8 by %c18_i32 dim 1 : vector<2x256xf32>, i32 -> vector<2x256xf32>
    %352 = arith.andi %37, %91 : vector<1x256xi1>
    %cst_74 = arith.constant 0.000000e+00 : f32
    %353 = vector.shape_cast %352 : vector<1x256xi1> to vector<1x256xi1>
    %354 = vector.broadcast %353 : vector<1x256xi1> to vector<2x256xi1>
    %355 = vector.broadcast %cst_74 : f32 to vector<2x256xf32>
    %356 = arith.select %354, %351, %355 : vector<2x256xi1>, vector<2x256xf32>
    %c15 = arith.constant 15 : index
    %357 = memref.load %arg1[%c15] : memref<98xf32, #tpu.memory_space<smem>>
    %c64 = arith.constant 64 : index
    %358 = memref.load %arg1[%c64] : memref<98xf32, #tpu.memory_space<smem>>
    %359 = vector.broadcast %357 : f32 to vector<2x1xf32>
    %360 = vector.broadcast %358 : f32 to vector<2x1xf32>
    %361 = arith.select %139, %359, %360 : vector<2x1xi1>, vector<2x1xf32>
    %362 = vector.broadcast %361 : vector<2x1xf32> to vector<2x256xf32>
    %363 = arith.mulf %362, %356 : vector<2x256xf32>
    %364 = arith.addf %350, %363 : vector<2x256xf32>
    %c17_i32 = arith.constant 17 : i32
    %365 = tpu.dynamic_rotate %8 by %c17_i32 dim 1 : vector<2x256xf32>, i32 -> vector<2x256xf32>
    %366 = arith.andi %37, %100 : vector<1x256xi1>
    %cst_75 = arith.constant 0.000000e+00 : f32
    %367 = vector.shape_cast %366 : vector<1x256xi1> to vector<1x256xi1>
    %368 = vector.broadcast %367 : vector<1x256xi1> to vector<2x256xi1>
    %369 = vector.broadcast %cst_75 : f32 to vector<2x256xf32>
    %370 = arith.select %368, %365, %369 : vector<2x256xi1>, vector<2x256xf32>
    %c16 = arith.constant 16 : index
    %371 = memref.load %arg1[%c16] : memref<98xf32, #tpu.memory_space<smem>>
    %c65 = arith.constant 65 : index
    %372 = memref.load %arg1[%c65] : memref<98xf32, #tpu.memory_space<smem>>
    %373 = vector.broadcast %371 : f32 to vector<2x1xf32>
    %374 = vector.broadcast %372 : f32 to vector<2x1xf32>
    %375 = arith.select %139, %373, %374 : vector<2x1xi1>, vector<2x1xf32>
    %376 = vector.broadcast %375 : vector<2x1xf32> to vector<2x256xf32>
    %377 = arith.mulf %376, %370 : vector<2x256xf32>
    %378 = arith.addf %364, %377 : vector<2x256xf32>
    %c16_i32_76 = arith.constant 16 : i32
    %379 = tpu.dynamic_rotate %8 by %c16_i32_76 dim 1 : vector<2x256xf32>, i32 -> vector<2x256xf32>
    %380 = arith.andi %37, %109 : vector<1x256xi1>
    %cst_77 = arith.constant 0.000000e+00 : f32
    %381 = vector.shape_cast %380 : vector<1x256xi1> to vector<1x256xi1>
    %382 = vector.broadcast %381 : vector<1x256xi1> to vector<2x256xi1>
    %383 = vector.broadcast %cst_77 : f32 to vector<2x256xf32>
    %384 = arith.select %382, %379, %383 : vector<2x256xi1>, vector<2x256xf32>
    %c17 = arith.constant 17 : index
    %385 = memref.load %arg1[%c17] : memref<98xf32, #tpu.memory_space<smem>>
    %c66 = arith.constant 66 : index
    %386 = memref.load %arg1[%c66] : memref<98xf32, #tpu.memory_space<smem>>
    %387 = vector.broadcast %385 : f32 to vector<2x1xf32>
    %388 = vector.broadcast %386 : f32 to vector<2x1xf32>
    %389 = arith.select %139, %387, %388 : vector<2x1xi1>, vector<2x1xf32>
    %390 = vector.broadcast %389 : vector<2x1xf32> to vector<2x256xf32>
    %391 = arith.mulf %390, %384 : vector<2x256xf32>
    %392 = arith.addf %378, %391 : vector<2x256xf32>
    %c15_i32 = arith.constant 15 : i32
    %393 = tpu.dynamic_rotate %8 by %c15_i32 dim 1 : vector<2x256xf32>, i32 -> vector<2x256xf32>
    %394 = arith.andi %37, %118 : vector<1x256xi1>
    %cst_78 = arith.constant 0.000000e+00 : f32
    %395 = vector.shape_cast %394 : vector<1x256xi1> to vector<1x256xi1>
    %396 = vector.broadcast %395 : vector<1x256xi1> to vector<2x256xi1>
    %397 = vector.broadcast %cst_78 : f32 to vector<2x256xf32>
    %398 = arith.select %396, %393, %397 : vector<2x256xi1>, vector<2x256xf32>
    %c18 = arith.constant 18 : index
    %399 = memref.load %arg1[%c18] : memref<98xf32, #tpu.memory_space<smem>>
    %c67 = arith.constant 67 : index
    %400 = memref.load %arg1[%c67] : memref<98xf32, #tpu.memory_space<smem>>
    %401 = vector.broadcast %399 : f32 to vector<2x1xf32>
    %402 = vector.broadcast %400 : f32 to vector<2x1xf32>
    %403 = arith.select %139, %401, %402 : vector<2x1xi1>, vector<2x1xf32>
    %404 = vector.broadcast %403 : vector<2x1xf32> to vector<2x256xf32>
    %405 = arith.mulf %404, %398 : vector<2x256xf32>
    %406 = arith.addf %392, %405 : vector<2x256xf32>
    %c14_i32 = arith.constant 14 : i32
    %407 = tpu.dynamic_rotate %8 by %c14_i32 dim 1 : vector<2x256xf32>, i32 -> vector<2x256xf32>
    %408 = arith.andi %37, %127 : vector<1x256xi1>
    %cst_79 = arith.constant 0.000000e+00 : f32
    %409 = vector.shape_cast %408 : vector<1x256xi1> to vector<1x256xi1>
    %410 = vector.broadcast %409 : vector<1x256xi1> to vector<2x256xi1>
    %411 = vector.broadcast %cst_79 : f32 to vector<2x256xf32>
    %412 = arith.select %410, %407, %411 : vector<2x256xi1>, vector<2x256xf32>
    %c19 = arith.constant 19 : index
    %413 = memref.load %arg1[%c19] : memref<98xf32, #tpu.memory_space<smem>>
    %c68 = arith.constant 68 : index
    %414 = memref.load %arg1[%c68] : memref<98xf32, #tpu.memory_space<smem>>
    %415 = vector.broadcast %413 : f32 to vector<2x1xf32>
    %416 = vector.broadcast %414 : f32 to vector<2x1xf32>
    %417 = arith.select %139, %415, %416 : vector<2x1xi1>, vector<2x1xf32>
    %418 = vector.broadcast %417 : vector<2x1xf32> to vector<2x256xf32>
    %419 = arith.mulf %418, %412 : vector<2x256xf32>
    %420 = arith.addf %406, %419 : vector<2x256xf32>
    %c13_i32 = arith.constant 13 : i32
    %421 = tpu.dynamic_rotate %8 by %c13_i32 dim 1 : vector<2x256xf32>, i32 -> vector<2x256xf32>
    %422 = arith.andi %37, %136 : vector<1x256xi1>
    %cst_80 = arith.constant 0.000000e+00 : f32
    %423 = vector.shape_cast %422 : vector<1x256xi1> to vector<1x256xi1>
    %424 = vector.broadcast %423 : vector<1x256xi1> to vector<2x256xi1>
    %425 = vector.broadcast %cst_80 : f32 to vector<2x256xf32>
    %426 = arith.select %424, %421, %425 : vector<2x256xi1>, vector<2x256xf32>
    %c20 = arith.constant 20 : index
    %427 = memref.load %arg1[%c20] : memref<98xf32, #tpu.memory_space<smem>>
    %c69 = arith.constant 69 : index
    %428 = memref.load %arg1[%c69] : memref<98xf32, #tpu.memory_space<smem>>
    %429 = vector.broadcast %427 : f32 to vector<2x1xf32>
    %430 = vector.broadcast %428 : f32 to vector<2x1xf32>
    %431 = arith.select %139, %429, %430 : vector<2x1xi1>, vector<2x1xf32>
    %432 = vector.broadcast %431 : vector<2x1xf32> to vector<2x256xf32>
    %433 = arith.mulf %432, %426 : vector<2x256xf32>
    %434 = arith.addf %420, %433 : vector<2x256xf32>
    %c3_i32_81 = arith.constant 3 : i32
    %435 = tpu.dynamic_rotate %8 by %c3_i32_81 dim 1 : vector<2x256xf32>, i32 -> vector<2x256xf32>
    %436 = arith.andi %46, %82 : vector<1x256xi1>
    %cst_82 = arith.constant 0.000000e+00 : f32
    %437 = vector.shape_cast %436 : vector<1x256xi1> to vector<1x256xi1>
    %438 = vector.broadcast %437 : vector<1x256xi1> to vector<2x256xi1>
    %439 = vector.broadcast %cst_82 : f32 to vector<2x256xf32>
    %440 = arith.select %438, %435, %439 : vector<2x256xi1>, vector<2x256xf32>
    %c21 = arith.constant 21 : index
    %441 = memref.load %arg1[%c21] : memref<98xf32, #tpu.memory_space<smem>>
    %c70 = arith.constant 70 : index
    %442 = memref.load %arg1[%c70] : memref<98xf32, #tpu.memory_space<smem>>
    %443 = vector.broadcast %441 : f32 to vector<2x1xf32>
    %444 = vector.broadcast %442 : f32 to vector<2x1xf32>
    %445 = arith.select %139, %443, %444 : vector<2x1xi1>, vector<2x1xf32>
    %446 = vector.broadcast %445 : vector<2x1xf32> to vector<2x256xf32>
    %447 = arith.mulf %446, %440 : vector<2x256xf32>
    %448 = arith.addf %434, %447 : vector<2x256xf32>
    %c2_i32_83 = arith.constant 2 : i32
    %449 = tpu.dynamic_rotate %8 by %c2_i32_83 dim 1 : vector<2x256xf32>, i32 -> vector<2x256xf32>
    %450 = arith.andi %46, %91 : vector<1x256xi1>
    %cst_84 = arith.constant 0.000000e+00 : f32
    %451 = vector.shape_cast %450 : vector<1x256xi1> to vector<1x256xi1>
    %452 = vector.broadcast %451 : vector<1x256xi1> to vector<2x256xi1>
    %453 = vector.broadcast %cst_84 : f32 to vector<2x256xf32>
    %454 = arith.select %452, %449, %453 : vector<2x256xi1>, vector<2x256xf32>
    %c22 = arith.constant 22 : index
    %455 = memref.load %arg1[%c22] : memref<98xf32, #tpu.memory_space<smem>>
    %c71 = arith.constant 71 : index
    %456 = memref.load %arg1[%c71] : memref<98xf32, #tpu.memory_space<smem>>
    %457 = vector.broadcast %455 : f32 to vector<2x1xf32>
    %458 = vector.broadcast %456 : f32 to vector<2x1xf32>
    %459 = arith.select %139, %457, %458 : vector<2x1xi1>, vector<2x1xf32>
    %460 = vector.broadcast %459 : vector<2x1xf32> to vector<2x256xf32>
    %461 = arith.mulf %460, %454 : vector<2x256xf32>
    %462 = arith.addf %448, %461 : vector<2x256xf32>
    %c1_i32_85 = arith.constant 1 : i32
    %463 = tpu.dynamic_rotate %8 by %c1_i32_85 dim 1 : vector<2x256xf32>, i32 -> vector<2x256xf32>
    %464 = arith.andi %46, %100 : vector<1x256xi1>
    %cst_86 = arith.constant 0.000000e+00 : f32
    %465 = vector.shape_cast %464 : vector<1x256xi1> to vector<1x256xi1>
    %466 = vector.broadcast %465 : vector<1x256xi1> to vector<2x256xi1>
    %467 = vector.broadcast %cst_86 : f32 to vector<2x256xf32>
    %468 = arith.select %466, %463, %467 : vector<2x256xi1>, vector<2x256xf32>
    %c23 = arith.constant 23 : index
    %469 = memref.load %arg1[%c23] : memref<98xf32, #tpu.memory_space<smem>>
    %c72 = arith.constant 72 : index
    %470 = memref.load %arg1[%c72] : memref<98xf32, #tpu.memory_space<smem>>
    %471 = vector.broadcast %469 : f32 to vector<2x1xf32>
    %472 = vector.broadcast %470 : f32 to vector<2x1xf32>
    %473 = arith.select %139, %471, %472 : vector<2x1xi1>, vector<2x1xf32>
    %474 = vector.broadcast %473 : vector<2x1xf32> to vector<2x256xf32>
    %475 = arith.mulf %474, %468 : vector<2x256xf32>
    %476 = arith.addf %462, %475 : vector<2x256xf32>
    %477 = arith.andi %46, %109 : vector<1x256xi1>
    %cst_87 = arith.constant 0.000000e+00 : f32
    %478 = vector.shape_cast %477 : vector<1x256xi1> to vector<1x256xi1>
    %479 = vector.broadcast %478 : vector<1x256xi1> to vector<2x256xi1>
    %480 = vector.broadcast %cst_87 : f32 to vector<2x256xf32>
    %481 = arith.select %479, %8, %480 : vector<2x256xi1>, vector<2x256xf32>
    %c24 = arith.constant 24 : index
    %482 = memref.load %arg1[%c24] : memref<98xf32, #tpu.memory_space<smem>>
    %c73 = arith.constant 73 : index
    %483 = memref.load %arg1[%c73] : memref<98xf32, #tpu.memory_space<smem>>
    %484 = vector.broadcast %482 : f32 to vector<2x1xf32>
    %485 = vector.broadcast %483 : f32 to vector<2x1xf32>
    %486 = arith.select %139, %484, %485 : vector<2x1xi1>, vector<2x1xf32>
    %487 = vector.broadcast %486 : vector<2x1xf32> to vector<2x256xf32>
    %488 = arith.mulf %487, %481 : vector<2x256xf32>
    %489 = arith.addf %476, %488 : vector<2x256xf32>
    %c255_i32 = arith.constant 255 : i32
    %490 = tpu.dynamic_rotate %8 by %c255_i32 dim 1 : vector<2x256xf32>, i32 -> vector<2x256xf32>
    %491 = arith.andi %46, %118 : vector<1x256xi1>
    %cst_88 = arith.constant 0.000000e+00 : f32
    %492 = vector.shape_cast %491 : vector<1x256xi1> to vector<1x256xi1>
    %493 = vector.broadcast %492 : vector<1x256xi1> to vector<2x256xi1>
    %494 = vector.broadcast %cst_88 : f32 to vector<2x256xf32>
    %495 = arith.select %493, %490, %494 : vector<2x256xi1>, vector<2x256xf32>
    %c25 = arith.constant 25 : index
    %496 = memref.load %arg1[%c25] : memref<98xf32, #tpu.memory_space<smem>>
    %c74 = arith.constant 74 : index
    %497 = memref.load %arg1[%c74] : memref<98xf32, #tpu.memory_space<smem>>
    %498 = vector.broadcast %496 : f32 to vector<2x1xf32>
    %499 = vector.broadcast %497 : f32 to vector<2x1xf32>
    %500 = arith.select %139, %498, %499 : vector<2x1xi1>, vector<2x1xf32>
    %501 = vector.broadcast %500 : vector<2x1xf32> to vector<2x256xf32>
    %502 = arith.mulf %501, %495 : vector<2x256xf32>
    %503 = arith.addf %489, %502 : vector<2x256xf32>
    %c254_i32 = arith.constant 254 : i32
    %504 = tpu.dynamic_rotate %8 by %c254_i32 dim 1 : vector<2x256xf32>, i32 -> vector<2x256xf32>
    %505 = arith.andi %46, %127 : vector<1x256xi1>
    %cst_89 = arith.constant 0.000000e+00 : f32
    %506 = vector.shape_cast %505 : vector<1x256xi1> to vector<1x256xi1>
    %507 = vector.broadcast %506 : vector<1x256xi1> to vector<2x256xi1>
    %508 = vector.broadcast %cst_89 : f32 to vector<2x256xf32>
    %509 = arith.select %507, %504, %508 : vector<2x256xi1>, vector<2x256xf32>
    %c26 = arith.constant 26 : index
    %510 = memref.load %arg1[%c26] : memref<98xf32, #tpu.memory_space<smem>>
    %c75 = arith.constant 75 : index
    %511 = memref.load %arg1[%c75] : memref<98xf32, #tpu.memory_space<smem>>
    %512 = vector.broadcast %510 : f32 to vector<2x1xf32>
    %513 = vector.broadcast %511 : f32 to vector<2x1xf32>
    %514 = arith.select %139, %512, %513 : vector<2x1xi1>, vector<2x1xf32>
    %515 = vector.broadcast %514 : vector<2x1xf32> to vector<2x256xf32>
    %516 = arith.mulf %515, %509 : vector<2x256xf32>
    %517 = arith.addf %503, %516 : vector<2x256xf32>
    %c253_i32 = arith.constant 253 : i32
    %518 = tpu.dynamic_rotate %8 by %c253_i32 dim 1 : vector<2x256xf32>, i32 -> vector<2x256xf32>
    %519 = arith.andi %46, %136 : vector<1x256xi1>
    %cst_90 = arith.constant 0.000000e+00 : f32
    %520 = vector.shape_cast %519 : vector<1x256xi1> to vector<1x256xi1>
    %521 = vector.broadcast %520 : vector<1x256xi1> to vector<2x256xi1>
    %522 = vector.broadcast %cst_90 : f32 to vector<2x256xf32>
    %523 = arith.select %521, %518, %522 : vector<2x256xi1>, vector<2x256xf32>
    %c27 = arith.constant 27 : index
    %524 = memref.load %arg1[%c27] : memref<98xf32, #tpu.memory_space<smem>>
    %c76 = arith.constant 76 : index
    %525 = memref.load %arg1[%c76] : memref<98xf32, #tpu.memory_space<smem>>
    %526 = vector.broadcast %524 : f32 to vector<2x1xf32>
    %527 = vector.broadcast %525 : f32 to vector<2x1xf32>
    %528 = arith.select %139, %526, %527 : vector<2x1xi1>, vector<2x1xf32>
    %529 = vector.broadcast %528 : vector<2x1xf32> to vector<2x256xf32>
    %530 = arith.mulf %529, %523 : vector<2x256xf32>
    %531 = arith.addf %517, %530 : vector<2x256xf32>
    %c243_i32 = arith.constant 243 : i32
    %532 = tpu.dynamic_rotate %8 by %c243_i32 dim 1 : vector<2x256xf32>, i32 -> vector<2x256xf32>
    %533 = arith.andi %55, %82 : vector<1x256xi1>
    %cst_91 = arith.constant 0.000000e+00 : f32
    %534 = vector.shape_cast %533 : vector<1x256xi1> to vector<1x256xi1>
    %535 = vector.broadcast %534 : vector<1x256xi1> to vector<2x256xi1>
    %536 = vector.broadcast %cst_91 : f32 to vector<2x256xf32>
    %537 = arith.select %535, %532, %536 : vector<2x256xi1>, vector<2x256xf32>
    %c28 = arith.constant 28 : index
    %538 = memref.load %arg1[%c28] : memref<98xf32, #tpu.memory_space<smem>>
    %c77 = arith.constant 77 : index
    %539 = memref.load %arg1[%c77] : memref<98xf32, #tpu.memory_space<smem>>
    %540 = vector.broadcast %538 : f32 to vector<2x1xf32>
    %541 = vector.broadcast %539 : f32 to vector<2x1xf32>
    %542 = arith.select %139, %540, %541 : vector<2x1xi1>, vector<2x1xf32>
    %543 = vector.broadcast %542 : vector<2x1xf32> to vector<2x256xf32>
    %544 = arith.mulf %543, %537 : vector<2x256xf32>
    %545 = arith.addf %531, %544 : vector<2x256xf32>
    %c242_i32 = arith.constant 242 : i32
    %546 = tpu.dynamic_rotate %8 by %c242_i32 dim 1 : vector<2x256xf32>, i32 -> vector<2x256xf32>
    %547 = arith.andi %55, %91 : vector<1x256xi1>
    %cst_92 = arith.constant 0.000000e+00 : f32
    %548 = vector.shape_cast %547 : vector<1x256xi1> to vector<1x256xi1>
    %549 = vector.broadcast %548 : vector<1x256xi1> to vector<2x256xi1>
    %550 = vector.broadcast %cst_92 : f32 to vector<2x256xf32>
    %551 = arith.select %549, %546, %550 : vector<2x256xi1>, vector<2x256xf32>
    %c29 = arith.constant 29 : index
    %552 = memref.load %arg1[%c29] : memref<98xf32, #tpu.memory_space<smem>>
    %c78 = arith.constant 78 : index
    %553 = memref.load %arg1[%c78] : memref<98xf32, #tpu.memory_space<smem>>
    %554 = vector.broadcast %552 : f32 to vector<2x1xf32>
    %555 = vector.broadcast %553 : f32 to vector<2x1xf32>
    %556 = arith.select %139, %554, %555 : vector<2x1xi1>, vector<2x1xf32>
    %557 = vector.broadcast %556 : vector<2x1xf32> to vector<2x256xf32>
    %558 = arith.mulf %557, %551 : vector<2x256xf32>
    %559 = arith.addf %545, %558 : vector<2x256xf32>
    %c241_i32 = arith.constant 241 : i32
    %560 = tpu.dynamic_rotate %8 by %c241_i32 dim 1 : vector<2x256xf32>, i32 -> vector<2x256xf32>
    %561 = arith.andi %55, %100 : vector<1x256xi1>
    %cst_93 = arith.constant 0.000000e+00 : f32
    %562 = vector.shape_cast %561 : vector<1x256xi1> to vector<1x256xi1>
    %563 = vector.broadcast %562 : vector<1x256xi1> to vector<2x256xi1>
    %564 = vector.broadcast %cst_93 : f32 to vector<2x256xf32>
    %565 = arith.select %563, %560, %564 : vector<2x256xi1>, vector<2x256xf32>
    %c30 = arith.constant 30 : index
    %566 = memref.load %arg1[%c30] : memref<98xf32, #tpu.memory_space<smem>>
    %c79 = arith.constant 79 : index
    %567 = memref.load %arg1[%c79] : memref<98xf32, #tpu.memory_space<smem>>
    %568 = vector.broadcast %566 : f32 to vector<2x1xf32>
    %569 = vector.broadcast %567 : f32 to vector<2x1xf32>
    %570 = arith.select %139, %568, %569 : vector<2x1xi1>, vector<2x1xf32>
    %571 = vector.broadcast %570 : vector<2x1xf32> to vector<2x256xf32>
    %572 = arith.mulf %571, %565 : vector<2x256xf32>
    %573 = arith.addf %559, %572 : vector<2x256xf32>
    %c240_i32 = arith.constant 240 : i32
    %574 = tpu.dynamic_rotate %8 by %c240_i32 dim 1 : vector<2x256xf32>, i32 -> vector<2x256xf32>
    %575 = arith.andi %55, %109 : vector<1x256xi1>
    %cst_94 = arith.constant 0.000000e+00 : f32
    %576 = vector.shape_cast %575 : vector<1x256xi1> to vector<1x256xi1>
    %577 = vector.broadcast %576 : vector<1x256xi1> to vector<2x256xi1>
    %578 = vector.broadcast %cst_94 : f32 to vector<2x256xf32>
    %579 = arith.select %577, %574, %578 : vector<2x256xi1>, vector<2x256xf32>
    %c31 = arith.constant 31 : index
    %580 = memref.load %arg1[%c31] : memref<98xf32, #tpu.memory_space<smem>>
    %c80 = arith.constant 80 : index
    %581 = memref.load %arg1[%c80] : memref<98xf32, #tpu.memory_space<smem>>
    %582 = vector.broadcast %580 : f32 to vector<2x1xf32>
    %583 = vector.broadcast %581 : f32 to vector<2x1xf32>
    %584 = arith.select %139, %582, %583 : vector<2x1xi1>, vector<2x1xf32>
    %585 = vector.broadcast %584 : vector<2x1xf32> to vector<2x256xf32>
    %586 = arith.mulf %585, %579 : vector<2x256xf32>
    %587 = arith.addf %573, %586 : vector<2x256xf32>
    %c239_i32 = arith.constant 239 : i32
    %588 = tpu.dynamic_rotate %8 by %c239_i32 dim 1 : vector<2x256xf32>, i32 -> vector<2x256xf32>
    %589 = arith.andi %55, %118 : vector<1x256xi1>
    %cst_95 = arith.constant 0.000000e+00 : f32
    %590 = vector.shape_cast %589 : vector<1x256xi1> to vector<1x256xi1>
    %591 = vector.broadcast %590 : vector<1x256xi1> to vector<2x256xi1>
    %592 = vector.broadcast %cst_95 : f32 to vector<2x256xf32>
    %593 = arith.select %591, %588, %592 : vector<2x256xi1>, vector<2x256xf32>
    %c32 = arith.constant 32 : index
    %594 = memref.load %arg1[%c32] : memref<98xf32, #tpu.memory_space<smem>>
    %c81 = arith.constant 81 : index
    %595 = memref.load %arg1[%c81] : memref<98xf32, #tpu.memory_space<smem>>
    %596 = vector.broadcast %594 : f32 to vector<2x1xf32>
    %597 = vector.broadcast %595 : f32 to vector<2x1xf32>
    %598 = arith.select %139, %596, %597 : vector<2x1xi1>, vector<2x1xf32>
    %599 = vector.broadcast %598 : vector<2x1xf32> to vector<2x256xf32>
    %600 = arith.mulf %599, %593 : vector<2x256xf32>
    %601 = arith.addf %587, %600 : vector<2x256xf32>
    %c238_i32 = arith.constant 238 : i32
    %602 = tpu.dynamic_rotate %8 by %c238_i32 dim 1 : vector<2x256xf32>, i32 -> vector<2x256xf32>
    %603 = arith.andi %55, %127 : vector<1x256xi1>
    %cst_96 = arith.constant 0.000000e+00 : f32
    %604 = vector.shape_cast %603 : vector<1x256xi1> to vector<1x256xi1>
    %605 = vector.broadcast %604 : vector<1x256xi1> to vector<2x256xi1>
    %606 = vector.broadcast %cst_96 : f32 to vector<2x256xf32>
    %607 = arith.select %605, %602, %606 : vector<2x256xi1>, vector<2x256xf32>
    %c33 = arith.constant 33 : index
    %608 = memref.load %arg1[%c33] : memref<98xf32, #tpu.memory_space<smem>>
    %c82 = arith.constant 82 : index
    %609 = memref.load %arg1[%c82] : memref<98xf32, #tpu.memory_space<smem>>
    %610 = vector.broadcast %608 : f32 to vector<2x1xf32>
    %611 = vector.broadcast %609 : f32 to vector<2x1xf32>
    %612 = arith.select %139, %610, %611 : vector<2x1xi1>, vector<2x1xf32>
    %613 = vector.broadcast %612 : vector<2x1xf32> to vector<2x256xf32>
    %614 = arith.mulf %613, %607 : vector<2x256xf32>
    %615 = arith.addf %601, %614 : vector<2x256xf32>
    %c237_i32 = arith.constant 237 : i32
    %616 = tpu.dynamic_rotate %8 by %c237_i32 dim 1 : vector<2x256xf32>, i32 -> vector<2x256xf32>
    %617 = arith.andi %55, %136 : vector<1x256xi1>
    %cst_97 = arith.constant 0.000000e+00 : f32
    %618 = vector.shape_cast %617 : vector<1x256xi1> to vector<1x256xi1>
    %619 = vector.broadcast %618 : vector<1x256xi1> to vector<2x256xi1>
    %620 = vector.broadcast %cst_97 : f32 to vector<2x256xf32>
    %621 = arith.select %619, %616, %620 : vector<2x256xi1>, vector<2x256xf32>
    %c34 = arith.constant 34 : index
    %622 = memref.load %arg1[%c34] : memref<98xf32, #tpu.memory_space<smem>>
    %c83 = arith.constant 83 : index
    %623 = memref.load %arg1[%c83] : memref<98xf32, #tpu.memory_space<smem>>
    %624 = vector.broadcast %622 : f32 to vector<2x1xf32>
    %625 = vector.broadcast %623 : f32 to vector<2x1xf32>
    %626 = arith.select %139, %624, %625 : vector<2x1xi1>, vector<2x1xf32>
    %627 = vector.broadcast %626 : vector<2x1xf32> to vector<2x256xf32>
    %628 = arith.mulf %627, %621 : vector<2x256xf32>
    %629 = arith.addf %615, %628 : vector<2x256xf32>
    %c227_i32 = arith.constant 227 : i32
    %630 = tpu.dynamic_rotate %8 by %c227_i32 dim 1 : vector<2x256xf32>, i32 -> vector<2x256xf32>
    %631 = arith.andi %64, %82 : vector<1x256xi1>
    %cst_98 = arith.constant 0.000000e+00 : f32
    %632 = vector.shape_cast %631 : vector<1x256xi1> to vector<1x256xi1>
    %633 = vector.broadcast %632 : vector<1x256xi1> to vector<2x256xi1>
    %634 = vector.broadcast %cst_98 : f32 to vector<2x256xf32>
    %635 = arith.select %633, %630, %634 : vector<2x256xi1>, vector<2x256xf32>
    %c35 = arith.constant 35 : index
    %636 = memref.load %arg1[%c35] : memref<98xf32, #tpu.memory_space<smem>>
    %c84 = arith.constant 84 : index
    %637 = memref.load %arg1[%c84] : memref<98xf32, #tpu.memory_space<smem>>
    %638 = vector.broadcast %636 : f32 to vector<2x1xf32>
    %639 = vector.broadcast %637 : f32 to vector<2x1xf32>
    %640 = arith.select %139, %638, %639 : vector<2x1xi1>, vector<2x1xf32>
    %641 = vector.broadcast %640 : vector<2x1xf32> to vector<2x256xf32>
    %642 = arith.mulf %641, %635 : vector<2x256xf32>
    %643 = arith.addf %629, %642 : vector<2x256xf32>
    %c226_i32 = arith.constant 226 : i32
    %644 = tpu.dynamic_rotate %8 by %c226_i32 dim 1 : vector<2x256xf32>, i32 -> vector<2x256xf32>
    %645 = arith.andi %64, %91 : vector<1x256xi1>
    %cst_99 = arith.constant 0.000000e+00 : f32
    %646 = vector.shape_cast %645 : vector<1x256xi1> to vector<1x256xi1>
    %647 = vector.broadcast %646 : vector<1x256xi1> to vector<2x256xi1>
    %648 = vector.broadcast %cst_99 : f32 to vector<2x256xf32>
    %649 = arith.select %647, %644, %648 : vector<2x256xi1>, vector<2x256xf32>
    %c36 = arith.constant 36 : index
    %650 = memref.load %arg1[%c36] : memref<98xf32, #tpu.memory_space<smem>>
    %c85 = arith.constant 85 : index
    %651 = memref.load %arg1[%c85] : memref<98xf32, #tpu.memory_space<smem>>
    %652 = vector.broadcast %650 : f32 to vector<2x1xf32>
    %653 = vector.broadcast %651 : f32 to vector<2x1xf32>
    %654 = arith.select %139, %652, %653 : vector<2x1xi1>, vector<2x1xf32>
    %655 = vector.broadcast %654 : vector<2x1xf32> to vector<2x256xf32>
    %656 = arith.mulf %655, %649 : vector<2x256xf32>
    %657 = arith.addf %643, %656 : vector<2x256xf32>
    %c225_i32 = arith.constant 225 : i32
    %658 = tpu.dynamic_rotate %8 by %c225_i32 dim 1 : vector<2x256xf32>, i32 -> vector<2x256xf32>
    %659 = arith.andi %64, %100 : vector<1x256xi1>
    %cst_100 = arith.constant 0.000000e+00 : f32
    %660 = vector.shape_cast %659 : vector<1x256xi1> to vector<1x256xi1>
    %661 = vector.broadcast %660 : vector<1x256xi1> to vector<2x256xi1>
    %662 = vector.broadcast %cst_100 : f32 to vector<2x256xf32>
    %663 = arith.select %661, %658, %662 : vector<2x256xi1>, vector<2x256xf32>
    %c37 = arith.constant 37 : index
    %664 = memref.load %arg1[%c37] : memref<98xf32, #tpu.memory_space<smem>>
    %c86 = arith.constant 86 : index
    %665 = memref.load %arg1[%c86] : memref<98xf32, #tpu.memory_space<smem>>
    %666 = vector.broadcast %664 : f32 to vector<2x1xf32>
    %667 = vector.broadcast %665 : f32 to vector<2x1xf32>
    %668 = arith.select %139, %666, %667 : vector<2x1xi1>, vector<2x1xf32>
    %669 = vector.broadcast %668 : vector<2x1xf32> to vector<2x256xf32>
    %670 = arith.mulf %669, %663 : vector<2x256xf32>
    %671 = arith.addf %657, %670 : vector<2x256xf32>
    %c224_i32 = arith.constant 224 : i32
    %672 = tpu.dynamic_rotate %8 by %c224_i32 dim 1 : vector<2x256xf32>, i32 -> vector<2x256xf32>
    %673 = arith.andi %64, %109 : vector<1x256xi1>
    %cst_101 = arith.constant 0.000000e+00 : f32
    %674 = vector.shape_cast %673 : vector<1x256xi1> to vector<1x256xi1>
    %675 = vector.broadcast %674 : vector<1x256xi1> to vector<2x256xi1>
    %676 = vector.broadcast %cst_101 : f32 to vector<2x256xf32>
    %677 = arith.select %675, %672, %676 : vector<2x256xi1>, vector<2x256xf32>
    %c38 = arith.constant 38 : index
    %678 = memref.load %arg1[%c38] : memref<98xf32, #tpu.memory_space<smem>>
    %c87 = arith.constant 87 : index
    %679 = memref.load %arg1[%c87] : memref<98xf32, #tpu.memory_space<smem>>
    %680 = vector.broadcast %678 : f32 to vector<2x1xf32>
    %681 = vector.broadcast %679 : f32 to vector<2x1xf32>
    %682 = arith.select %139, %680, %681 : vector<2x1xi1>, vector<2x1xf32>
    %683 = vector.broadcast %682 : vector<2x1xf32> to vector<2x256xf32>
    %684 = arith.mulf %683, %677 : vector<2x256xf32>
    %685 = arith.addf %671, %684 : vector<2x256xf32>
    %c223_i32 = arith.constant 223 : i32
    %686 = tpu.dynamic_rotate %8 by %c223_i32 dim 1 : vector<2x256xf32>, i32 -> vector<2x256xf32>
    %687 = arith.andi %64, %118 : vector<1x256xi1>
    %cst_102 = arith.constant 0.000000e+00 : f32
    %688 = vector.shape_cast %687 : vector<1x256xi1> to vector<1x256xi1>
    %689 = vector.broadcast %688 : vector<1x256xi1> to vector<2x256xi1>
    %690 = vector.broadcast %cst_102 : f32 to vector<2x256xf32>
    %691 = arith.select %689, %686, %690 : vector<2x256xi1>, vector<2x256xf32>
    %c39 = arith.constant 39 : index
    %692 = memref.load %arg1[%c39] : memref<98xf32, #tpu.memory_space<smem>>
    %c88 = arith.constant 88 : index
    %693 = memref.load %arg1[%c88] : memref<98xf32, #tpu.memory_space<smem>>
    %694 = vector.broadcast %692 : f32 to vector<2x1xf32>
    %695 = vector.broadcast %693 : f32 to vector<2x1xf32>
    %696 = arith.select %139, %694, %695 : vector<2x1xi1>, vector<2x1xf32>
    %697 = vector.broadcast %696 : vector<2x1xf32> to vector<2x256xf32>
    %698 = arith.mulf %697, %691 : vector<2x256xf32>
    %699 = arith.addf %685, %698 : vector<2x256xf32>
    %c222_i32 = arith.constant 222 : i32
    %700 = tpu.dynamic_rotate %8 by %c222_i32 dim 1 : vector<2x256xf32>, i32 -> vector<2x256xf32>
    %701 = arith.andi %64, %127 : vector<1x256xi1>
    %cst_103 = arith.constant 0.000000e+00 : f32
    %702 = vector.shape_cast %701 : vector<1x256xi1> to vector<1x256xi1>
    %703 = vector.broadcast %702 : vector<1x256xi1> to vector<2x256xi1>
    %704 = vector.broadcast %cst_103 : f32 to vector<2x256xf32>
    %705 = arith.select %703, %700, %704 : vector<2x256xi1>, vector<2x256xf32>
    %c40 = arith.constant 40 : index
    %706 = memref.load %arg1[%c40] : memref<98xf32, #tpu.memory_space<smem>>
    %c89 = arith.constant 89 : index
    %707 = memref.load %arg1[%c89] : memref<98xf32, #tpu.memory_space<smem>>
    %708 = vector.broadcast %706 : f32 to vector<2x1xf32>
    %709 = vector.broadcast %707 : f32 to vector<2x1xf32>
    %710 = arith.select %139, %708, %709 : vector<2x1xi1>, vector<2x1xf32>
    %711 = vector.broadcast %710 : vector<2x1xf32> to vector<2x256xf32>
    %712 = arith.mulf %711, %705 : vector<2x256xf32>
    %713 = arith.addf %699, %712 : vector<2x256xf32>
    %c221_i32 = arith.constant 221 : i32
    %714 = tpu.dynamic_rotate %8 by %c221_i32 dim 1 : vector<2x256xf32>, i32 -> vector<2x256xf32>
    %715 = arith.andi %64, %136 : vector<1x256xi1>
    %cst_104 = arith.constant 0.000000e+00 : f32
    %716 = vector.shape_cast %715 : vector<1x256xi1> to vector<1x256xi1>
    %717 = vector.broadcast %716 : vector<1x256xi1> to vector<2x256xi1>
    %718 = vector.broadcast %cst_104 : f32 to vector<2x256xf32>
    %719 = arith.select %717, %714, %718 : vector<2x256xi1>, vector<2x256xf32>
    %c41 = arith.constant 41 : index
    %720 = memref.load %arg1[%c41] : memref<98xf32, #tpu.memory_space<smem>>
    %c90 = arith.constant 90 : index
    %721 = memref.load %arg1[%c90] : memref<98xf32, #tpu.memory_space<smem>>
    %722 = vector.broadcast %720 : f32 to vector<2x1xf32>
    %723 = vector.broadcast %721 : f32 to vector<2x1xf32>
    %724 = arith.select %139, %722, %723 : vector<2x1xi1>, vector<2x1xf32>
    %725 = vector.broadcast %724 : vector<2x1xf32> to vector<2x256xf32>
    %726 = arith.mulf %725, %719 : vector<2x256xf32>
    %727 = arith.addf %713, %726 : vector<2x256xf32>
    %c211_i32 = arith.constant 211 : i32
    %728 = tpu.dynamic_rotate %8 by %c211_i32 dim 1 : vector<2x256xf32>, i32 -> vector<2x256xf32>
    %729 = arith.andi %73, %82 : vector<1x256xi1>
    %cst_105 = arith.constant 0.000000e+00 : f32
    %730 = vector.shape_cast %729 : vector<1x256xi1> to vector<1x256xi1>
    %731 = vector.broadcast %730 : vector<1x256xi1> to vector<2x256xi1>
    %732 = vector.broadcast %cst_105 : f32 to vector<2x256xf32>
    %733 = arith.select %731, %728, %732 : vector<2x256xi1>, vector<2x256xf32>
    %c42 = arith.constant 42 : index
    %734 = memref.load %arg1[%c42] : memref<98xf32, #tpu.memory_space<smem>>
    %c91 = arith.constant 91 : index
    %735 = memref.load %arg1[%c91] : memref<98xf32, #tpu.memory_space<smem>>
    %736 = vector.broadcast %734 : f32 to vector<2x1xf32>
    %737 = vector.broadcast %735 : f32 to vector<2x1xf32>
    %738 = arith.select %139, %736, %737 : vector<2x1xi1>, vector<2x1xf32>
    %739 = vector.broadcast %738 : vector<2x1xf32> to vector<2x256xf32>
    %740 = arith.mulf %739, %733 : vector<2x256xf32>
    %741 = arith.addf %727, %740 : vector<2x256xf32>
    %c210_i32 = arith.constant 210 : i32
    %742 = tpu.dynamic_rotate %8 by %c210_i32 dim 1 : vector<2x256xf32>, i32 -> vector<2x256xf32>
    %743 = arith.andi %73, %91 : vector<1x256xi1>
    %cst_106 = arith.constant 0.000000e+00 : f32
    %744 = vector.shape_cast %743 : vector<1x256xi1> to vector<1x256xi1>
    %745 = vector.broadcast %744 : vector<1x256xi1> to vector<2x256xi1>
    %746 = vector.broadcast %cst_106 : f32 to vector<2x256xf32>
    %747 = arith.select %745, %742, %746 : vector<2x256xi1>, vector<2x256xf32>
    %c43 = arith.constant 43 : index
    %748 = memref.load %arg1[%c43] : memref<98xf32, #tpu.memory_space<smem>>
    %c92 = arith.constant 92 : index
    %749 = memref.load %arg1[%c92] : memref<98xf32, #tpu.memory_space<smem>>
    %750 = vector.broadcast %748 : f32 to vector<2x1xf32>
    %751 = vector.broadcast %749 : f32 to vector<2x1xf32>
    %752 = arith.select %139, %750, %751 : vector<2x1xi1>, vector<2x1xf32>
    %753 = vector.broadcast %752 : vector<2x1xf32> to vector<2x256xf32>
    %754 = arith.mulf %753, %747 : vector<2x256xf32>
    %755 = arith.addf %741, %754 : vector<2x256xf32>
    %c209_i32 = arith.constant 209 : i32
    %756 = tpu.dynamic_rotate %8 by %c209_i32 dim 1 : vector<2x256xf32>, i32 -> vector<2x256xf32>
    %757 = arith.andi %73, %100 : vector<1x256xi1>
    %cst_107 = arith.constant 0.000000e+00 : f32
    %758 = vector.shape_cast %757 : vector<1x256xi1> to vector<1x256xi1>
    %759 = vector.broadcast %758 : vector<1x256xi1> to vector<2x256xi1>
    %760 = vector.broadcast %cst_107 : f32 to vector<2x256xf32>
    %761 = arith.select %759, %756, %760 : vector<2x256xi1>, vector<2x256xf32>
    %c44 = arith.constant 44 : index
    %762 = memref.load %arg1[%c44] : memref<98xf32, #tpu.memory_space<smem>>
    %c93 = arith.constant 93 : index
    %763 = memref.load %arg1[%c93] : memref<98xf32, #tpu.memory_space<smem>>
    %764 = vector.broadcast %762 : f32 to vector<2x1xf32>
    %765 = vector.broadcast %763 : f32 to vector<2x1xf32>
    %766 = arith.select %139, %764, %765 : vector<2x1xi1>, vector<2x1xf32>
    %767 = vector.broadcast %766 : vector<2x1xf32> to vector<2x256xf32>
    %768 = arith.mulf %767, %761 : vector<2x256xf32>
    %769 = arith.addf %755, %768 : vector<2x256xf32>
    %c208_i32 = arith.constant 208 : i32
    %770 = tpu.dynamic_rotate %8 by %c208_i32 dim 1 : vector<2x256xf32>, i32 -> vector<2x256xf32>
    %771 = arith.andi %73, %109 : vector<1x256xi1>
    %cst_108 = arith.constant 0.000000e+00 : f32
    %772 = vector.shape_cast %771 : vector<1x256xi1> to vector<1x256xi1>
    %773 = vector.broadcast %772 : vector<1x256xi1> to vector<2x256xi1>
    %774 = vector.broadcast %cst_108 : f32 to vector<2x256xf32>
    %775 = arith.select %773, %770, %774 : vector<2x256xi1>, vector<2x256xf32>
    %c45 = arith.constant 45 : index
    %776 = memref.load %arg1[%c45] : memref<98xf32, #tpu.memory_space<smem>>
    %c94 = arith.constant 94 : index
    %777 = memref.load %arg1[%c94] : memref<98xf32, #tpu.memory_space<smem>>
    %778 = vector.broadcast %776 : f32 to vector<2x1xf32>
    %779 = vector.broadcast %777 : f32 to vector<2x1xf32>
    %780 = arith.select %139, %778, %779 : vector<2x1xi1>, vector<2x1xf32>
    %781 = vector.broadcast %780 : vector<2x1xf32> to vector<2x256xf32>
    %782 = arith.mulf %781, %775 : vector<2x256xf32>
    %783 = arith.addf %769, %782 : vector<2x256xf32>
    %c207_i32 = arith.constant 207 : i32
    %784 = tpu.dynamic_rotate %8 by %c207_i32 dim 1 : vector<2x256xf32>, i32 -> vector<2x256xf32>
    %785 = arith.andi %73, %118 : vector<1x256xi1>
    %cst_109 = arith.constant 0.000000e+00 : f32
    %786 = vector.shape_cast %785 : vector<1x256xi1> to vector<1x256xi1>
    %787 = vector.broadcast %786 : vector<1x256xi1> to vector<2x256xi1>
    %788 = vector.broadcast %cst_109 : f32 to vector<2x256xf32>
    %789 = arith.select %787, %784, %788 : vector<2x256xi1>, vector<2x256xf32>
    %c46 = arith.constant 46 : index
    %790 = memref.load %arg1[%c46] : memref<98xf32, #tpu.memory_space<smem>>
    %c95 = arith.constant 95 : index
    %791 = memref.load %arg1[%c95] : memref<98xf32, #tpu.memory_space<smem>>
    %792 = vector.broadcast %790 : f32 to vector<2x1xf32>
    %793 = vector.broadcast %791 : f32 to vector<2x1xf32>
    %794 = arith.select %139, %792, %793 : vector<2x1xi1>, vector<2x1xf32>
    %795 = vector.broadcast %794 : vector<2x1xf32> to vector<2x256xf32>
    %796 = arith.mulf %795, %789 : vector<2x256xf32>
    %797 = arith.addf %783, %796 : vector<2x256xf32>
    %c206_i32 = arith.constant 206 : i32
    %798 = tpu.dynamic_rotate %8 by %c206_i32 dim 1 : vector<2x256xf32>, i32 -> vector<2x256xf32>
    %799 = arith.andi %73, %127 : vector<1x256xi1>
    %cst_110 = arith.constant 0.000000e+00 : f32
    %800 = vector.shape_cast %799 : vector<1x256xi1> to vector<1x256xi1>
    %801 = vector.broadcast %800 : vector<1x256xi1> to vector<2x256xi1>
    %802 = vector.broadcast %cst_110 : f32 to vector<2x256xf32>
    %803 = arith.select %801, %798, %802 : vector<2x256xi1>, vector<2x256xf32>
    %c47 = arith.constant 47 : index
    %804 = memref.load %arg1[%c47] : memref<98xf32, #tpu.memory_space<smem>>
    %c96 = arith.constant 96 : index
    %805 = memref.load %arg1[%c96] : memref<98xf32, #tpu.memory_space<smem>>
    %806 = vector.broadcast %804 : f32 to vector<2x1xf32>
    %807 = vector.broadcast %805 : f32 to vector<2x1xf32>
    %808 = arith.select %139, %806, %807 : vector<2x1xi1>, vector<2x1xf32>
    %809 = vector.broadcast %808 : vector<2x1xf32> to vector<2x256xf32>
    %810 = arith.mulf %809, %803 : vector<2x256xf32>
    %811 = arith.addf %797, %810 : vector<2x256xf32>
    %c205_i32 = arith.constant 205 : i32
    %812 = tpu.dynamic_rotate %8 by %c205_i32 dim 1 : vector<2x256xf32>, i32 -> vector<2x256xf32>
    %813 = arith.andi %73, %136 : vector<1x256xi1>
    %cst_111 = arith.constant 0.000000e+00 : f32
    %814 = vector.shape_cast %813 : vector<1x256xi1> to vector<1x256xi1>
    %815 = vector.broadcast %814 : vector<1x256xi1> to vector<2x256xi1>
    %816 = vector.broadcast %cst_111 : f32 to vector<2x256xf32>
    %817 = arith.select %815, %812, %816 : vector<2x256xi1>, vector<2x256xf32>
    %c48 = arith.constant 48 : index
    %818 = memref.load %arg1[%c48] : memref<98xf32, #tpu.memory_space<smem>>
    %c97 = arith.constant 97 : index
    %819 = memref.load %arg1[%c97] : memref<98xf32, #tpu.memory_space<smem>>
    %820 = vector.broadcast %818 : f32 to vector<2x1xf32>
    %821 = vector.broadcast %819 : f32 to vector<2x1xf32>
    %822 = arith.select %139, %820, %821 : vector<2x1xi1>, vector<2x1xf32>
    %823 = vector.broadcast %822 : vector<2x1xf32> to vector<2x256xf32>
    %824 = arith.mulf %823, %817 : vector<2x256xf32>
    %825 = arith.addf %811, %824 : vector<2x256xf32>
    %cst_112 = arith.constant dense<0.000000e+00> : vector<256xf32>
    %826 = vector.multi_reduction <add>, %825, %cst_112 [0] : vector<2x256xf32> to vector<256xf32>
    %827 = vector.shape_cast %826 : vector<256xf32> to vector<1x256xf32>
    %828 = arith.negf %827 : vector<1x256xf32>
    %829 = math.exp %828 : vector<1x256xf32>
    %cst_113 = arith.constant 1.000000e+00 : f32
    %830 = vector.broadcast %cst_113 : f32 to vector<1x256xf32>
    %831 = arith.addf %830, %829 : vector<1x256xf32>
    %832 = arith.divf %830, %831 : vector<1x256xf32>
    %833 = vector.broadcast %832 : vector<1x256xf32> to vector<4x256xf32>
    %834 = arith.mulf %1, %833 : vector<4x256xf32>
    %c0_114 = arith.constant 0 : index
    %c0_115 = arith.constant 0 : index
    %c0_116 = arith.constant 0 : index
    %835 = vector.load %arg4[%c0_114, %c0_115, %c0_116] : memref<1x4x256xf32, #tpu.memory_space<vmem>>, vector<1x4x256xf32>
    %836 = vector.shape_cast %835 : vector<1x4x256xf32> to vector<4x256xf32>
    %837 = vector.shape_cast %834 : vector<4x256xf32> to vector<1x4x256xf32>
    tpu.vector_store %arg4[%c0_114, %c0_115, %c0_116], %837 {strides = array<i32>} : memref<1x4x256xf32, #tpu.memory_space<vmem>>, vector<1x4x256xf32>,
    return
  }
  func.func @transform_0(%arg0: i32) -> i32 {
    %c0_i32 = arith.constant 0 : i32
    %c0_i32_0 = arith.constant 0 : i32
    return %c0_i32 : i32
  }
  func.func @transform_1(%arg0: i32) -> (i32, i32) {
    %c0_i32 = arith.constant 0 : i32
    %c0_i32_0 = arith.constant 0 : i32
    %c0_i32_1 = arith.constant 0 : i32
    return %c0_i32, %c0_i32_0 : i32, i32
  }
  func.func @transform_2(%arg0: i32) -> (i32, i32, i32) {
    %c0_i32 = arith.constant 0 : i32
    %c0_i32_0 = arith.constant 0 : i32
    %c0_i32_1 = arith.constant 0 : i32
    return %arg0, %c0_i32, %c0_i32_0 : i32, i32, i32
  }
  func.func @transform_3(%arg0: i32) -> (i32, i32, i32) {
    %c0_i32 = arith.constant 0 : i32
    %c0_i32_0 = arith.constant 0 : i32
    %c0_i32_1 = arith.constant 0 : i32
    return %arg0, %c0_i32, %c0_i32_0 : i32, i32, i32
  }
}

</mosaic_0001>

<llo_original>
// kernel: tpu_custom_call.1
$region0: #{tpu_custom_call.1}
  #allocation0 [shape = 'u32[]', space=smem, size = 0x4, offset = 0x4, fixed_abs, tag = 'smem constant byte address 0x4 - core index']
  #allocation1 [shape = 'u32[144,128]{1,0:T(1,128)}', space=vmem, size = 0x12000, scoped, tag = 'internal scratch']
  %s0 = inlined_call_operand.vmem [shape: f32[98], index: 0, kind: input, shape index: {}]
  %s1 = inlined_call_operand.vmem [shape: s32[2,256], index: 1, kind: input, shape index: {}]
  %s2 = inlined_call_operand.hbm [shape: f32[2,4,256], index: 2, kind: input, shape index: {}, may-alias: {2,3}]
  %s3 = inlined_call_operand.hbm [shape: f32[2,4,256], index: 3, kind: output, shape index: {}, may-alias: {2,3}]
  %s4 = sld [smem:[#allocation0]]
  $region53: #{tpu_custom_call.1} parent=0
    _
  %s6 = ssub.s32 1, %s4
  %s7 = scalar_select 0, %s6, %s4
  $region1: #{tpu_custom_call.1} parent=0
    #allocation2 [shape = 'u8[512]{0}', space=smem, size = 0x200, scoped, tag = 'input window, operand 0, single buffered']
    #allocation3 [shape = 's32[2]{0}', space=sflag, size = 0x8, scoped, tag = 'scoped memory for tpu_custom_call.1']
    #allocation4 [shape = 's32[2]{0}', space=sflag, size = 0x8, scoped, tag = 'scoped memory for tpu_custom_call.1']
    #allocation5 [shape = 's32[2]{0}', space=sflag, size = 0x8, scoped, tag = 'scoped memory for tpu_custom_call.1']
    #allocation6 [shape = 'u8[8192]{0}', space=vmem, size = 0x2000, scoped, tag = 'input window, operand 2']
    #allocation7 [shape = 'u8[8192]{0}', space=vmem, size = 0x2000, scoped, tag = 'output window, operand 0']
    %8 = vsyncpa [#allocation5], 0
    %9 = vsyncpa [#allocation3], 0
    %s10 = scalar_lea.sflag [#allocation3], 1
    %11 = vsyncpa %s10, 0
    %12 = vsyncpa [#allocation4], 0
    %s13 = scalar_lea.sflag [#allocation4], 1
    %14 = vsyncpa %s13, 0
    loop: start=0, step=1, limit=4
    $region2: #{tpu_custom_call.1} parent=1 // loop_pre_header
      _
    $region3: #{tpu_custom_call.1} parent=1 // loop_header
      %s16 = sphi 0, %s20
      %p17 = scmp.ge.s32.totalorder %s16, 4
      %s24 = sphi 0, %s24
      %s26 = sphi 0, %s24
      %s27 = sphi 0, %s26
      %s41 = sphi 0, %s27
      %s45 = sphi 0, %s45
      %s47 = sphi 0, %s45
      %s48 = sphi 0, %s47
      %s62 = sphi 0, %s48
      %s68 = sphi 0, %s70
      %s71 = sphi 0, %s68
      %s72 = sphi 0, %s71
      %s88 = sphi 0, %s72
      %s94 = sphi 0, %s96
      %s97 = sphi 0, %s94
      %s98 = sphi 0, %s97
      %s114 = sphi 0, %s98
    $region4: #{tpu_custom_call.1} parent=1 // loop_header_branch
      %19 = sbr.rel (%p17) target = $region8
    $region5: #{tpu_custom_call.1} parent=1 // loop_body
      %s21 = ssub.s32 %s16, 1
      %s22 = ssub.s32 %s16, 2
      %s23 = sadd.s32 %s16, 1
      %s25 = sadd.s32 %s24, 1
      %p28 = scmp.eq.s32.totalorder %s16, 1
      %p29 = scmp.ne.s32.totalorder %s24, %s26
      %p30 = scmp.eq.s32.totalorder %s16, 0
      %p31 = por %p29, %p30
      %p32 = scmp.ne.s32.totalorder %s24, %s26
      %p33 = scmp.eq.s32.totalorder %s21, 1
      %p34 = por %p32, %p33
      %p35 = scmp.ne.s32.totalorder %s26, %s27
      %p36 = scmp.eq.s32.totalorder %s21, 0
      %p37 = por %p35, %p36
      %p38 = scmp.ne.s32.totalorder %s26, %s27
      %p39 = scmp.eq.s32.totalorder %s22, 1
      %p40 = por %p38, %p39
      %p42 = scmp.ne.s32.totalorder %s27, %s41
      %p43 = scmp.eq.s32.totalorder %s22, 0
      %p44 = por %p42, %p43
      %s46 = sadd.s32 %s45, 1
      %p49 = scmp.eq.s32.totalorder %s16, 1
      %p50 = scmp.ne.s32.totalorder %s45, %s47
      %p51 = scmp.eq.s32.totalorder %s16, 0
      %p52 = por %p50, %p51
      %p53 = scmp.ne.s32.totalorder %s45, %s47
      %p54 = scmp.eq.s32.totalorder %s21, 1
      %p55 = por %p53, %p54
      %p56 = scmp.ne.s32.totalorder %s47, %s48
      %p57 = scmp.eq.s32.totalorder %s21, 0
      %p58 = por %p56, %p57
      %p59 = scmp.ne.s32.totalorder %s47, %s48
      %p60 = scmp.eq.s32.totalorder %s22, 1
      %p61 = por %p59, %p60
      %p63 = scmp.ne.s32.totalorder %s48, %s62
      %p64 = scmp.eq.s32.totalorder %s22, 0
      %p65 = por %p63, %p64
      %s66 = ssub.s32 %s16, %s23
      %p67 = scmp.eq.s32.totalorder %s66, 0
      %s69 = sadd.s32 %s68, 1
      %s70 = scalar_select %p67, %s68, %s69
      %p73 = pneg %p67
      %p74 = scmp.eq.s32.totalorder %s16, 1
      %p75 = por %p73, %p74
      %p76 = scmp.ne.s32.totalorder %s68, %s71
      %p77 = scmp.eq.s32.totalorder %s16, 0
      %p78 = por %p76, %p77
      %p79 = scmp.ne.s32.totalorder %s68, %s71
      %p80 = scmp.eq.s32.totalorder %s21, 1
      %p81 = por %p79, %p80
      %p82 = scmp.ne.s32.totalorder %s71, %s72
      %p83 = scmp.eq.s32.totalorder %s21, 0
      %p84 = por %p82, %p83
      %p85 = scmp.ne.s32.totalorder %s71, %s72
      %p86 = scmp.eq.s32.totalorder %s22, 1
      %p87 = por %p85, %p86
      %p89 = scmp.ne.s32.totalorder %s72, %s88
      %p90 = scmp.eq.s32.totalorder %s22, 0
      %p91 = por %p89, %p90
      %s92 = ssub.s32 %s16, %s23
      %p93 = scmp.eq.s32.totalorder %s92, 0
      %s95 = sadd.s32 %s94, 1
      %s96 = scalar_select %p93, %s94, %s95
      %p99 = pneg %p93
      %p100 = scmp.eq.s32.totalorder %s16, 1
      %p101 = por %p99, %p100
      %p102 = scmp.ne.s32.totalorder %s94, %s97
      %p103 = scmp.eq.s32.totalorder %s16, 0
      %p104 = por %p102, %p103
      %p105 = scmp.ne.s32.totalorder %s94, %s97
      %p106 = scmp.eq.s32.totalorder %s21, 1
      %p107 = por %p105, %p106
      %p108 = scmp.ne.s32.totalorder %s97, %s98
      %p109 = scmp.eq.s32.totalorder %s21, 0
      %p110 = por %p108, %p109
      %p111 = scmp.ne.s32.totalorder %s97, %s98
      %p112 = scmp.eq.s32.totalorder %s22, 1
      %p113 = por %p111, %p112
      %p115 = scmp.ne.s32.totalorder %s98, %s114
      %p116 = scmp.eq.s32.totalorder %s22, 0
      %p117 = por %p115, %p116
      %p118 = scmp.le.s32.totalorder 1, %s16
      %p119 = scmp.lt.s32.totalorder %s16, 3
      %p120 = pnand %p118, %p119
      %p121 = pneg %p120
      // Predicated region
      $region9: #{tpu_custom_call.1} parent=5 // pred_check
        _
      $region10: #{tpu_custom_call.1} parent=5 // pred_check_branch
        %123 = sbr.rel (%p120) target = $region12
      $region11: #{tpu_custom_call.1} parent=5 // pred_region
        %s124 = ssub.s32 %s16, 1
        // Predicated region
        $region13: #{tpu_custom_call.1} parent=11 // pred_check
          %p125 = pneg %p37
        $region14: #{tpu_custom_call.1} parent=11 // pred_check_branch
          %127 = sbr.rel (%p125) target = $region16
        $region15: #{tpu_custom_call.1} parent=11 // pred_region
          %s129 = ssub.s32 16, 16
          %130 = vsyncadd [#allocation5], %s129
          %s132 = sshll.u32 %s0, 4
          %s133 = int_to_ptr.vmem [resolvable:$true] %s132
          %135 = dma.vmem_to_smem %s133, 16, [#allocation2], [#allocation5]
        $region16: #{tpu_custom_call.1} parent=11 // pred_fallthru
          _
        // Predicated region
        $region17: #{tpu_custom_call.1} parent=11 // pred_check
          %p136 = pneg %p58
        $region18: #{tpu_custom_call.1} parent=11 // pred_check_branch
          %138 = sbr.rel (%p136) target = $region20
        $region19: #{tpu_custom_call.1} parent=11 // pred_region
          _
        $region20: #{tpu_custom_call.1} parent=11 // pred_fallthru
          _
      $region12: #{tpu_custom_call.1} parent=5 // pred_fallthru
        _
      %p139 = scmp.lt.s32.totalorder %s16, 2
      // Predicated region
      $region21: #{tpu_custom_call.1} parent=5 // pred_check
        %p140 = pneg %p139
      $region22: #{tpu_custom_call.1} parent=5 // pred_check_branch
        %142 = sbr.rel (%p140) target = $region24
      $region23: #{tpu_custom_call.1} parent=5 // pred_region
        // Predicated region
        $region25: #{tpu_custom_call.1} parent=23 // pred_check
          %p143 = pneg %p78
        $region26: #{tpu_custom_call.1} parent=23 // pred_check_branch
          %145 = sbr.rel (%p143) target = $region28
        $region27: #{tpu_custom_call.1} parent=23 // pred_region
          %s146 = sand.u32 %s68, 1
          %s147 = scalar_lea.sflag [#allocation3], %s146
          %s148 = sand.u32 %s68, 1
          %s149 = smul.addr %s148, 8
          %s150 = scalar_lea.vmem [#allocation6], %s149
          %s152 = ssub.s32 128, 128
          %153 = vsyncadd %s147, %s152
          %s154 = smul.addr %s16, 2
          %s155 = smul.addr %s154, 64
          %s156 = scalar_lea.hbm %s2, %s155
          %s158 = sshll.u32 %s150, 4
          %s159 = int_to_ptr.vmem [resolvable:$true] %s158
          %161 = dma.hbm_to_vmem [thread:$0]  %s156, 128, %s159, %s147
        $region28: #{tpu_custom_call.1} parent=23 // pred_fallthru
          _
      $region24: #{tpu_custom_call.1} parent=5 // pred_fallthru
        _
      %p162 = scmp.le.s32.totalorder 1, %s16
      %p163 = scmp.lt.s32.totalorder %s16, 3
      %p164 = pnand %p162, %p163
      %p165 = pneg %p164
      // Predicated region
      $region29: #{tpu_custom_call.1} parent=5 // pred_check
        _
      $region30: #{tpu_custom_call.1} parent=5 // pred_check_branch
        %167 = sbr.rel (%p164) target = $region32
      $region31: #{tpu_custom_call.1} parent=5 // pred_region
        %s168 = ssub.s32 %s16, 1
        // Predicated region
        $region33: #{tpu_custom_call.1} parent=31 // pred_check
          %p169 = pneg %p37
        $region34: #{tpu_custom_call.1} parent=31 // pred_check_branch
          %171 = sbr.rel (%p169) target = $region36
        $region35: #{tpu_custom_call.1} parent=31 // pred_region
          %172 = dma.done [#allocation5], 16
        $region36: #{tpu_custom_call.1} parent=31 // pred_fallthru
          _
        %s173 = sand.u32 %s71, 1
        %s174 = scalar_lea.sflag [#allocation3], %s173
        %s175 = sand.u32 %s71, 1
        %s176 = smul.addr %s175, 8
        %s177 = scalar_lea.vmem [#allocation6], %s176
        // Predicated region
        $region37: #{tpu_custom_call.1} parent=31 // pred_check
          %p178 = pneg %p84
        $region38: #{tpu_custom_call.1} parent=31 // pred_check_branch
          %180 = sbr.rel (%p178) target = $region40
        $region39: #{tpu_custom_call.1} parent=31 // pred_region
          %181 = dma.done %s174, 128
        $region40: #{tpu_custom_call.1} parent=31 // pred_fallthru
          _
        %182 = sfence
        %p183 = pneg %p37
        %p184 = pneg %p34
        %p185 = pneg %p58
        %p186 = pneg %p55
        %s187 = sand.u32 %s71, 1
        %s188 = scalar_lea.sflag [#allocation3], %s187
        %s189 = sand.u32 %s71, 1
        %s190 = smul.addr %s189, 8
        %s191 = scalar_lea.vmem [#allocation6], %s190
        %p192 = pneg %p84
        %p193 = pneg %p81
        %p194 = pneg %p110
        %p195 = pneg %p107
        %s196 = sand.u32 %s97, 1
        %s197 = scalar_lea.sflag [#allocation4], %s196
        %s198 = sand.u32 %s97, 1
        %s199 = smul.addr %s198, 8
        %s200 = scalar_lea.vmem [#allocation7], %s199
        %v201 = vld [vmem:[%s177] sm:$0xff]
        %v203 = vcombine.high %v201, %v201
        %vm205 = vcmask 1043456
        %v206 = vsel %vm205, %v201, -inf
        %v207 = vrot.slane %v206, 4
        %v208 = vmax.f32 %v206, %v207
        %v209 = vrot.slane %v208, 2
        %v210 = vmax.f32 %v208, %v209
        %v211 = vrot.slane %v210, 1
        %v212 = vmax.f32 %v210, %v211
        %v213 = vsel %vm205, %v203, -inf
        %v214 = vrot.slane %v213, 4
        %v215 = vmax.f32 %v213, %v214
        %v216 = vrot.slane %v215, 2
        %v217 = vmax.f32 %v215, %v216
        %v218 = vrot.slane %v217, 1
        %v219 = vmax.f32 %v217, %v218
        %v220 = vsel %vm205, %v201, 0.0
        %v221 = vrot.slane %v220, 4
        %v222 = vadd.f32 %v220, %v221
        %v223 = vrot.slane %v222, 2
        %v224 = vadd.f32 %v222, %v223
        %v225 = vrot.slane %v224, 1
        %v226 = vadd.f32 %v224, %v225
        %v227 = vsel %vm205, %v203, 0.0
        %v228 = vrot.slane %v227, 4
        %v229 = vadd.f32 %v227, %v228
        %v230 = vrot.slane %v229, 2
        %v231 = vadd.f32 %v229, %v230
        %v232 = vrot.slane %v231, 1
        %v233 = vadd.f32 %v231, %v232
        %v234 = vmul.f32 %v226, 0.25
        %v235 = vmul.f32 %v233, 0.25
        %vm236 = vcmask 1040384
        %v237 = vsel %vm236, %v212, %v234
        %v238 = vsel %vm236, %v219, %v235
        %v239 = vld [vmem:[%s1] ss:$2 sm:$0x3]
        %s240 = scalar_lea.vmem %s1, 1
        %v241 = vld [vmem:[%s240] ss:$2 sm:$0x3]
        %v242 = vadd.s32 %v239, 4294967293
        %vm243 = vcmp.ge.s32.totalorder %v242, 0
        %vm244 = vcmp.lt.s32.totalorder %v242, 16
        %vm245 = vmand %vm243, %vm244
        %v246 = vadd.s32 %v239, 4294967294
        %vm247 = vcmp.ge.s32.totalorder %v246, 0
        %vm248 = vcmp.lt.s32.totalorder %v246, 16
        %vm249 = vmand %vm247, %vm248
        %v250 = vadd.s32 %v239, 4294967295
        %vm251 = vcmp.ge.s32.totalorder %v250, 0
        %vm252 = vcmp.lt.s32.totalorder %v250, 16
        %vm253 = vmand %vm251, %vm252
        %vm254 = vcmp.ge.s32.totalorder %v239, 0
        %vm255 = vcmp.lt.s32.totalorder %v239, 16
        %vm256 = vmand %vm254, %vm255
        %v257 = vadd.s32 %v239, 1
        %vm258 = vcmp.ge.s32.totalorder %v257, 0
        %vm259 = vcmp.lt.s32.totalorder %v257, 16
        %vm260 = vmand %vm258, %vm259
        %v261 = vadd.s32 %v239, 2
        %vm262 = vcmp.ge.s32.totalorder %v261, 0
        %vm263 = vcmp.lt.s32.totalorder %v261, 16
        %vm264 = vmand %vm262, %vm263
        %v265 = vadd.s32 %v239, 3
        %vm266 = vcmp.ge.s32.totalorder %v265, 0
        %vm267 = vcmp.lt.s32.totalorder %v265, 16
        %vm268 = vmand %vm266, %vm267
        %v269 = vadd.s32 %v241, 4294967293
        %vm270 = vcmp.ge.s32.totalorder %v269, 0
        %vm271 = vcmp.lt.s32.totalorder %v269, 16
        %vm272 = vmand %vm270, %vm271
        %v273 = vadd.s32 %v241, 4294967294
        %vm274 = vcmp.ge.s32.totalorder %v273, 0
        %vm275 = vcmp.lt.s32.totalorder %v273, 16
        %vm276 = vmand %vm274, %vm275
        %v277 = vadd.s32 %v241, 4294967295
        %vm278 = vcmp.ge.s32.totalorder %v277, 0
        %vm279 = vcmp.lt.s32.totalorder %v277, 16
        %vm280 = vmand %vm278, %vm279
        %vm281 = vcmp.ge.s32.totalorder %v241, 0
        %vm282 = vcmp.lt.s32.totalorder %v241, 16
        %vm283 = vmand %vm281, %vm282
        %v284 = vadd.s32 %v241, 1
        %vm285 = vcmp.ge.s32.totalorder %v284, 0
        %vm286 = vcmp.lt.s32.totalorder %v284, 16
        %vm287 = vmand %vm285, %vm286
        %v288 = vadd.s32 %v241, 2
        %vm289 = vcmp.ge.s32.totalorder %v288, 0
        %vm290 = vcmp.lt.s32.totalorder %v288, 16
        %vm291 = vmand %vm289, %vm290
        %v292 = vadd.s32 %v241, 3
        %vm293 = vcmp.ge.s32.totalorder %v292, 0
        %vm294 = vcmp.lt.s32.totalorder %v292, 16
        %vm295 = vmand %vm293, %vm294
        %v296 = vlaneseq
        %v297 = vshrl.u32 %v296, 7
        %vm298 = vcmp.eq.s32.totalorder %v297, 0
        %299 = vrot.lane.b32.xlu0 %v237, 51
        %v300 = vpop.permute.xlu0 %299
        %301 = vrot.lane.b32.xlu0 %v238, 51
        %v302 = vpop.permute.xlu0 %301
        %v303 = vlaneseq
        %v304 = vand.u32 %v303, 127
        %vm305 = vcmp.lt.s32.totalorder %v304, 51
        %v306 = vsel %vm305, %v300, %v302
        %v307 = vsel %vm305, %v302, %v300
        %vm308 = vmand %vm245, %vm272
        %v309 = vsel %vm308, 1, 0
        %v310 = vlaneseq
        %v311 = vshrl.u32 %v310, 7
        %v312 = vsub.s32 0, %v311
        %v313 = vrot.slane %v309, %v312
        %v314 = vlaneseq
        %v315 = vshrl.u32 %v314, 7
        %v316 = vsub.s32 1, %v315
        %v317 = vrot.slane %v309, %v316
        %vm318 = vcmp.eq.s32.totalorder %v313, 1
        %vm319 = vcmp.eq.s32.totalorder %v317, 1
        %v320 = vsel %vm318, %v307, 0.0
        %v321 = vsel %vm319, %v306, 0.0
        %s322 = sld [smem:[#allocation2]]
        %s323 = sld [smem:[#allocation2 + $0x31]]
        %v324 = vstv %s322
        %v325 = vstv %s323
        %v326 = vsel %vm298, %v324, %v325
        %v327 = vmul.f32 %v326, %v320
        %v328 = vmul.f32 %v326, %v321
        %v329 = vadd.f32 %v327, 0.0
        %v330 = vadd.f32 %v328, 0.0
        %331 = vrot.lane.b32.xlu0 %v237, 50
        %v332 = vpop.permute.xlu0 %331
        %333 = vrot.lane.b32.xlu0 %v238, 50
        %v334 = vpop.permute.xlu0 %333
        %vm335 = vcmp.lt.s32.totalorder %v304, 50
        %v336 = vsel %vm335, %v332, %v334
        %v337 = vsel %vm335, %v334, %v332
        %vm338 = vmand %vm245, %vm276
        %v339 = vsel %vm338, 1, 0
        %v340 = vlaneseq
        %v341 = vshrl.u32 %v340, 7
        %v342 = vsub.s32 0, %v341
        %v343 = vrot.slane %v339, %v342
        %v344 = vlaneseq
        %v345 = vshrl.u32 %v344, 7
        %v346 = vsub.s32 1, %v345
        %v347 = vrot.slane %v339, %v346
        %vm348 = vcmp.eq.s32.totalorder %v343, 1
        %vm349 = vcmp.eq.s32.totalorder %v347, 1
        %v350 = vsel %vm348, %v337, 0.0
        %v351 = vsel %vm349, %v336, 0.0
        %s352 = sld [smem:[#allocation2 + $0x1]]
        %s353 = sld [smem:[#allocation2 + $0x32]]
        %v354 = vstv %s352
        %v355 = vstv %s353
        %v356 = vsel %vm298, %v354, %v355
        %v357 = vmul.f32 %v356, %v350
        %v358 = vmul.f32 %v356, %v351
        %v359 = vadd.f32 %v329, %v357
        %v360 = vadd.f32 %v330, %v358
        %361 = vrot.lane.b32.xlu0 %v237, 49
        %v362 = vpop.permute.xlu0 %361
        %363 = vrot.lane.b32.xlu0 %v238, 49
        %v364 = vpop.permute.xlu0 %363
        %vm365 = vcmp.lt.s32.totalorder %v304, 49
        %v366 = vsel %vm365, %v362, %v364
        %v367 = vsel %vm365, %v364, %v362
        %vm368 = vmand %vm245, %vm280
        %v369 = vsel %vm368, 1, 0
        %v370 = vlaneseq
        %v371 = vshrl.u32 %v370, 7
        %v372 = vsub.s32 0, %v371
        %v373 = vrot.slane %v369, %v372
        %v374 = vlaneseq
        %v375 = vshrl.u32 %v374, 7
        %v376 = vsub.s32 1, %v375
        %v377 = vrot.slane %v369, %v376
        %vm378 = vcmp.eq.s32.totalorder %v373, 1
        %vm379 = vcmp.eq.s32.totalorder %v377, 1
        %v380 = vsel %vm378, %v367, 0.0
        %v381 = vsel %vm379, %v366, 0.0
        %s382 = sld [smem:[#allocation2 + $0x2]]
        %s383 = sld [smem:[#allocation2 + $0x33]]
        %v384 = vstv %s382
        %v385 = vstv %s383
        %v386 = vsel %vm298, %v384, %v385
        %v387 = vmul.f32 %v386, %v380
        %v388 = vmul.f32 %v386, %v381
        %v389 = vadd.f32 %v359, %v387
        %v390 = vadd.f32 %v360, %v388
        %391 = vrot.lane.b32.xlu0 %v237, 48
        %v392 = vpop.permute.xlu0 %391
        %393 = vrot.lane.b32.xlu0 %v238, 48
        %v394 = vpop.permute.xlu0 %393
        %vm395 = vcmp.lt.s32.totalorder %v304, 48
        %v396 = vsel %vm395, %v392, %v394
        %v397 = vsel %vm395, %v394, %v392
        %vm398 = vmand %vm245, %vm283
        %v399 = vsel %vm398, 1, 0
        %v400 = vlaneseq
        %v401 = vshrl.u32 %v400, 7
        %v402 = vsub.s32 0, %v401
        %v403 = vrot.slane %v399, %v402
        %v404 = vlaneseq
        %v405 = vshrl.u32 %v404, 7
        %v406 = vsub.s32 1, %v405
        %v407 = vrot.slane %v399, %v406
        %vm408 = vcmp.eq.s32.totalorder %v403, 1
        %vm409 = vcmp.eq.s32.totalorder %v407, 1
        %v410 = vsel %vm408, %v397, 0.0
        %v411 = vsel %vm409, %v396, 0.0
        %s412 = sld [smem:[#allocation2 + $0x3]]
        %s413 = sld [smem:[#allocation2 + $0x34]]
        %v414 = vstv %s412
        %v415 = vstv %s413
        %v416 = vsel %vm298, %v414, %v415
        %v417 = vmul.f32 %v416, %v410
        %v418 = vmul.f32 %v416, %v411
        %v419 = vadd.f32 %v389, %v417
        %v420 = vadd.f32 %v390, %v418
        %421 = vrot.lane.b32.xlu0 %v237, 47
        %v422 = vpop.permute.xlu0 %421
        %423 = vrot.lane.b32.xlu0 %v238, 47
        %v424 = vpop.permute.xlu0 %423
        %vm425 = vcmp.lt.s32.totalorder %v304, 47
        %v426 = vsel %vm425, %v422, %v424
        %v427 = vsel %vm425, %v424, %v422
        %vm428 = vmand %vm245, %vm287
        %v429 = vsel %vm428, 1, 0
        %v430 = vlaneseq
        %v431 = vshrl.u32 %v430, 7
        %v432 = vsub.s32 0, %v431
        %v433 = vrot.slane %v429, %v432
        %v434 = vlaneseq
        %v435 = vshrl.u32 %v434, 7
        %v436 = vsub.s32 1, %v435
        %v437 = vrot.slane %v429, %v436
        %vm438 = vcmp.eq.s32.totalorder %v433, 1
        %vm439 = vcmp.eq.s32.totalorder %v437, 1
        %v440 = vsel %vm438, %v427, 0.0
        %v441 = vsel %vm439, %v426, 0.0
        %s442 = sld [smem:[#allocation2 + $0x4]]
        %s443 = sld [smem:[#allocation2 + $0x35]]
        %v444 = vstv %s442
        %v445 = vstv %s443
        %v446 = vsel %vm298, %v444, %v445
        %v447 = vmul.f32 %v446, %v440
        %v448 = vmul.f32 %v446, %v441
        %v449 = vadd.f32 %v419, %v447
        %v450 = vadd.f32 %v420, %v448
        %451 = vrot.lane.b32.xlu0 %v237, 46
        %v452 = vpop.permute.xlu0 %451
        %453 = vrot.lane.b32.xlu0 %v238, 46
        %v454 = vpop.permute.xlu0 %453
        %vm455 = vcmp.lt.s32.totalorder %v304, 46
        %v456 = vsel %vm455, %v452, %v454
        %v457 = vsel %vm455, %v454, %v452
        %vm458 = vmand %vm245, %vm291
        %v459 = vsel %vm458, 1, 0
        %v460 = vlaneseq
        %v461 = vshrl.u32 %v460, 7
        %v462 = vsub.s32 0, %v461
        %v463 = vrot.slane %v459, %v462
        %v464 = vlaneseq
        %v465 = vshrl.u32 %v464, 7
        %v466 = vsub.s32 1, %v465
        %v467 = vrot.slane %v459, %v466
        %vm468 = vcmp.eq.s32.totalorder %v463, 1
        %vm469 = vcmp.eq.s32.totalorder %v467, 1
        %v470 = vsel %vm468, %v457, 0.0
        %v471 = vsel %vm469, %v456, 0.0
        %s472 = sld [smem:[#allocation2 + $0x5]]
        %s473 = sld [smem:[#allocation2 + $0x36]]
        %v474 = vstv %s472
        %v475 = vstv %s473
        %v476 = vsel %vm298, %v474, %v475
        %v477 = vmul.f32 %v476, %v470
        %v478 = vmul.f32 %v476, %v471
        %v479 = vadd.f32 %v449, %v477
        %v480 = vadd.f32 %v450, %v478
        %481 = vrot.lane.b32.xlu0 %v237, 45
        %v482 = vpop.permute.xlu0 %481
        %483 = vrot.lane.b32.xlu0 %v238, 45
        %v484 = vpop.permute.xlu0 %483
        %vm485 = vcmp.lt.s32.totalorder %v304, 45
        %v486 = vsel %vm485, %v482, %v484
        %v487 = vsel %vm485, %v484, %v482
        %vm488 = vmand %vm245, %vm295
        %v489 = vsel %vm488, 1, 0
        %v490 = vlaneseq
        %v491 = vshrl.u32 %v490, 7
        %v492 = vsub.s32 0, %v491
        %v493 = vrot.slane %v489, %v492
        %v494 = vlaneseq
        %v495 = vshrl.u32 %v494, 7
        %v496 = vsub.s32 1, %v495
        %v497 = vrot.slane %v489, %v496
        %vm498 = vcmp.eq.s32.totalorder %v493, 1
        %vm499 = vcmp.eq.s32.totalorder %v497, 1
        %v500 = vsel %vm498, %v487, 0.0
        %v501 = vsel %vm499, %v486, 0.0
        %s502 = sld [smem:[#allocation2 + $0x6]]
        %s503 = sld [smem:[#allocation2 + $0x37]]
        %v504 = vstv %s502
        %v505 = vstv %s503
        %v506 = vsel %vm298, %v504, %v505
        %v507 = vmul.f32 %v506, %v500
        %v508 = vmul.f32 %v506, %v501
        %v509 = vadd.f32 %v479, %v507
        %v510 = vadd.f32 %v480, %v508
        %511 = vrot.lane.b32.xlu0 %v237, 35
        %v512 = vpop.permute.xlu0 %511
        %513 = vrot.lane.b32.xlu0 %v238, 35
        %v514 = vpop.permute.xlu0 %513
        %vm515 = vcmp.lt.s32.totalorder %v304, 35
        %v516 = vsel %vm515, %v512, %v514
        %v517 = vsel %vm515, %v514, %v512
        %vm518 = vmand %vm249, %vm272
        %v519 = vsel %vm518, 1, 0
        %v520 = vlaneseq
        %v521 = vshrl.u32 %v520, 7
        %v522 = vsub.s32 0, %v521
        %v523 = vrot.slane %v519, %v522
        %v524 = vlaneseq
        %v525 = vshrl.u32 %v524, 7
        %v526 = vsub.s32 1, %v525
        %v527 = vrot.slane %v519, %v526
        %vm528 = vcmp.eq.s32.totalorder %v523, 1
        %vm529 = vcmp.eq.s32.totalorder %v527, 1
        %v530 = vsel %vm528, %v517, 0.0
        %v531 = vsel %vm529, %v516, 0.0
        %s532 = sld [smem:[#allocation2 + $0x7]]
        %s533 = sld [smem:[#allocation2 + $0x38]]
        %v534 = vstv %s532
        %v535 = vstv %s533
        %v536 = vsel %vm298, %v534, %v535
        %v537 = vmul.f32 %v536, %v530
        %v538 = vmul.f32 %v536, %v531
        %v539 = vadd.f32 %v509, %v537
        %v540 = vadd.f32 %v510, %v538
        %541 = vrot.lane.b32.xlu0 %v237, 34
        %v542 = vpop.permute.xlu0 %541
        %543 = vrot.lane.b32.xlu0 %v238, 34
        %v544 = vpop.permute.xlu0 %543
        %vm545 = vcmp.lt.s32.totalorder %v304, 34
        %v546 = vsel %vm545, %v542, %v544
        %v547 = vsel %vm545, %v544, %v542
        %vm548 = vmand %vm249, %vm276
        %v549 = vsel %vm548, 1, 0
        %v550 = vlaneseq
        %v551 = vshrl.u32 %v550, 7
        %v552 = vsub.s32 0, %v551
        %v553 = vrot.slane %v549, %v552
        %v554 = vlaneseq
        %v555 = vshrl.u32 %v554, 7
        %v556 = vsub.s32 1, %v555
        %v557 = vrot.slane %v549, %v556
        %vm558 = vcmp.eq.s32.totalorder %v553, 1
        %vm559 = vcmp.eq.s32.totalorder %v557, 1
        %v560 = vsel %vm558, %v547, 0.0
        %v561 = vsel %vm559, %v546, 0.0
        %s562 = sld [smem:[#allocation2 + $0x8]]
        %s563 = sld [smem:[#allocation2 + $0x39]]
        %v564 = vstv %s562
        %v565 = vstv %s563
        %v566 = vsel %vm298, %v564, %v565
        %v567 = vmul.f32 %v566, %v560
        %v568 = vmul.f32 %v566, %v561
        %v569 = vadd.f32 %v539, %v567
        %v570 = vadd.f32 %v540, %v568
        %571 = vrot.lane.b32.xlu0 %v237, 33
        %v572 = vpop.permute.xlu0 %571
        %573 = vrot.lane.b32.xlu0 %v238, 33
        %v574 = vpop.permute.xlu0 %573
        %vm575 = vcmp.lt.s32.totalorder %v304, 33
        %v576 = vsel %vm575, %v572, %v574
        %v577 = vsel %vm575, %v574, %v572
        %vm578 = vmand %vm249, %vm280
        %v579 = vsel %vm578, 1, 0
        %v580 = vlaneseq
        %v581 = vshrl.u32 %v580, 7
        %v582 = vsub.s32 0, %v581
        %v583 = vrot.slane %v579, %v582
        %v584 = vlaneseq
        %v585 = vshrl.u32 %v584, 7
        %v586 = vsub.s32 1, %v585
        %v587 = vrot.slane %v579, %v586
        %vm588 = vcmp.eq.s32.totalorder %v583, 1
        %vm589 = vcmp.eq.s32.totalorder %v587, 1
        %v590 = vsel %vm588, %v577, 0.0
        %v591 = vsel %vm589, %v576, 0.0
        %s592 = sld [smem:[#allocation2 + $0x9]]
        %s593 = sld [smem:[#allocation2 + $0x3a]]
        %v594 = vstv %s592
        %v595 = vstv %s593
        %v596 = vsel %vm298, %v594, %v595
        %v597 = vmul.f32 %v596, %v590
        %v598 = vmul.f32 %v596, %v591
        %v599 = vadd.f32 %v569, %v597
        %v600 = vadd.f32 %v570, %v598
        %601 = vrot.lane.b32.xlu0 %v237, 32
        %v602 = vpop.permute.xlu0 %601
        %603 = vrot.lane.b32.xlu0 %v238, 32
        %v604 = vpop.permute.xlu0 %603
        %vm605 = vcmp.lt.s32.totalorder %v304, 32
        %v606 = vsel %vm605, %v602, %v604
        %v607 = vsel %vm605, %v604, %v602
        %vm608 = vmand %vm249, %vm283
        %v609 = vsel %vm608, 1, 0
        %v610 = vlaneseq
        %v611 = vshrl.u32 %v610, 7
        %v612 = vsub.s32 0, %v611
        %v613 = vrot.slane %v609, %v612
        %v614 = vlaneseq
        %v615 = vshrl.u32 %v614, 7
        %v616 = vsub.s32 1, %v615
        %v617 = vrot.slane %v609, %v616
        %vm618 = vcmp.eq.s32.totalorder %v613, 1
        %vm619 = vcmp.eq.s32.totalorder %v617, 1
        %v620 = vsel %vm618, %v607, 0.0
        %v621 = vsel %vm619, %v606, 0.0
        %s622 = sld [smem:[#allocation2 + $0xa]]
        %s623 = sld [smem:[#allocation2 + $0x3b]]
        %v624 = vstv %s622
        %v625 = vstv %s623
        %v626 = vsel %vm298, %v624, %v625
        %v627 = vmul.f32 %v626, %v620
        %v628 = vmul.f32 %v626, %v621
        %v629 = vadd.f32 %v599, %v627
        %v630 = vadd.f32 %v600, %v628
        %631 = vrot.lane.b32.xlu0 %v237, 31
        %v632 = vpop.permute.xlu0 %631
        %633 = vrot.lane.b32.xlu0 %v238, 31
        %v634 = vpop.permute.xlu0 %633
        %vm635 = vcmp.lt.s32.totalorder %v304, 31
        %v636 = vsel %vm635, %v632, %v634
        %v637 = vsel %vm635, %v634, %v632
        %vm638 = vmand %vm249, %vm287
        %v639 = vsel %vm638, 1, 0
        %v640 = vlaneseq
        %v641 = vshrl.u32 %v640, 7
        %v642 = vsub.s32 0, %v641
        %v643 = vrot.slane %v639, %v642
        %v644 = vlaneseq
        %v645 = vshrl.u32 %v644, 7
        %v646 = vsub.s32 1, %v645
        %v647 = vrot.slane %v639, %v646
        %vm648 = vcmp.eq.s32.totalorder %v643, 1
        %vm649 = vcmp.eq.s32.totalorder %v647, 1
        %v650 = vsel %vm648, %v637, 0.0
        %v651 = vsel %vm649, %v636, 0.0
        %s652 = sld [smem:[#allocation2 + $0xb]]
        %s653 = sld [smem:[#allocation2 + $0x3c]]
        %v654 = vstv %s652
        %v655 = vstv %s653
        %v656 = vsel %vm298, %v654, %v655
        %v657 = vmul.f32 %v656, %v650
        %v658 = vmul.f32 %v656, %v651
        %v659 = vadd.f32 %v629, %v657
        %v660 = vadd.f32 %v630, %v658
        %661 = vrot.lane.b32.xlu0 %v237, 30
        %v662 = vpop.permute.xlu0 %661
        %663 = vrot.lane.b32.xlu0 %v238, 30
        %v664 = vpop.permute.xlu0 %663
        %vm665 = vcmp.lt.s32.totalorder %v304, 30
        %v666 = vsel %vm665, %v662, %v664
        %v667 = vsel %vm665, %v664, %v662
        %vm668 = vmand %vm249, %vm291
        %v669 = vsel %vm668, 1, 0
        %v670 = vlaneseq
        %v671 = vshrl.u32 %v670, 7
        %v672 = vsub.s32 0, %v671
        %v673 = vrot.slane %v669, %v672
        %v674 = vlaneseq
        %v675 = vshrl.u32 %v674, 7
        %v676 = vsub.s32 1, %v675
        %v677 = vrot.slane %v669, %v676
        %vm678 = vcmp.eq.s32.totalorder %v673, 1
        %vm679 = vcmp.eq.s32.totalorder %v677, 1
        %v680 = vsel %vm678, %v667, 0.0
        %v681 = vsel %vm679, %v666, 0.0
        %s682 = sld [smem:[#allocation2 + $0xc]]
        %s683 = sld [smem:[#allocation2 + $0x3d]]
        %v684 = vstv %s682
        %v685 = vstv %s683
        %v686 = vsel %vm298, %v684, %v685
        %v687 = vmul.f32 %v686, %v680
        %v688 = vmul.f32 %v686, %v681
        %v689 = vadd.f32 %v659, %v687
        %v690 = vadd.f32 %v660, %v688
        %691 = vrot.lane.b32.xlu0 %v237, 29
        %v692 = vpop.permute.xlu0 %691
        %693 = vrot.lane.b32.xlu0 %v238, 29
        %v694 = vpop.permute.xlu0 %693
        %vm695 = vcmp.lt.s32.totalorder %v304, 29
        %v696 = vsel %vm695, %v692, %v694
        %v697 = vsel %vm695, %v694, %v692
        %vm698 = vmand %vm249, %vm295
        %v699 = vsel %vm698, 1, 0
        %v700 = vlaneseq
        %v701 = vshrl.u32 %v700, 7
        %v702 = vsub.s32 0, %v701
        %v703 = vrot.slane %v699, %v702
        %v704 = vlaneseq
        %v705 = vshrl.u32 %v704, 7
        %v706 = vsub.s32 1, %v705
        %v707 = vrot.slane %v699, %v706
        %vm708 = vcmp.eq.s32.totalorder %v703, 1
        %vm709 = vcmp.eq.s32.totalorder %v707, 1
        %v710 = vsel %vm708, %v697, 0.0
        %v711 = vsel %vm709, %v696, 0.0
        %s712 = sld [smem:[#allocation2 + $0xd]]
        %s713 = sld [smem:[#allocation2 + $0x3e]]
        %v714 = vstv %s712
        %v715 = vstv %s713
        %v716 = vsel %vm298, %v714, %v715
        %v717 = vmul.f32 %v716, %v710
        %v718 = vmul.f32 %v716, %v711
        %v719 = vadd.f32 %v689, %v717
        %v720 = vadd.f32 %v690, %v718
        %721 = vrot.lane.b32.xlu0 %v237, 19
        %v722 = vpop.permute.xlu0 %721
        %723 = vrot.lane.b32.xlu0 %v238, 19
        %v724 = vpop.permute.xlu0 %723
        %vm725 = vcmp.lt.s32.totalorder %v304, 19
        %v726 = vsel %vm725, %v722, %v724
        %v727 = vsel %vm725, %v724, %v722
        %vm728 = vmand %vm253, %vm272
        %v729 = vsel %vm728, 1, 0
        %v730 = vlaneseq
        %v731 = vshrl.u32 %v730, 7
        %v732 = vsub.s32 0, %v731
        %v733 = vrot.slane %v729, %v732
        %v734 = vlaneseq
        %v735 = vshrl.u32 %v734, 7
        %v736 = vsub.s32 1, %v735
        %v737 = vrot.slane %v729, %v736
        %vm738 = vcmp.eq.s32.totalorder %v733, 1
        %vm739 = vcmp.eq.s32.totalorder %v737, 1
        %v740 = vsel %vm738, %v727, 0.0
        %v741 = vsel %vm739, %v726, 0.0
        %s742 = sld [smem:[#allocation2 + $0xe]]
        %s743 = sld [smem:[#allocation2 + $0x3f]]
        %v744 = vstv %s742
        %v745 = vstv %s743
        %v746 = vsel %vm298, %v744, %v745
        %v747 = vmul.f32 %v746, %v740
        %v748 = vmul.f32 %v746, %v741
        %v749 = vadd.f32 %v719, %v747
        %v750 = vadd.f32 %v720, %v748
        %751 = vrot.lane.b32.xlu0 %v237, 18
        %v752 = vpop.permute.xlu0 %751
        %753 = vrot.lane.b32.xlu0 %v238, 18
        %v754 = vpop.permute.xlu0 %753
        %vm755 = vcmp.lt.s32.totalorder %v304, 18
        %v756 = vsel %vm755, %v752, %v754
        %v757 = vsel %vm755, %v754, %v752
        %vm758 = vmand %vm253, %vm276
        %v759 = vsel %vm758, 1, 0
        %v760 = vlaneseq
        %v761 = vshrl.u32 %v760, 7
        %v762 = vsub.s32 0, %v761
        %v763 = vrot.slane %v759, %v762
        %v764 = vlaneseq
        %v765 = vshrl.u32 %v764, 7
        %v766 = vsub.s32 1, %v765
        %v767 = vrot.slane %v759, %v766
        %vm768 = vcmp.eq.s32.totalorder %v763, 1
        %vm769 = vcmp.eq.s32.totalorder %v767, 1
        %v770 = vsel %vm768, %v757, 0.0
        %v771 = vsel %vm769, %v756, 0.0
        %s772 = sld [smem:[#allocation2 + $0xf]]
        %s773 = sld [smem:[#allocation2 + $0x40]]
        %v774 = vstv %s772
        %v775 = vstv %s773
        %v776 = vsel %vm298, %v774, %v775
        %v777 = vmul.f32 %v776, %v770
        %v778 = vmul.f32 %v776, %v771
        %v779 = vadd.f32 %v749, %v777
        %v780 = vadd.f32 %v750, %v778
        %781 = vrot.lane.b32.xlu0 %v237, 17
        %v782 = vpop.permute.xlu0 %781
        %783 = vrot.lane.b32.xlu0 %v238, 17
        %v784 = vpop.permute.xlu0 %783
        %vm785 = vcmp.lt.s32.totalorder %v304, 17
        %v786 = vsel %vm785, %v782, %v784
        %v787 = vsel %vm785, %v784, %v782
        %vm788 = vmand %vm253, %vm280
        %v789 = vsel %vm788, 1, 0
        %v790 = vlaneseq
        %v791 = vshrl.u32 %v790, 7
        %v792 = vsub.s32 0, %v791
        %v793 = vrot.slane %v789, %v792
        %v794 = vlaneseq
        %v795 = vshrl.u32 %v794, 7
        %v796 = vsub.s32 1, %v795
        %v797 = vrot.slane %v789, %v796
        %vm798 = vcmp.eq.s32.totalorder %v793, 1
        %vm799 = vcmp.eq.s32.totalorder %v797, 1
        %v800 = vsel %vm798, %v787, 0.0
        %v801 = vsel %vm799, %v786, 0.0
        %s802 = sld [smem:[#allocation2 + $0x10]]
        %s803 = sld [smem:[#allocation2 + $0x41]]
        %v804 = vstv %s802
        %v805 = vstv %s803
        %v806 = vsel %vm298, %v804, %v805
        %v807 = vmul.f32 %v806, %v800
        %v808 = vmul.f32 %v806, %v801
        %v809 = vadd.f32 %v779, %v807
        %v810 = vadd.f32 %v780, %v808
        %811 = vrot.lane.b32.xlu0 %v237, 16
        %v812 = vpop.permute.xlu0 %811
        %813 = vrot.lane.b32.xlu0 %v238, 16
        %v814 = vpop.permute.xlu0 %813
        %vm815 = vcmp.lt.s32.totalorder %v304, 16
        %v816 = vsel %vm815, %v812, %v814
        %v817 = vsel %vm815, %v814, %v812
        %vm818 = vmand %vm253, %vm283
        %v819 = vsel %vm818, 1, 0
        %v820 = vlaneseq
        %v821 = vshrl.u32 %v820, 7
        %v822 = vsub.s32 0, %v821
        %v823 = vrot.slane %v819, %v822
        %v824 = vlaneseq
        %v825 = vshrl.u32 %v824, 7
        %v826 = vsub.s32 1, %v825
        %v827 = vrot.slane %v819, %v826
        %vm828 = vcmp.eq.s32.totalorder %v823, 1
        %vm829 = vcmp.eq.s32.totalorder %v827, 1
        %v830 = vsel %vm828, %v817, 0.0
        %v831 = vsel %vm829, %v816, 0.0
        %s832 = sld [smem:[#allocation2 + $0x11]]
        %s833 = sld [smem:[#allocation2 + $0x42]]
        %v834 = vstv %s832
        %v835 = vstv %s833
        %v836 = vsel %vm298, %v834, %v835
        %v837 = vmul.f32 %v836, %v830
        %v838 = vmul.f32 %v836, %v831
        %v839 = vadd.f32 %v809, %v837
        %v840 = vadd.f32 %v810, %v838
        %841 = vrot.lane.b32.xlu0 %v237, 15
        %v842 = vpop.permute.xlu0 %841
        %843 = vrot.lane.b32.xlu0 %v238, 15
        %v844 = vpop.permute.xlu0 %843
        %vm845 = vcmp.lt.s32.totalorder %v304, 15
        %v846 = vsel %vm845, %v842, %v844
        %v847 = vsel %vm845, %v844, %v842
        %vm848 = vmand %vm253, %vm287
        %v849 = vsel %vm848, 1, 0
        %v850 = vlaneseq
        %v851 = vshrl.u32 %v850, 7
        %v852 = vsub.s32 0, %v851
        %v853 = vrot.slane %v849, %v852
        %v854 = vlaneseq
        %v855 = vshrl.u32 %v854, 7
        %v856 = vsub.s32 1, %v855
        %v857 = vrot.slane %v849, %v856
        %vm858 = vcmp.eq.s32.totalorder %v853, 1
        %vm859 = vcmp.eq.s32.totalorder %v857, 1
        %v860 = vsel %vm858, %v847, 0.0
        %v861 = vsel %vm859, %v846, 0.0
        %s862 = sld [smem:[#allocation2 + $0x12]]
        %s863 = sld [smem:[#allocation2 + $0x43]]
        %v864 = vstv %s862
        %v865 = vstv %s863
        %v866 = vsel %vm298, %v864, %v865
        %v867 = vmul.f32 %v866, %v860
        %v868 = vmul.f32 %v866, %v861
        %v869 = vadd.f32 %v839, %v867
        %v870 = vadd.f32 %v840, %v868
        %871 = vrot.lane.b32.xlu0 %v237, 14
        %v872 = vpop.permute.xlu0 %871
        %873 = vrot.lane.b32.xlu0 %v238, 14
        %v874 = vpop.permute.xlu0 %873
        %vm875 = vcmp.lt.s32.totalorder %v304, 14
        %v876 = vsel %vm875, %v872, %v874
        %v877 = vsel %vm875, %v874, %v872
        %vm878 = vmand %vm253, %vm291
        %v879 = vsel %vm878, 1, 0
        %v880 = vlaneseq
        %v881 = vshrl.u32 %v880, 7
        %v882 = vsub.s32 0, %v881
        %v883 = vrot.slane %v879, %v882
        %v884 = vlaneseq
        %v885 = vshrl.u32 %v884, 7
        %v886 = vsub.s32 1, %v885
        %v887 = vrot.slane %v879, %v886
        %vm888 = vcmp.eq.s32.totalorder %v883, 1
        %vm889 = vcmp.eq.s32.totalorder %v887, 1
        %v890 = vsel %vm888, %v877, 0.0
        %v891 = vsel %vm889, %v876, 0.0
        %s892 = sld [smem:[#allocation2 + $0x13]]
        %s893 = sld [smem:[#allocation2 + $0x44]]
        %v894 = vstv %s892
        %v895 = vstv %s893
        %v896 = vsel %vm298, %v894, %v895
        %v897 = vmul.f32 %v896, %v890
        %v898 = vmul.f32 %v896, %v891
        %v899 = vadd.f32 %v869, %v897
        %v900 = vadd.f32 %v870, %v898
        %901 = vrot.lane.b32.xlu0 %v237, 13
        %v902 = vpop.permute.xlu0 %901
        %903 = vrot.lane.b32.xlu0 %v238, 13
        %v904 = vpop.permute.xlu0 %903
        %vm905 = vcmp.lt.s32.totalorder %v304, 13
        %v906 = vsel %vm905, %v902, %v904
        %v907 = vsel %vm905, %v904, %v902
        %vm908 = vmand %vm253, %vm295
        %v909 = vsel %vm908, 1, 0
        %v910 = vlaneseq
        %v911 = vshrl.u32 %v910, 7
        %v912 = vsub.s32 0, %v911
        %v913 = vrot.slane %v909, %v912
        %v914 = vlaneseq
        %v915 = vshrl.u32 %v914, 7
        %v916 = vsub.s32 1, %v915
        %v917 = vrot.slane %v909, %v916
        %vm918 = vcmp.eq.s32.totalorder %v913, 1
        %vm919 = vcmp.eq.s32.totalorder %v917, 1
        %v920 = vsel %vm918, %v907, 0.0
        %v921 = vsel %vm919, %v906, 0.0
        %s922 = sld [smem:[#allocation2 + $0x14]]
        %s923 = sld [smem:[#allocation2 + $0x45]]
        %v924 = vstv %s922
        %v925 = vstv %s923
        %v926 = vsel %vm298, %v924, %v925
        %v927 = vmul.f32 %v926, %v920
        %v928 = vmul.f32 %v926, %v921
        %v929 = vadd.f32 %v899, %v927
        %v930 = vadd.f32 %v900, %v928
        %931 = vrot.lane.b32.xlu0 %v237, 3
        %v932 = vpop.permute.xlu0 %931
        %933 = vrot.lane.b32.xlu0 %v238, 3
        %v934 = vpop.permute.xlu0 %933
        %vm935 = vcmp.lt.s32.totalorder %v304, 3
        %v936 = vsel %vm935, %v932, %v934
        %v937 = vsel %vm935, %v934, %v932
        %vm938 = vmand %vm256, %vm272
        %v939 = vsel %vm938, 1, 0
        %v940 = vlaneseq
        %v941 = vshrl.u32 %v940, 7
        %v942 = vsub.s32 0, %v941
        %v943 = vrot.slane %v939, %v942
        %v944 = vlaneseq
        %v945 = vshrl.u32 %v944, 7
        %v946 = vsub.s32 1, %v945
        %v947 = vrot.slane %v939, %v946
        %vm948 = vcmp.eq.s32.totalorder %v943, 1
        %vm949 = vcmp.eq.s32.totalorder %v947, 1
        %v950 = vsel %vm948, %v937, 0.0
        %v951 = vsel %vm949, %v936, 0.0
        %s952 = sld [smem:[#allocation2 + $0x15]]
        %s953 = sld [smem:[#allocation2 + $0x46]]
        %v954 = vstv %s952
        %v955 = vstv %s953
        %v956 = vsel %vm298, %v954, %v955
        %v957 = vmul.f32 %v956, %v950
        %v958 = vmul.f32 %v956, %v951
        %v959 = vadd.f32 %v929, %v957
        %v960 = vadd.f32 %v930, %v958
        %961 = vrot.lane.b32.xlu0 %v237, 2
        %v962 = vpop.permute.xlu0 %961
        %963 = vrot.lane.b32.xlu0 %v238, 2
        %v964 = vpop.permute.xlu0 %963
        %vm965 = vcmp.lt.s32.totalorder %v304, 2
        %v966 = vsel %vm965, %v962, %v964
        %v967 = vsel %vm965, %v964, %v962
        %vm968 = vmand %vm256, %vm276
        %v969 = vsel %vm968, 1, 0
        %v970 = vlaneseq
        %v971 = vshrl.u32 %v970, 7
        %v972 = vsub.s32 0, %v971
        %v973 = vrot.slane %v969, %v972
        %v974 = vlaneseq
        %v975 = vshrl.u32 %v974, 7
        %v976 = vsub.s32 1, %v975
        %v977 = vrot.slane %v969, %v976
        %vm978 = vcmp.eq.s32.totalorder %v973, 1
        %vm979 = vcmp.eq.s32.totalorder %v977, 1
        %v980 = vsel %vm978, %v967, 0.0
        %v981 = vsel %vm979, %v966, 0.0
        %s982 = sld [smem:[#allocation2 + $0x16]]
        %s983 = sld [smem:[#allocation2 + $0x47]]
        %v984 = vstv %s982
        %v985 = vstv %s983
        %v986 = vsel %vm298, %v984, %v985
        %v987 = vmul.f32 %v986, %v980
        %v988 = vmul.f32 %v986, %v981
        %v989 = vadd.f32 %v959, %v987
        %v990 = vadd.f32 %v960, %v988
        %991 = vrot.lane.b32.xlu0 %v237, 1
        %v992 = vpop.permute.xlu0 %991
        %993 = vrot.lane.b32.xlu0 %v238, 1
        %v994 = vpop.permute.xlu0 %993
        %vm995 = vcmp.lt.s32.totalorder %v304, 1
        %v996 = vsel %vm995, %v992, %v994
        %v997 = vsel %vm995, %v994, %v992
        %vm998 = vmand %vm256, %vm280
        %v999 = vsel %vm998, 1, 0
        %v1000 = vlaneseq
        %v1001 = vshrl.u32 %v1000, 7
        %v1002 = vsub.s32 0, %v1001
        %v1003 = vrot.slane %v999, %v1002
        %v1004 = vlaneseq
        %v1005 = vshrl.u32 %v1004, 7
        %v1006 = vsub.s32 1, %v1005
        %v1007 = vrot.slane %v999, %v1006
        %vm1008 = vcmp.eq.s32.totalorder %v1003, 1
        %vm1009 = vcmp.eq.s32.totalorder %v1007, 1
        %v1010 = vsel %vm1008, %v997, 0.0
        %v1011 = vsel %vm1009, %v996, 0.0
        %s1012 = sld [smem:[#allocation2 + $0x17]]
        %s1013 = sld [smem:[#allocation2 + $0x48]]
        %v1014 = vstv %s1012
        %v1015 = vstv %s1013
        %v1016 = vsel %vm298, %v1014, %v1015
        %v1017 = vmul.f32 %v1016, %v1010
        %v1018 = vmul.f32 %v1016, %v1011
        %v1019 = vadd.f32 %v989, %v1017
        %v1020 = vadd.f32 %v990, %v1018
        %vm1021 = vmand %vm256, %vm283
        %v1022 = vsel %vm1021, 1, 0
        %v1023 = vlaneseq
        %v1024 = vshrl.u32 %v1023, 7
        %v1025 = vsub.s32 0, %v1024
        %v1026 = vrot.slane %v1022, %v1025
        %v1027 = vlaneseq
        %v1028 = vshrl.u32 %v1027, 7
        %v1029 = vsub.s32 1, %v1028
        %v1030 = vrot.slane %v1022, %v1029
        %vm1031 = vcmp.eq.s32.totalorder %v1026, 1
        %vm1032 = vcmp.eq.s32.totalorder %v1030, 1
        %v1033 = vsel %vm1031, %v237, 0.0
        %v1034 = vsel %vm1032, %v238, 0.0
        %s1035 = sld [smem:[#allocation2 + $0x18]]
        %s1036 = sld [smem:[#allocation2 + $0x49]]
        %v1037 = vstv %s1035
        %v1038 = vstv %s1036
        %v1039 = vsel %vm298, %v1037, %v1038
        %v1040 = vmul.f32 %v1039, %v1033
        %v1041 = vmul.f32 %v1039, %v1034
        %v1042 = vadd.f32 %v1019, %v1040
        %v1043 = vadd.f32 %v1020, %v1041
        %1044 = vrot.lane.b32.xlu0 %v237, 127
        %v1045 = vpop.permute.xlu0 %1044
        %1046 = vrot.lane.b32.xlu0 %v238, 127
        %v1047 = vpop.permute.xlu0 %1046
        %vm1048 = vcmp.lt.s32.totalorder %v304, 127
        %v1049 = vsel %vm1048, %v1045, %v1047
        %v1050 = vsel %vm1048, %v1047, %v1045
        %vm1051 = vmand %vm256, %vm287
        %v1052 = vsel %vm1051, 1, 0
        %v1053 = vlaneseq
        %v1054 = vshrl.u32 %v1053, 7
        %v1055 = vsub.s32 0, %v1054
        %v1056 = vrot.slane %v1052, %v1055
        %v1057 = vlaneseq
        %v1058 = vshrl.u32 %v1057, 7
        %v1059 = vsub.s32 1, %v1058
        %v1060 = vrot.slane %v1052, %v1059
        %vm1061 = vcmp.eq.s32.totalorder %v1056, 1
        %vm1062 = vcmp.eq.s32.totalorder %v1060, 1
        %v1063 = vsel %vm1061, %v1049, 0.0
        %v1064 = vsel %vm1062, %v1050, 0.0
        %s1065 = sld [smem:[#allocation2 + $0x19]]
        %s1066 = sld [smem:[#allocation2 + $0x4a]]
        %v1067 = vstv %s1065
        %v1068 = vstv %s1066
        %v1069 = vsel %vm298, %v1067, %v1068
        %v1070 = vmul.f32 %v1069, %v1063
        %v1071 = vmul.f32 %v1069, %v1064
        %v1072 = vadd.f32 %v1042, %v1070
        %v1073 = vadd.f32 %v1043, %v1071
        %1074 = vrot.lane.b32.xlu0 %v237, 126
        %v1075 = vpop.permute.xlu0 %1074
        %1076 = vrot.lane.b32.xlu0 %v238, 126
        %v1077 = vpop.permute.xlu0 %1076
        %vm1078 = vcmp.lt.s32.totalorder %v304, 126
        %v1079 = vsel %vm1078, %v1075, %v1077
        %v1080 = vsel %vm1078, %v1077, %v1075
        %vm1081 = vmand %vm256, %vm291
        %v1082 = vsel %vm1081, 1, 0
        %v1083 = vlaneseq
        %v1084 = vshrl.u32 %v1083, 7
        %v1085 = vsub.s32 0, %v1084
        %v1086 = vrot.slane %v1082, %v1085
        %v1087 = vlaneseq
        %v1088 = vshrl.u32 %v1087, 7
        %v1089 = vsub.s32 1, %v1088
        %v1090 = vrot.slane %v1082, %v1089
        %vm1091 = vcmp.eq.s32.totalorder %v1086, 1
        %vm1092 = vcmp.eq.s32.totalorder %v1090, 1
        %v1093 = vsel %vm1091, %v1079, 0.0
        %v1094 = vsel %vm1092, %v1080, 0.0
        %s1095 = sld [smem:[#allocation2 + $0x1a]]
        %s1096 = sld [smem:[#allocation2 + $0x4b]]
        %v1097 = vstv %s1095
        %v1098 = vstv %s1096
        %v1099 = vsel %vm298, %v1097, %v1098
        %v1100 = vmul.f32 %v1099, %v1093
        %v1101 = vmul.f32 %v1099, %v1094
        %v1102 = vadd.f32 %v1072, %v1100
        %v1103 = vadd.f32 %v1073, %v1101
        %1104 = vrot.lane.b32.xlu0 %v237, 125
        %v1105 = vpop.permute.xlu0 %1104
        %1106 = vrot.lane.b32.xlu0 %v238, 125
        %v1107 = vpop.permute.xlu0 %1106
        %vm1108 = vcmp.lt.s32.totalorder %v304, 125
        %v1109 = vsel %vm1108, %v1105, %v1107
        %v1110 = vsel %vm1108, %v1107, %v1105
        %vm1111 = vmand %vm256, %vm295
        %v1112 = vsel %vm1111, 1, 0
        %v1113 = vlaneseq
        %v1114 = vshrl.u32 %v1113, 7
        %v1115 = vsub.s32 0, %v1114
        %v1116 = vrot.slane %v1112, %v1115
        %v1117 = vlaneseq
        %v1118 = vshrl.u32 %v1117, 7
        %v1119 = vsub.s32 1, %v1118
        %v1120 = vrot.slane %v1112, %v1119
        %vm1121 = vcmp.eq.s32.totalorder %v1116, 1
        %vm1122 = vcmp.eq.s32.totalorder %v1120, 1
        %v1123 = vsel %vm1121, %v1109, 0.0
        %v1124 = vsel %vm1122, %v1110, 0.0
        %s1125 = sld [smem:[#allocation2 + $0x1b]]
        %s1126 = sld [smem:[#allocation2 + $0x4c]]
        %v1127 = vstv %s1125
        %v1128 = vstv %s1126
        %v1129 = vsel %vm298, %v1127, %v1128
        %v1130 = vmul.f32 %v1129, %v1123
        %v1131 = vmul.f32 %v1129, %v1124
        %v1132 = vadd.f32 %v1102, %v1130
        %v1133 = vadd.f32 %v1103, %v1131
        %1134 = vrot.lane.b32.xlu0 %v237, 115
        %v1135 = vpop.permute.xlu0 %1134
        %1136 = vrot.lane.b32.xlu0 %v238, 115
        %v1137 = vpop.permute.xlu0 %1136
        %vm1138 = vcmp.lt.s32.totalorder %v304, 115
        %v1139 = vsel %vm1138, %v1135, %v1137
        %v1140 = vsel %vm1138, %v1137, %v1135
        %vm1141 = vmand %vm260, %vm272
        %v1142 = vsel %vm1141, 1, 0
        %v1143 = vlaneseq
        %v1144 = vshrl.u32 %v1143, 7
        %v1145 = vsub.s32 0, %v1144
        %v1146 = vrot.slane %v1142, %v1145
        %v1147 = vlaneseq
        %v1148 = vshrl.u32 %v1147, 7
        %v1149 = vsub.s32 1, %v1148
        %v1150 = vrot.slane %v1142, %v1149
        %vm1151 = vcmp.eq.s32.totalorder %v1146, 1
        %vm1152 = vcmp.eq.s32.totalorder %v1150, 1
        %v1153 = vsel %vm1151, %v1139, 0.0
        %v1154 = vsel %vm1152, %v1140, 0.0
        %s1155 = sld [smem:[#allocation2 + $0x1c]]
        %s1156 = sld [smem:[#allocation2 + $0x4d]]
        %v1157 = vstv %s1155
        %v1158 = vstv %s1156
        %v1159 = vsel %vm298, %v1157, %v1158
        %v1160 = vmul.f32 %v1159, %v1153
        %v1161 = vmul.f32 %v1159, %v1154
        %v1162 = vadd.f32 %v1132, %v1160
        %v1163 = vadd.f32 %v1133, %v1161
        %1164 = vrot.lane.b32.xlu0 %v237, 114
        %v1165 = vpop.permute.xlu0 %1164
        %1166 = vrot.lane.b32.xlu0 %v238, 114
        %v1167 = vpop.permute.xlu0 %1166
        %vm1168 = vcmp.lt.s32.totalorder %v304, 114
        %v1169 = vsel %vm1168, %v1165, %v1167
        %v1170 = vsel %vm1168, %v1167, %v1165
        %vm1171 = vmand %vm260, %vm276
        %v1172 = vsel %vm1171, 1, 0
        %v1173 = vlaneseq
        %v1174 = vshrl.u32 %v1173, 7
        %v1175 = vsub.s32 0, %v1174
        %v1176 = vrot.slane %v1172, %v1175
        %v1177 = vlaneseq
        %v1178 = vshrl.u32 %v1177, 7
        %v1179 = vsub.s32 1, %v1178
        %v1180 = vrot.slane %v1172, %v1179
        %vm1181 = vcmp.eq.s32.totalorder %v1176, 1
        %vm1182 = vcmp.eq.s32.totalorder %v1180, 1
        %v1183 = vsel %vm1181, %v1169, 0.0
        %v1184 = vsel %vm1182, %v1170, 0.0
        %s1185 = sld [smem:[#allocation2 + $0x1d]]
        %s1186 = sld [smem:[#allocation2 + $0x4e]]
        %v1187 = vstv %s1185
        %v1188 = vstv %s1186
        %v1189 = vsel %vm298, %v1187, %v1188
        %v1190 = vmul.f32 %v1189, %v1183
        %v1191 = vmul.f32 %v1189, %v1184
        %v1192 = vadd.f32 %v1162, %v1190
        %v1193 = vadd.f32 %v1163, %v1191
        %1194 = vrot.lane.b32.xlu0 %v237, 113
        %v1195 = vpop.permute.xlu0 %1194
        %1196 = vrot.lane.b32.xlu0 %v238, 113
        %v1197 = vpop.permute.xlu0 %1196
        %vm1198 = vcmp.lt.s32.totalorder %v304, 113
        %v1199 = vsel %vm1198, %v1195, %v1197
        %v1200 = vsel %vm1198, %v1197, %v1195
        %vm1201 = vmand %vm260, %vm280
        %v1202 = vsel %vm1201, 1, 0
        %v1203 = vlaneseq
        %v1204 = vshrl.u32 %v1203, 7
        %v1205 = vsub.s32 0, %v1204
        %v1206 = vrot.slane %v1202, %v1205
        %v1207 = vlaneseq
        %v1208 = vshrl.u32 %v1207, 7
        %v1209 = vsub.s32 1, %v1208
        %v1210 = vrot.slane %v1202, %v1209
        %vm1211 = vcmp.eq.s32.totalorder %v1206, 1
        %vm1212 = vcmp.eq.s32.totalorder %v1210, 1
        %v1213 = vsel %vm1211, %v1199, 0.0
        %v1214 = vsel %vm1212, %v1200, 0.0
        %s1215 = sld [smem:[#allocation2 + $0x1e]]
        %s1216 = sld [smem:[#allocation2 + $0x4f]]
        %v1217 = vstv %s1215
        %v1218 = vstv %s1216
        %v1219 = vsel %vm298, %v1217, %v1218
        %v1220 = vmul.f32 %v1219, %v1213
        %v1221 = vmul.f32 %v1219, %v1214
        %v1222 = vadd.f32 %v1192, %v1220
        %v1223 = vadd.f32 %v1193, %v1221
        %1224 = vrot.lane.b32.xlu0 %v237, 112
        %v1225 = vpop.permute.xlu0 %1224
        %1226 = vrot.lane.b32.xlu0 %v238, 112
        %v1227 = vpop.permute.xlu0 %1226
        %vm1228 = vcmp.lt.s32.totalorder %v304, 112
        %v1229 = vsel %vm1228, %v1225, %v1227
        %v1230 = vsel %vm1228, %v1227, %v1225
        %vm1231 = vmand %vm260, %vm283
        %v1232 = vsel %vm1231, 1, 0
        %v1233 = vlaneseq
        %v1234 = vshrl.u32 %v1233, 7
        %v1235 = vsub.s32 0, %v1234
        %v1236 = vrot.slane %v1232, %v1235
        %v1237 = vlaneseq
        %v1238 = vshrl.u32 %v1237, 7
        %v1239 = vsub.s32 1, %v1238
        %v1240 = vrot.slane %v1232, %v1239
        %vm1241 = vcmp.eq.s32.totalorder %v1236, 1
        %vm1242 = vcmp.eq.s32.totalorder %v1240, 1
        %v1243 = vsel %vm1241, %v1229, 0.0
        %v1244 = vsel %vm1242, %v1230, 0.0
        %s1245 = sld [smem:[#allocation2 + $0x1f]]
        %s1246 = sld [smem:[#allocation2 + $0x50]]
        %v1247 = vstv %s1245
        %v1248 = vstv %s1246
        %v1249 = vsel %vm298, %v1247, %v1248
        %v1250 = vmul.f32 %v1249, %v1243
        %v1251 = vmul.f32 %v1249, %v1244
        %v1252 = vadd.f32 %v1222, %v1250
        %v1253 = vadd.f32 %v1223, %v1251
        %1254 = vrot.lane.b32.xlu0 %v237, 111
        %v1255 = vpop.permute.xlu0 %1254
        %1256 = vrot.lane.b32.xlu0 %v238, 111
        %v1257 = vpop.permute.xlu0 %1256
        %vm1258 = vcmp.lt.s32.totalorder %v304, 111
        %v1259 = vsel %vm1258, %v1255, %v1257
        %v1260 = vsel %vm1258, %v1257, %v1255
        %vm1261 = vmand %vm260, %vm287
        %v1262 = vsel %vm1261, 1, 0
        %v1263 = vlaneseq
        %v1264 = vshrl.u32 %v1263, 7
        %v1265 = vsub.s32 0, %v1264
        %v1266 = vrot.slane %v1262, %v1265
        %v1267 = vlaneseq
        %v1268 = vshrl.u32 %v1267, 7
        %v1269 = vsub.s32 1, %v1268
        %v1270 = vrot.slane %v1262, %v1269
        %vm1271 = vcmp.eq.s32.totalorder %v1266, 1
        %vm1272 = vcmp.eq.s32.totalorder %v1270, 1
        %v1273 = vsel %vm1271, %v1259, 0.0
        %v1274 = vsel %vm1272, %v1260, 0.0
        %s1275 = sld [smem:[#allocation2 + $0x20]]
        %s1276 = sld [smem:[#allocation2 + $0x51]]
        %v1277 = vstv %s1275
        %v1278 = vstv %s1276
        %v1279 = vsel %vm298, %v1277, %v1278
        %v1280 = vmul.f32 %v1279, %v1273
        %v1281 = vmul.f32 %v1279, %v1274
        %v1282 = vadd.f32 %v1252, %v1280
        %v1283 = vadd.f32 %v1253, %v1281
        %1284 = vrot.lane.b32.xlu0 %v237, 110
        %v1285 = vpop.permute.xlu0 %1284
        %1286 = vrot.lane.b32.xlu0 %v238, 110
        %v1287 = vpop.permute.xlu0 %1286
        %vm1288 = vcmp.lt.s32.totalorder %v304, 110
        %v1289 = vsel %vm1288, %v1285, %v1287
        %v1290 = vsel %vm1288, %v1287, %v1285
        %vm1291 = vmand %vm260, %vm291
        %v1292 = vsel %vm1291, 1, 0
        %v1293 = vlaneseq
        %v1294 = vshrl.u32 %v1293, 7
        %v1295 = vsub.s32 0, %v1294
        %v1296 = vrot.slane %v1292, %v1295
        %v1297 = vlaneseq
        %v1298 = vshrl.u32 %v1297, 7
        %v1299 = vsub.s32 1, %v1298
        %v1300 = vrot.slane %v1292, %v1299
        %vm1301 = vcmp.eq.s32.totalorder %v1296, 1
        %vm1302 = vcmp.eq.s32.totalorder %v1300, 1
        %v1303 = vsel %vm1301, %v1289, 0.0
        %v1304 = vsel %vm1302, %v1290, 0.0
        %s1305 = sld [smem:[#allocation2 + $0x21]]
        %s1306 = sld [smem:[#allocation2 + $0x52]]
        %v1307 = vstv %s1305
        %v1308 = vstv %s1306
        %v1309 = vsel %vm298, %v1307, %v1308
        %v1310 = vmul.f32 %v1309, %v1303
        %v1311 = vmul.f32 %v1309, %v1304
        %v1312 = vadd.f32 %v1282, %v1310
        %v1313 = vadd.f32 %v1283, %v1311
        %1314 = vrot.lane.b32.xlu0 %v237, 109
        %v1315 = vpop.permute.xlu0 %1314
        %1316 = vrot.lane.b32.xlu0 %v238, 109
        %v1317 = vpop.permute.xlu0 %1316
        %vm1318 = vcmp.lt.s32.totalorder %v304, 109
        %v1319 = vsel %vm1318, %v1315, %v1317
        %v1320 = vsel %vm1318, %v1317, %v1315
        %vm1321 = vmand %vm260, %vm295
        %v1322 = vsel %vm1321, 1, 0
        %v1323 = vlaneseq
        %v1324 = vshrl.u32 %v1323, 7
        %v1325 = vsub.s32 0, %v1324
        %v1326 = vrot.slane %v1322, %v1325
        %v1327 = vlaneseq
        %v1328 = vshrl.u32 %v1327, 7
        %v1329 = vsub.s32 1, %v1328
        %v1330 = vrot.slane %v1322, %v1329
        %vm1331 = vcmp.eq.s32.totalorder %v1326, 1
        %vm1332 = vcmp.eq.s32.totalorder %v1330, 1
        %v1333 = vsel %vm1331, %v1319, 0.0
        %v1334 = vsel %vm1332, %v1320, 0.0
        %s1335 = sld [smem:[#allocation2 + $0x22]]
        %s1336 = sld [smem:[#allocation2 + $0x53]]
        %v1337 = vstv %s1335
        %v1338 = vstv %s1336
        %v1339 = vsel %vm298, %v1337, %v1338
        %v1340 = vmul.f32 %v1339, %v1333
        %v1341 = vmul.f32 %v1339, %v1334
        %v1342 = vadd.f32 %v1312, %v1340
        %v1343 = vadd.f32 %v1313, %v1341
        %1344 = vrot.lane.b32.xlu0 %v237, 99
        %v1345 = vpop.permute.xlu0 %1344
        %1346 = vrot.lane.b32.xlu0 %v238, 99
        %v1347 = vpop.permute.xlu0 %1346
        %vm1348 = vcmp.lt.s32.totalorder %v304, 99
        %v1349 = vsel %vm1348, %v1345, %v1347
        %v1350 = vsel %vm1348, %v1347, %v1345
        %vm1351 = vmand %vm264, %vm272
        %v1352 = vsel %vm1351, 1, 0
        %v1353 = vlaneseq
        %v1354 = vshrl.u32 %v1353, 7
        %v1355 = vsub.s32 0, %v1354
        %v1356 = vrot.slane %v1352, %v1355
        %v1357 = vlaneseq
        %v1358 = vshrl.u32 %v1357, 7
        %v1359 = vsub.s32 1, %v1358
        %v1360 = vrot.slane %v1352, %v1359
        %vm1361 = vcmp.eq.s32.totalorder %v1356, 1
        %vm1362 = vcmp.eq.s32.totalorder %v1360, 1
        %v1363 = vsel %vm1361, %v1349, 0.0
        %v1364 = vsel %vm1362, %v1350, 0.0
        %s1365 = sld [smem:[#allocation2 + $0x23]]
        %s1366 = sld [smem:[#allocation2 + $0x54]]
        %v1367 = vstv %s1365
        %v1368 = vstv %s1366
        %v1369 = vsel %vm298, %v1367, %v1368
        %v1370 = vmul.f32 %v1369, %v1363
        %v1371 = vmul.f32 %v1369, %v1364
        %v1372 = vadd.f32 %v1342, %v1370
        %v1373 = vadd.f32 %v1343, %v1371
        %1374 = vrot.lane.b32.xlu0 %v237, 98
        %v1375 = vpop.permute.xlu0 %1374
        %1376 = vrot.lane.b32.xlu0 %v238, 98
        %v1377 = vpop.permute.xlu0 %1376
        %vm1378 = vcmp.lt.s32.totalorder %v304, 98
        %v1379 = vsel %vm1378, %v1375, %v1377
        %v1380 = vsel %vm1378, %v1377, %v1375
        %vm1381 = vmand %vm264, %vm276
        %v1382 = vsel %vm1381, 1, 0
        %v1383 = vlaneseq
        %v1384 = vshrl.u32 %v1383, 7
        %v1385 = vsub.s32 0, %v1384
        %v1386 = vrot.slane %v1382, %v1385
        %v1387 = vlaneseq
        %v1388 = vshrl.u32 %v1387, 7
        %v1389 = vsub.s32 1, %v1388
        %v1390 = vrot.slane %v1382, %v1389
        %vm1391 = vcmp.eq.s32.totalorder %v1386, 1
        %vm1392 = vcmp.eq.s32.totalorder %v1390, 1
        %v1393 = vsel %vm1391, %v1379, 0.0
        %v1394 = vsel %vm1392, %v1380, 0.0
        %s1395 = sld [smem:[#allocation2 + $0x24]]
        %s1396 = sld [smem:[#allocation2 + $0x55]]
        %v1397 = vstv %s1395
        %v1398 = vstv %s1396
        %v1399 = vsel %vm298, %v1397, %v1398
        %v1400 = vmul.f32 %v1399, %v1393
        %v1401 = vmul.f32 %v1399, %v1394
        %v1402 = vadd.f32 %v1372, %v1400
        %v1403 = vadd.f32 %v1373, %v1401
        %1404 = vrot.lane.b32.xlu0 %v237, 97
        %v1405 = vpop.permute.xlu0 %1404
        %1406 = vrot.lane.b32.xlu0 %v238, 97
        %v1407 = vpop.permute.xlu0 %1406
        %vm1408 = vcmp.lt.s32.totalorder %v304, 97
        %v1409 = vsel %vm1408, %v1405, %v1407
        %v1410 = vsel %vm1408, %v1407, %v1405
        %vm1411 = vmand %vm264, %vm280
        %v1412 = vsel %vm1411, 1, 0
        %v1413 = vlaneseq
        %v1414 = vshrl.u32 %v1413, 7
        %v1415 = vsub.s32 0, %v1414
        %v1416 = vrot.slane %v1412, %v1415
        %v1417 = vlaneseq
        %v1418 = vshrl.u32 %v1417, 7
        %v1419 = vsub.s32 1, %v1418
        %v1420 = vrot.slane %v1412, %v1419
        %vm1421 = vcmp.eq.s32.totalorder %v1416, 1
        %vm1422 = vcmp.eq.s32.totalorder %v1420, 1
        %v1423 = vsel %vm1421, %v1409, 0.0
        %v1424 = vsel %vm1422, %v1410, 0.0
        %s1425 = sld [smem:[#allocation2 + $0x25]]
        %s1426 = sld [smem:[#allocation2 + $0x56]]
        %v1427 = vstv %s1425
        %v1428 = vstv %s1426
        %v1429 = vsel %vm298, %v1427, %v1428
        %v1430 = vmul.f32 %v1429, %v1423
        %v1431 = vmul.f32 %v1429, %v1424
        %v1432 = vadd.f32 %v1402, %v1430
        %v1433 = vadd.f32 %v1403, %v1431
        %1434 = vrot.lane.b32.xlu0 %v237, 96
        %v1435 = vpop.permute.xlu0 %1434
        %1436 = vrot.lane.b32.xlu0 %v238, 96
        %v1437 = vpop.permute.xlu0 %1436
        %vm1438 = vcmp.lt.s32.totalorder %v304, 96
        %v1439 = vsel %vm1438, %v1435, %v1437
        %v1440 = vsel %vm1438, %v1437, %v1435
        %vm1441 = vmand %vm264, %vm283
        %v1442 = vsel %vm1441, 1, 0
        %v1443 = vlaneseq
        %v1444 = vshrl.u32 %v1443, 7
        %v1445 = vsub.s32 0, %v1444
        %v1446 = vrot.slane %v1442, %v1445
        %v1447 = vlaneseq
        %v1448 = vshrl.u32 %v1447, 7
        %v1449 = vsub.s32 1, %v1448
        %v1450 = vrot.slane %v1442, %v1449
        %vm1451 = vcmp.eq.s32.totalorder %v1446, 1
        %vm1452 = vcmp.eq.s32.totalorder %v1450, 1
        %v1453 = vsel %vm1451, %v1439, 0.0
        %v1454 = vsel %vm1452, %v1440, 0.0
        %s1455 = sld [smem:[#allocation2 + $0x26]]
        %s1456 = sld [smem:[#allocation2 + $0x57]]
        %v1457 = vstv %s1455
        %v1458 = vstv %s1456
        %v1459 = vsel %vm298, %v1457, %v1458
        %v1460 = vmul.f32 %v1459, %v1453
        %v1461 = vmul.f32 %v1459, %v1454
        %v1462 = vadd.f32 %v1432, %v1460
        %v1463 = vadd.f32 %v1433, %v1461
        %1464 = vrot.lane.b32.xlu0 %v237, 95
        %v1465 = vpop.permute.xlu0 %1464
        %1466 = vrot.lane.b32.xlu0 %v238, 95
        %v1467 = vpop.permute.xlu0 %1466
        %vm1468 = vcmp.lt.s32.totalorder %v304, 95
        %v1469 = vsel %vm1468, %v1465, %v1467
        %v1470 = vsel %vm1468, %v1467, %v1465
        %vm1471 = vmand %vm264, %vm287
        %v1472 = vsel %vm1471, 1, 0
        %v1473 = vlaneseq
        %v1474 = vshrl.u32 %v1473, 7
        %v1475 = vsub.s32 0, %v1474
        %v1476 = vrot.slane %v1472, %v1475
        %v1477 = vlaneseq
        %v1478 = vshrl.u32 %v1477, 7
        %v1479 = vsub.s32 1, %v1478
        %v1480 = vrot.slane %v1472, %v1479
        %vm1481 = vcmp.eq.s32.totalorder %v1476, 1
        %vm1482 = vcmp.eq.s32.totalorder %v1480, 1
        %v1483 = vsel %vm1481, %v1469, 0.0
        %v1484 = vsel %vm1482, %v1470, 0.0
        %s1485 = sld [smem:[#allocation2 + $0x27]]
        %s1486 = sld [smem:[#allocation2 + $0x58]]
        %v1487 = vstv %s1485
        %v1488 = vstv %s1486
        %v1489 = vsel %vm298, %v1487, %v1488
        %v1490 = vmul.f32 %v1489, %v1483
        %v1491 = vmul.f32 %v1489, %v1484
        %v1492 = vadd.f32 %v1462, %v1490
        %v1493 = vadd.f32 %v1463, %v1491
        %1494 = vrot.lane.b32.xlu0 %v237, 94
        %v1495 = vpop.permute.xlu0 %1494
        %1496 = vrot.lane.b32.xlu0 %v238, 94
        %v1497 = vpop.permute.xlu0 %1496
        %vm1498 = vcmp.lt.s32.totalorder %v304, 94
        %v1499 = vsel %vm1498, %v1495, %v1497
        %v1500 = vsel %vm1498, %v1497, %v1495
        %vm1501 = vmand %vm264, %vm291
        %v1502 = vsel %vm1501, 1, 0
        %v1503 = vlaneseq
        %v1504 = vshrl.u32 %v1503, 7
        %v1505 = vsub.s32 0, %v1504
        %v1506 = vrot.slane %v1502, %v1505
        %v1507 = vlaneseq
        %v1508 = vshrl.u32 %v1507, 7
        %v1509 = vsub.s32 1, %v1508
        %v1510 = vrot.slane %v1502, %v1509
        %vm1511 = vcmp.eq.s32.totalorder %v1506, 1
        %vm1512 = vcmp.eq.s32.totalorder %v1510, 1
        %v1513 = vsel %vm1511, %v1499, 0.0
        %v1514 = vsel %vm1512, %v1500, 0.0
        %s1515 = sld [smem:[#allocation2 + $0x28]]
        %s1516 = sld [smem:[#allocation2 + $0x59]]
        %v1517 = vstv %s1515
        %v1518 = vstv %s1516
        %v1519 = vsel %vm298, %v1517, %v1518
        %v1520 = vmul.f32 %v1519, %v1513
        %v1521 = vmul.f32 %v1519, %v1514
        %v1522 = vadd.f32 %v1492, %v1520
        %v1523 = vadd.f32 %v1493, %v1521
        %1524 = vrot.lane.b32.xlu0 %v237, 93
        %v1525 = vpop.permute.xlu0 %1524
        %1526 = vrot.lane.b32.xlu0 %v238, 93
        %v1527 = vpop.permute.xlu0 %1526
        %vm1528 = vcmp.lt.s32.totalorder %v304, 93
        %v1529 = vsel %vm1528, %v1525, %v1527
        %v1530 = vsel %vm1528, %v1527, %v1525
        %vm1531 = vmand %vm264, %vm295
        %v1532 = vsel %vm1531, 1, 0
        %v1533 = vlaneseq
        %v1534 = vshrl.u32 %v1533, 7
        %v1535 = vsub.s32 0, %v1534
        %v1536 = vrot.slane %v1532, %v1535
        %v1537 = vlaneseq
        %v1538 = vshrl.u32 %v1537, 7
        %v1539 = vsub.s32 1, %v1538
        %v1540 = vrot.slane %v1532, %v1539
        %vm1541 = vcmp.eq.s32.totalorder %v1536, 1
        %vm1542 = vcmp.eq.s32.totalorder %v1540, 1
        %v1543 = vsel %vm1541, %v1529, 0.0
        %v1544 = vsel %vm1542, %v1530, 0.0
        %s1545 = sld [smem:[#allocation2 + $0x29]]
        %s1546 = sld [smem:[#allocation2 + $0x5a]]
        %v1547 = vstv %s1545
        %v1548 = vstv %s1546
        %v1549 = vsel %vm298, %v1547, %v1548
        %v1550 = vmul.f32 %v1549, %v1543
        %v1551 = vmul.f32 %v1549, %v1544
        %v1552 = vadd.f32 %v1522, %v1550
        %v1553 = vadd.f32 %v1523, %v1551
        %1554 = vrot.lane.b32.xlu0 %v237, 83
        %v1555 = vpop.permute.xlu0 %1554
        %1556 = vrot.lane.b32.xlu0 %v238, 83
        %v1557 = vpop.permute.xlu0 %1556
        %vm1558 = vcmp.lt.s32.totalorder %v304, 83
        %v1559 = vsel %vm1558, %v1555, %v1557
        %v1560 = vsel %vm1558, %v1557, %v1555
        %vm1561 = vmand %vm268, %vm272
        %v1562 = vsel %vm1561, 1, 0
        %v1563 = vlaneseq
        %v1564 = vshrl.u32 %v1563, 7
        %v1565 = vsub.s32 0, %v1564
        %v1566 = vrot.slane %v1562, %v1565
        %v1567 = vlaneseq
        %v1568 = vshrl.u32 %v1567, 7
        %v1569 = vsub.s32 1, %v1568
        %v1570 = vrot.slane %v1562, %v1569
        %vm1571 = vcmp.eq.s32.totalorder %v1566, 1
        %vm1572 = vcmp.eq.s32.totalorder %v1570, 1
        %v1573 = vsel %vm1571, %v1559, 0.0
        %v1574 = vsel %vm1572, %v1560, 0.0
        %s1575 = sld [smem:[#allocation2 + $0x2a]]
        %s1576 = sld [smem:[#allocation2 + $0x5b]]
        %v1577 = vstv %s1575
        %v1578 = vstv %s1576
        %v1579 = vsel %vm298, %v1577, %v1578
        %v1580 = vmul.f32 %v1579, %v1573
        %v1581 = vmul.f32 %v1579, %v1574
        %v1582 = vadd.f32 %v1552, %v1580
        %v1583 = vadd.f32 %v1553, %v1581
        %1584 = vrot.lane.b32.xlu0 %v237, 82
        %v1585 = vpop.permute.xlu0 %1584
        %1586 = vrot.lane.b32.xlu0 %v238, 82
        %v1587 = vpop.permute.xlu0 %1586
        %vm1588 = vcmp.lt.s32.totalorder %v304, 82
        %v1589 = vsel %vm1588, %v1585, %v1587
        %v1590 = vsel %vm1588, %v1587, %v1585
        %vm1591 = vmand %vm268, %vm276
        %v1592 = vsel %vm1591, 1, 0
        %v1593 = vlaneseq
        %v1594 = vshrl.u32 %v1593, 7
        %v1595 = vsub.s32 0, %v1594
        %v1596 = vrot.slane %v1592, %v1595
        %v1597 = vlaneseq
        %v1598 = vshrl.u32 %v1597, 7
        %v1599 = vsub.s32 1, %v1598
        %v1600 = vrot.slane %v1592, %v1599
        %vm1601 = vcmp.eq.s32.totalorder %v1596, 1
        %vm1602 = vcmp.eq.s32.totalorder %v1600, 1
        %v1603 = vsel %vm1601, %v1589, 0.0
        %v1604 = vsel %vm1602, %v1590, 0.0
        %s1605 = sld [smem:[#allocation2 + $0x2b]]
        %s1606 = sld [smem:[#allocation2 + $0x5c]]
        %v1607 = vstv %s1605
        %v1608 = vstv %s1606
        %v1609 = vsel %vm298, %v1607, %v1608
        %v1610 = vmul.f32 %v1609, %v1603
        %v1611 = vmul.f32 %v1609, %v1604
        %v1612 = vadd.f32 %v1582, %v1610
        %v1613 = vadd.f32 %v1583, %v1611
        %1614 = vrot.lane.b32.xlu0 %v237, 81
        %v1615 = vpop.permute.xlu0 %1614
        %1616 = vrot.lane.b32.xlu0 %v238, 81
        %v1617 = vpop.permute.xlu0 %1616
        %vm1618 = vcmp.lt.s32.totalorder %v304, 81
        %v1619 = vsel %vm1618, %v1615, %v1617
        %v1620 = vsel %vm1618, %v1617, %v1615
        %vm1621 = vmand %vm268, %vm280
        %v1622 = vsel %vm1621, 1, 0
        %v1623 = vlaneseq
        %v1624 = vshrl.u32 %v1623, 7
        %v1625 = vsub.s32 0, %v1624
        %v1626 = vrot.slane %v1622, %v1625
        %v1627 = vlaneseq
        %v1628 = vshrl.u32 %v1627, 7
        %v1629 = vsub.s32 1, %v1628
        %v1630 = vrot.slane %v1622, %v1629
        %vm1631 = vcmp.eq.s32.totalorder %v1626, 1
        %vm1632 = vcmp.eq.s32.totalorder %v1630, 1
        %v1633 = vsel %vm1631, %v1619, 0.0
        %v1634 = vsel %vm1632, %v1620, 0.0
        %s1635 = sld [smem:[#allocation2 + $0x2c]]
        %s1636 = sld [smem:[#allocation2 + $0x5d]]
        %v1637 = vstv %s1635
        %v1638 = vstv %s1636
        %v1639 = vsel %vm298, %v1637, %v1638
        %v1640 = vmul.f32 %v1639, %v1633
        %v1641 = vmul.f32 %v1639, %v1634
        %v1642 = vadd.f32 %v1612, %v1640
        %v1643 = vadd.f32 %v1613, %v1641
        %1644 = vrot.lane.b32.xlu0 %v237, 80
        %v1645 = vpop.permute.xlu0 %1644
        %1646 = vrot.lane.b32.xlu0 %v238, 80
        %v1647 = vpop.permute.xlu0 %1646
        %vm1648 = vcmp.lt.s32.totalorder %v304, 80
        %v1649 = vsel %vm1648, %v1645, %v1647
        %v1650 = vsel %vm1648, %v1647, %v1645
        %vm1651 = vmand %vm268, %vm283
        %v1652 = vsel %vm1651, 1, 0
        %v1653 = vlaneseq
        %v1654 = vshrl.u32 %v1653, 7
        %v1655 = vsub.s32 0, %v1654
        %v1656 = vrot.slane %v1652, %v1655
        %v1657 = vlaneseq
        %v1658 = vshrl.u32 %v1657, 7
        %v1659 = vsub.s32 1, %v1658
        %v1660 = vrot.slane %v1652, %v1659
        %vm1661 = vcmp.eq.s32.totalorder %v1656, 1
        %vm1662 = vcmp.eq.s32.totalorder %v1660, 1
        %v1663 = vsel %vm1661, %v1649, 0.0
        %v1664 = vsel %vm1662, %v1650, 0.0
        %s1665 = sld [smem:[#allocation2 + $0x2d]]
        %s1666 = sld [smem:[#allocation2 + $0x5e]]
        %v1667 = vstv %s1665
        %v1668 = vstv %s1666
        %v1669 = vsel %vm298, %v1667, %v1668
        %v1670 = vmul.f32 %v1669, %v1663
        %v1671 = vmul.f32 %v1669, %v1664
        %v1672 = vadd.f32 %v1642, %v1670
        %v1673 = vadd.f32 %v1643, %v1671
        %1674 = vrot.lane.b32.xlu0 %v237, 79
        %v1675 = vpop.permute.xlu0 %1674
        %1676 = vrot.lane.b32.xlu0 %v238, 79
        %v1677 = vpop.permute.xlu0 %1676
        %vm1678 = vcmp.lt.s32.totalorder %v304, 79
        %v1679 = vsel %vm1678, %v1675, %v1677
        %v1680 = vsel %vm1678, %v1677, %v1675
        %vm1681 = vmand %vm268, %vm287
        %v1682 = vsel %vm1681, 1, 0
        %v1683 = vlaneseq
        %v1684 = vshrl.u32 %v1683, 7
        %v1685 = vsub.s32 0, %v1684
        %v1686 = vrot.slane %v1682, %v1685
        %v1687 = vlaneseq
        %v1688 = vshrl.u32 %v1687, 7
        %v1689 = vsub.s32 1, %v1688
        %v1690 = vrot.slane %v1682, %v1689
        %vm1691 = vcmp.eq.s32.totalorder %v1686, 1
        %vm1692 = vcmp.eq.s32.totalorder %v1690, 1
        %v1693 = vsel %vm1691, %v1679, 0.0
        %v1694 = vsel %vm1692, %v1680, 0.0
        %s1695 = sld [smem:[#allocation2 + $0x2e]]
        %s1696 = sld [smem:[#allocation2 + $0x5f]]
        %v1697 = vstv %s1695
        %v1698 = vstv %s1696
        %v1699 = vsel %vm298, %v1697, %v1698
        %v1700 = vmul.f32 %v1699, %v1693
        %v1701 = vmul.f32 %v1699, %v1694
        %v1702 = vadd.f32 %v1672, %v1700
        %v1703 = vadd.f32 %v1673, %v1701
        %1704 = vrot.lane.b32.xlu0 %v237, 78
        %v1705 = vpop.permute.xlu0 %1704
        %1706 = vrot.lane.b32.xlu0 %v238, 78
        %v1707 = vpop.permute.xlu0 %1706
        %vm1708 = vcmp.lt.s32.totalorder %v304, 78
        %v1709 = vsel %vm1708, %v1705, %v1707
        %v1710 = vsel %vm1708, %v1707, %v1705
        %vm1711 = vmand %vm268, %vm291
        %v1712 = vsel %vm1711, 1, 0
        %v1713 = vlaneseq
        %v1714 = vshrl.u32 %v1713, 7
        %v1715 = vsub.s32 0, %v1714
        %v1716 = vrot.slane %v1712, %v1715
        %v1717 = vlaneseq
        %v1718 = vshrl.u32 %v1717, 7
        %v1719 = vsub.s32 1, %v1718
        %v1720 = vrot.slane %v1712, %v1719
        %vm1721 = vcmp.eq.s32.totalorder %v1716, 1
        %vm1722 = vcmp.eq.s32.totalorder %v1720, 1
        %v1723 = vsel %vm1721, %v1709, 0.0
        %v1724 = vsel %vm1722, %v1710, 0.0
        %s1725 = sld [smem:[#allocation2 + $0x2f]]
        %s1726 = sld [smem:[#allocation2 + $0x60]]
        %v1727 = vstv %s1725
        %v1728 = vstv %s1726
        %v1729 = vsel %vm298, %v1727, %v1728
        %v1730 = vmul.f32 %v1729, %v1723
        %v1731 = vmul.f32 %v1729, %v1724
        %v1732 = vadd.f32 %v1702, %v1730
        %v1733 = vadd.f32 %v1703, %v1731
        %1734 = vrot.lane.b32.xlu0 %v237, 77
        %v1735 = vpop.permute.xlu0 %1734
        %1736 = vrot.lane.b32.xlu0 %v238, 77
        %v1737 = vpop.permute.xlu0 %1736
        %vm1738 = vcmp.lt.s32.totalorder %v304, 77
        %v1739 = vsel %vm1738, %v1735, %v1737
        %v1740 = vsel %vm1738, %v1737, %v1735
        %vm1741 = vmand %vm268, %vm295
        %v1742 = vsel %vm1741, 1, 0
        %v1743 = vlaneseq
        %v1744 = vshrl.u32 %v1743, 7
        %v1745 = vsub.s32 0, %v1744
        %v1746 = vrot.slane %v1742, %v1745
        %v1747 = vlaneseq
        %v1748 = vshrl.u32 %v1747, 7
        %v1749 = vsub.s32 1, %v1748
        %v1750 = vrot.slane %v1742, %v1749
        %vm1751 = vcmp.eq.s32.totalorder %v1746, 1
        %vm1752 = vcmp.eq.s32.totalorder %v1750, 1
        %v1753 = vsel %vm1751, %v1739, 0.0
        %v1754 = vsel %vm1752, %v1740, 0.0
        %s1755 = sld [smem:[#allocation2 + $0x30]]
        %s1756 = sld [smem:[#allocation2 + $0x61]]
        %v1757 = vstv %s1755
        %v1758 = vstv %s1756
        %v1759 = vsel %vm298, %v1757, %v1758
        %v1760 = vmul.f32 %v1759, %v1753
        %v1761 = vmul.f32 %v1759, %v1754
        %v1762 = vadd.f32 %v1732, %v1760
        %v1763 = vadd.f32 %v1733, %v1761
        %vm1764 = vcmask 1041408
        %v1765 = vsel %vm1764, %v1762, 0.0
        %v1766 = vrot.slane %v1765, 4
        %v1767 = vadd.f32 %v1765, %v1766
        %v1768 = vrot.slane %v1767, 2
        %v1769 = vadd.f32 %v1767, %v1768
        %v1770 = vrot.slane %v1769, 1
        %v1771 = vadd.f32 %v1769, %v1770
        %v1772 = vsel %vm1764, %v1763, 0.0
        %v1773 = vrot.slane %v1772, 4
        %v1774 = vadd.f32 %v1772, %v1773
        %v1775 = vrot.slane %v1774, 2
        %v1776 = vadd.f32 %v1774, %v1775
        %v1777 = vrot.slane %v1776, 1
        %v1778 = vadd.f32 %v1776, %v1777
        %v1779 = vxor.u32 %v1771, 2147483648
        %v1780 = vxor.u32 %v1778, 2147483648
        %v1781 = vmul.f32 %v1779, 1.442695
        %v1782 = vpow.pop %v1781
        %v1783 = vmul.f32 %v1780, 1.442695
        %v1784 = vpow.pop %v1783
        %v1785 = vadd.f32 %v1782, 1.0
        %v1786 = vadd.f32 %v1784, 1.0
        %v1787 = vrcp.pop %v1785
        %v1788 = vmul.f32 1.0, %v1787
        %v1789 = vrcp.pop %v1786
        %v1790 = vmul.f32 1.0, %v1789
        %v1793 = vcombine.low %v1788, %v1790
        %v1795 = vmul.f32 %v201, %v1793
        %1796 = vst [vmem:[%s200] sm:$0xff] %v1795
        %s1797 = sand.u32 %s97, 1
        %s1798 = scalar_lea.sflag [#allocation4], %s1797
        %s1799 = sand.u32 %s97, 1
        %s1800 = smul.addr %s1799, 8
        %s1801 = scalar_lea.vmem [#allocation7], %s1800
        // Predicated region
        $region41: #{tpu_custom_call.1} parent=31 // pred_check
          %p1802 = pneg %p107
        $region42: #{tpu_custom_call.1} parent=31 // pred_check_branch
          %1804 = sbr.rel (%p1802) target = $region44
        $region43: #{tpu_custom_call.1} parent=31 // pred_region
          %s1806 = ssub.s32 128, 128
          %1807 = vsyncadd %s1798, %s1806
          %s1808 = smul.addr %s21, 2
          %s1809 = smul.addr %s1808, 64
          %s1810 = scalar_lea.hbm %s3, %s1809
          %s1812 = sshll.u32 %s1801, 4
          %s1813 = int_to_ptr.vmem [resolvable:$true] %s1812
          %1815 = dma.vmem_to_hbm [thread:$0]  %s1813, 128, %s1810, %s1798
        $region44: #{tpu_custom_call.1} parent=31 // pred_fallthru
          _
      $region32: #{tpu_custom_call.1} parent=5 // pred_fallthru
        _
      %p1816 = scmp.le.s32.totalorder 2, %s16
      // Predicated region
      $region45: #{tpu_custom_call.1} parent=5 // pred_check
        %p1817 = pneg %p1816
      $region46: #{tpu_custom_call.1} parent=5 // pred_check_branch
        %1819 = sbr.rel (%p1817) target = $region48
      $region47: #{tpu_custom_call.1} parent=5 // pred_region
        %s1820 = ssub.s32 %s16, 2
        // Predicated region
        $region49: #{tpu_custom_call.1} parent=47 // pred_check
          %p1821 = pneg %p113
        $region50: #{tpu_custom_call.1} parent=47 // pred_check_branch
          %1823 = sbr.rel (%p1821) target = $region52
        $region51: #{tpu_custom_call.1} parent=47 // pred_region
          %s1824 = sand.u32 %s98, 1
          %s1825 = scalar_lea.sflag [#allocation4], %s1824
          %s1826 = sand.u32 %s98, 1
          %s1827 = smul.addr %s1826, 8
          %s1828 = scalar_lea.vmem [#allocation7], %s1827
          %1829 = dma.done %s1825, 128
        $region52: #{tpu_custom_call.1} parent=47 // pred_fallthru
          _
      $region48: #{tpu_custom_call.1} parent=5 // pred_fallthru
        _
    $region6: #{tpu_custom_call.1} parent=1 // loop_footer
      %s20 = sadd.s32 1, %s16
    $region7: #{tpu_custom_call.1} parent=1 // loop_footer_branch
      %15 = sbr.rel target = $region3
    $region8: #{tpu_custom_call.1} parent=1 // loop_exit
      _
    %1830 = vsyncpa [#allocation3], 1
    %s1831 = scalar_lea.sflag [#allocation3], 1
    %1832 = vsyncpa %s1831, 1
    %1833 = vsyncpa [#allocation4], 1
    %s1834 = scalar_lea.sflag [#allocation4], 1
    %1835 = vsyncpa %s1834, 1
    %1836 = vsyncpa [#allocation5], 1
    %s1837 = scalar_lea.sflag [#allocation5], 1
    %1838 = vsyncpa %s1837, 1

</llo_original>
